<compile_context>
chip_gen: v6e
topology: v6e:2x2x1
jax: 0.10.0
libtpu: 0.0.40
codegen_flags: <defaults>
</compile_context>

<pallas_src>
import math
from functools import partial

import jax
import jax.numpy as jnp
from jax.experimental import pallas as pl
from jax.experimental.pallas import tpu as pltpu


# -------------------------------------------------------------------------
# Fused encoder-layer kernel (one batch element per grid step)
# -------------------------------------------------------------------------
def _encoder_layer_kernel(x_ref, mask_ref,
                          wqkv_ref, bqkv_ref, wo_ref, bo_ref,
                          g1_ref, b1_ref,
                          w1_ref, bf1_ref, w2_ref, bf2_ref,
                          g2_ref, b2_ref,
                          o_ref, attnw_ref, *, num_heads, d_k):
    x = x_ref[0]                 # (L, D)  one batch element
    key_mask = mask_ref[0]       # (1, L)  1.0 = attend, 0.0 = masked
    L, D = x.shape
    scale = 1.0 / math.sqrt(d_k)

    # ---- fused Q/K/V projection: one lane-dense (L, 3D) matmul ----
    qkv = jnp.dot(x, wqkv_ref[...], preferred_element_type=jnp.float32) + bqkv_ref[...]
    q = qkv[:, 0 * D:1 * D]
    k = qkv[:, 1 * D:2 * D]
    v = qkv[:, 2 * D:3 * D]

    # ---- scaled dot-product attention, all heads computed in VMEM ----
    head_outs = []
    for h in range(num_heads):          # static unroll (num_heads small)
        sl = slice(h * d_k, (h + 1) * d_k)
        qh, kh, vh = q[:, sl], k[:, sl], v[:, sl]
        s = jnp.einsum('qd,kd->qk', qh, kh,
                       preferred_element_type=jnp.float32) * scale
        s = jnp.where(key_mask == 0.0, -1e9, s)        # broadcasts over query rows
        s = s - jnp.max(s, axis=-1, keepdims=True)
        e = jnp.exp(s)
        w = e * pl.reciprocal(jnp.sum(e, axis=-1, keepdims=True), approx=True)
        # TODO(synk): attention dropout is identity (inference semantics).
        attnw_ref[0, h] = w.astype(attnw_ref.dtype)
        head_outs.append(jnp.dot(w, vh, preferred_element_type=jnp.float32))
    attn = jnp.concatenate(head_outs, axis=-1)         # (L, D) head merge in VMEM

    # ---- output projection + residual + LayerNorm 1 ----
    proj = jnp.dot(attn, wo_ref[...], preferred_element_type=jnp.float32) + bo_ref[...]
    h1 = x + proj
    mu1 = jnp.mean(h1, axis=-1, keepdims=True)
    var1 = jnp.mean((h1 - mu1) ** 2, axis=-1, keepdims=True)
    x1 = (h1 - mu1) * jax.lax.rsqrt(var1 + 1e-5) * g1_ref[...] + b1_ref[...]

    # ---- FeedForward (lin1 + ReLU + lin2); d_ff intermediate stays on-chip ----
    f = jnp.dot(x1, w1_ref[...], preferred_element_type=jnp.float32) + bf1_ref[...]
    f = jnp.maximum(f, 0.0)
    f = jnp.dot(f, w2_ref[...], preferred_element_type=jnp.float32) + bf2_ref[...]

    # ---- residual + LayerNorm 2 ----
    h2 = x1 + f
    mu2 = jnp.mean(h2, axis=-1, keepdims=True)
    var2 = jnp.mean((h2 - mu2) ** 2, axis=-1, keepdims=True)
    o_ref[0] = ((h2 - mu2) * jax.lax.rsqrt(var2 + 1e-5) * g2_ref[...]
                + b2_ref[...]).astype(o_ref.dtype)


def encoder_layer_forward(params, x, key_mask, *, num_heads):
    """x: (B, L, D) f32, key_mask: (B, 1, L) f32 (1=keep, 0=pad) -> (out, attn_w)."""
    B, L, D = x.shape
    d_ff = params["w1"].shape[1]
    d_k = D // num_heads
    row = lambda a: a.reshape(1, -1)
    full2d = lambda b: (0, 0)

    kern = partial(_encoder_layer_kernel, num_heads=num_heads, d_k=d_k)
    out, attn_w = pl.pallas_call(
        kern,
        out_shape=(jax.ShapeDtypeStruct((B, L, D), x.dtype),
                   jax.ShapeDtypeStruct((B, num_heads, L, L), jnp.float32)),
        grid=(B,),
        in_specs=[
            pl.BlockSpec((1, L, D), lambda b: (b, 0, 0)),        # x
            pl.BlockSpec((1, 1, L), lambda b: (b, 0, 0)),        # key-padding mask
            pl.BlockSpec((D, 3 * D), full2d),                    # W_qkv (fused)
            pl.BlockSpec((1, 3 * D), full2d),                    # b_qkv
            pl.BlockSpec((D, D), full2d),                        # W_o
            pl.BlockSpec((1, D), full2d),                        # b_o
            pl.BlockSpec((1, D), full2d),                        # ln1 gamma
            pl.BlockSpec((1, D), full2d),                        # ln1 beta
            pl.BlockSpec((D, d_ff), full2d),                     # W1
            pl.BlockSpec((1, d_ff), full2d),                     # b1
            pl.BlockSpec((d_ff, D), full2d),                     # W2
            pl.BlockSpec((1, D), full2d),                        # b2
            pl.BlockSpec((1, D), full2d),                        # ln2 gamma
            pl.BlockSpec((1, D), full2d),                        # ln2 beta
        ],
        out_specs=(
            pl.BlockSpec((1, L, D), lambda b: (b, 0, 0)),
            pl.BlockSpec((1, num_heads, L, L), lambda b: (b, 0, 0, 0)),
        ),
        compiler_params=pltpu.CompilerParams(
            dimension_semantics=("parallel",)),
    )(x, key_mask,
      params["w_qkv"], row(params["b_qkv"]),
      params["w_o"], row(params["b_o"]),
      row(params["ln1_g"]), row(params["ln1_b"]),
      params["w1"], row(params["b1"]),
      params["w2"], row(params["b2"]),
      row(params["ln2_g"]), row(params["ln2_b"]))
    return out, attn_w


# -------------------------------------------------------------------------
# Parameter init (matches PyTorch nn.Linear / nn.LayerNorm shapes & defaults)
# -------------------------------------------------------------------------
def _init_linear(key, d_in, d_out):
    kw, kb = jax.random.split(key)
    bound = 1.0 / math.sqrt(d_in)
    w = jax.random.uniform(kw, (d_in, d_out), jnp.float32, -bound, bound)
    b = jax.random.uniform(kb, (d_out,), jnp.float32, -bound, bound)
    return w, b


def init_encoder_layer(key, d_model, num_heads, d_ff):
    kq, kk, kv, ko, k1, k2 = jax.random.split(key, 6)
    wq, bq = _init_linear(kq, d_model, d_model)
    wk, bk = _init_linear(kk, d_model, d_model)
    wv, bv = _init_linear(kv, d_model, d_model)
    wo, bo = _init_linear(ko, d_model, d_model)
    w1, b1 = _init_linear(k1, d_model, d_ff)
    w2, b2 = _init_linear(k2, d_ff, d_model)
    return {
        "w_qkv": jnp.concatenate([wq, wk, wv], axis=1),   # (D, 3D) fused QKV
        "b_qkv": jnp.concatenate([bq, bk, bv], axis=0),   # (3D,)
        "w_o": wo, "b_o": bo,
        "w1": w1, "b1": b1, "w2": w2, "b2": b2,
        "ln1_g": jnp.ones((d_model,), jnp.float32),
        "ln1_b": jnp.zeros((d_model,), jnp.float32),
        "ln2_g": jnp.ones((d_model,), jnp.float32),
        "ln2_b": jnp.zeros((d_model,), jnp.float32),
    }


# -------------------------------------------------------------------------
# Pure-JAX reference (mirrors the PyTorch module) for a correctness check
# -------------------------------------------------------------------------
def reference_encoder_layer(params, x, key_mask, *, num_heads):
    B, L, D = x.shape
    d_k = D // num_heads
    qkv = x @ params["w_qkv"] + params["b_qkv"]
    q, k, v = jnp.split(qkv, 3, axis=-1)

    def heads(t):
        return t.reshape(B, L, num_heads, d_k).transpose(0, 2, 1, 3)

    Q, K, V = heads(q), heads(k), heads(v)
    scores = jnp.einsum('bhqd,bhkd->bhqk', Q, K) / math.sqrt(d_k)
    scores = jnp.where(key_mask[:, :, None, :] == 0.0, -1e9, scores)
    w = jax.nn.softmax(scores, axis=-1)
    attn = jnp.einsum('bhqk,bhkd->bhqd', w, V)
    attn = attn.transpose(0, 2, 1, 3).reshape(B, L, D)
    proj = attn @ params["w_o"] + params["b_o"]

    def ln(h, g, b):
        mu = h.mean(-1, keepdims=True)
        var = ((h - mu) ** 2).mean(-1, keepdims=True)
        return (h - mu) / jnp.sqrt(var + 1e-5) * g + b

    x1 = ln(x + proj, params["ln1_g"], params["ln1_b"])
    f = jnp.maximum(x1 @ params["w1"] + params["b1"], 0.0) @ params["w2"] + params["b2"]
    x2 = ln(x1 + f, params["ln2_g"], params["ln2_b"])
    return x2, w


# -------------------------------------------------------------------------
# Main
# -------------------------------------------------------------------------
if __name__ == "__main__":
    d_model = 128
    num_heads = 8
    d_ff = 512
    batch = 4
    seq_len = 16

    key = jax.random.PRNGKey(0)
    kp, kx = jax.random.split(key)
    params = init_encoder_layer(kp, d_model, num_heads, d_ff)
    x = jax.random.normal(kx, (batch, seq_len, d_model), jnp.float32)

    # Key-padding mask (1 = attend, 0 = pad); pad two sequences to exercise masking.
    lengths = jnp.array([seq_len, 12, seq_len, 9], dtype=jnp.int32)
    key_mask = (jnp.arange(seq_len)[None, :] < lengths[:, None]).astype(jnp.float32)
    key_mask = key_mask[:, None, :]                      # (B, 1, L)

    fwd = jax.jit(partial(encoder_layer_forward, num_heads=num_heads))
    out, attn_w = fwd(params, x, key_mask)
    jax.block_until_ready((out, attn_w))

    assert out.shape == (batch, seq_len, d_model)
    assert attn_w.shape == (batch, num_heads, seq_len, seq_len)

    # Numerical parity with the plain-JAX mirror of the PyTorch module.
    ref_out, ref_w = reference_encoder_layer(params, x, key_mask, num_heads=num_heads)
    assert bool(jnp.allclose(out, ref_out, atol=5e-3, rtol=5e-3)), \
        float(jnp.max(jnp.abs(out - ref_out)))
    assert bool(jnp.allclose(attn_w, ref_w, atol=5e-3, rtol=5e-3))

    # TODO(synk): nn.Dropout layers are identity here (inference semantics);
    # no RNG-driven dropout masks are applied inside the kernel.
    print("KERNEL_OK")
</pallas_src>

<mosaic_0001>
module attributes {stable_mosaic.version = 11 : i64} {
  func.func @_encoder_layer_kernel(%arg0: i32, %arg1: memref<1x16x128xf32, #tpu.memory_space<vmem>>, %arg2: memref<1x1x16xf32, #tpu.memory_space<vmem>>, %arg3: memref<128x384xf32, #tpu.memory_space<vmem>>, %arg4: memref<1x384xf32, #tpu.memory_space<vmem>>, %arg5: memref<128x128xf32, #tpu.memory_space<vmem>>, %arg6: memref<1x128xf32, #tpu.memory_space<vmem>>, %arg7: memref<1x128xf32, #tpu.memory_space<vmem>>, %arg8: memref<1x128xf32, #tpu.memory_space<vmem>>, %arg9: memref<128x512xf32, #tpu.memory_space<vmem>>, %arg10: memref<1x512xf32, #tpu.memory_space<vmem>>, %arg11: memref<512x128xf32, #tpu.memory_space<vmem>>, %arg12: memref<1x128xf32, #tpu.memory_space<vmem>>, %arg13: memref<1x128xf32, #tpu.memory_space<vmem>>, %arg14: memref<1x128xf32, #tpu.memory_space<vmem>>, %arg15: memref<1x16x128xf32, #tpu.memory_space<vmem>>, %arg16: memref<1x8x16x16xf32, #tpu.memory_space<vmem>>) attributes {dimension_semantics = [#tpu.dimension_semantics<parallel>], iteration_bounds = array<i64: 4>, scalar_prefetch = 0 : i64, scratch_operands = 0 : i64, tpu.core_type = #tpu.core_type<tc>, window_params = [{transform_indices = @transform_0, window_bounds = array<i64: 1, 16, 128>}, {transform_indices = @transform_1, window_bounds = array<i64: 1, 1, 16>}, {pipeline_mode = #tpu.pipeline_mode<synchronous>, transform_indices = @transform_2, window_bounds = array<i64: 128, 384>}, {pipeline_mode = #tpu.pipeline_mode<synchronous>, transform_indices = @transform_3, window_bounds = array<i64: 1, 384>}, {pipeline_mode = #tpu.pipeline_mode<synchronous>, transform_indices = @transform_4, window_bounds = array<i64: 128, 128>}, {pipeline_mode = #tpu.pipeline_mode<synchronous>, transform_indices = @transform_5, window_bounds = array<i64: 1, 128>}, {pipeline_mode = #tpu.pipeline_mode<synchronous>, transform_indices = @transform_6, window_bounds = array<i64: 1, 128>}, {pipeline_mode = #tpu.pipeline_mode<synchronous>, transform_indices = @transform_7, window_bounds = array<i64: 1, 128>}, {pipeline_mode = #tpu.pipeline_mode<synchronous>, transform_indices = @transform_8, window_bounds = array<i64: 128, 512>}, {pipeline_mode = #tpu.pipeline_mode<synchronous>, transform_indices = @transform_9, window_bounds = array<i64: 1, 512>}, {pipeline_mode = #tpu.pipeline_mode<synchronous>, transform_indices = @transform_10, window_bounds = array<i64: 512, 128>}, {pipeline_mode = #tpu.pipeline_mode<synchronous>, transform_indices = @transform_11, window_bounds = array<i64: 1, 128>}, {pipeline_mode = #tpu.pipeline_mode<synchronous>, transform_indices = @transform_12, window_bounds = array<i64: 1, 128>}, {pipeline_mode = #tpu.pipeline_mode<synchronous>, transform_indices = @transform_13, window_bounds = array<i64: 1, 128>}, {transform_indices = @transform_14, window_bounds = array<i64: 1, 16, 128>}, {transform_indices = @transform_15, window_bounds = array<i64: 1, 8, 16, 16>}]} {
    %c0 = arith.constant 0 : index
    %c0_0 = arith.constant 0 : index
    %c0_1 = arith.constant 0 : index
    %0 = vector.load %arg1[%c0, %c0_0, %c0_1] : memref<1x16x128xf32, #tpu.memory_space<vmem>>, vector<1x16x128xf32>
    %1 = vector.shape_cast %0 : vector<1x16x128xf32> to vector<16x128xf32>
    %c0_2 = arith.constant 0 : index
    %c0_3 = arith.constant 0 : index
    %c0_4 = arith.constant 0 : index
    %2 = vector.load %arg2[%c0_2, %c0_3, %c0_4] : memref<1x1x16xf32, #tpu.memory_space<vmem>>, vector<1x1x16xf32>
    %3 = vector.shape_cast %2 : vector<1x1x16xf32> to vector<1x16xf32>
    %c0_5 = arith.constant 0 : index
    %c0_6 = arith.constant 0 : index
    %4 = vector.load %arg3[%c0_5, %c0_6] : memref<128x384xf32, #tpu.memory_space<vmem>>, vector<128x384xf32>
    %cst = arith.constant dense<0.000000e+00> : vector<16x384xf32>
    %5 = tpu.matmul %1, %4, %cst {dimension_numbers = #tpu.dot_dimension_numbers<[1], [0], [0], [1], [0, 0, 1, 1], [], []>} : vector<16x128xf32>, vector<128x384xf32>, vector<16x384xf32> -> vector<16x384xf32>
    %c0_7 = arith.constant 0 : index
    %c0_8 = arith.constant 0 : index
    %6 = vector.load %arg4[%c0_7, %c0_8] : memref<1x384xf32, #tpu.memory_space<vmem>>, vector<1x384xf32>
    %7 = vector.broadcast %6 : vector<1x384xf32> to vector<16x384xf32>
    %8 = arith.addf %5, %7 : vector<16x384xf32>
    %9 = vector.extract_strided_slice %8 {offsets = [0, 0], sizes = [16, 128], strides = [1, 1]} : vector<16x384xf32> to vector<16x128xf32>
    %10 = vector.extract_strided_slice %8 {offsets = [0, 128], sizes = [16, 128], strides = [1, 1]} : vector<16x384xf32> to vector<16x128xf32>
    %11 = vector.extract_strided_slice %8 {offsets = [0, 256], sizes = [16, 128], strides = [1, 1]} : vector<16x384xf32> to vector<16x128xf32>
    %12 = vector.extract_strided_slice %9 {offsets = [0, 0], sizes = [16, 16], strides = [1, 1]} : vector<16x128xf32> to vector<16x16xf32>
    %13 = vector.extract_strided_slice %10 {offsets = [0, 0], sizes = [16, 16], strides = [1, 1]} : vector<16x128xf32> to vector<16x16xf32>
    %14 = vector.extract_strided_slice %11 {offsets = [0, 0], sizes = [16, 16], strides = [1, 1]} : vector<16x128xf32> to vector<16x16xf32>
    "tpu.trace_start"() <{level = 10 : i32, message = "qd,kd->qk"}> : () -> ()
    %cst_9 = arith.constant dense<0.000000e+00> : vector<16x16xf32>
    %15 = tpu.matmul %12, %13, %cst_9 {dimension_numbers = #tpu.dot_dimension_numbers<[1], [1], [0], [0], [0, 0, 1, 0], [], []>} : vector<16x16xf32>, vector<16x16xf32>, vector<16x16xf32> -> vector<16x16xf32>
    "tpu.trace_stop"() : () -> ()
    %cst_10 = arith.constant 2.500000e-01 : f32
    %16 = vector.broadcast %cst_10 : f32 to vector<16x16xf32>
    %17 = arith.mulf %15, %16 : vector<16x16xf32>
    %cst_11 = arith.constant 0.000000e+00 : f32
    %18 = vector.broadcast %cst_11 : f32 to vector<1x16xf32>
    %19 = arith.cmpf oeq, %3, %18 : vector<1x16xf32>
    %cst_12 = arith.constant -1.000000e+09 : f32
    %20 = vector.shape_cast %19 : vector<1x16xi1> to vector<1x16xi1>
    %21 = vector.broadcast %20 : vector<1x16xi1> to vector<16x16xi1>
    %22 = vector.broadcast %cst_12 : f32 to vector<16x16xf32>
    %23 = arith.select %21, %22, %17 : vector<16x16xi1>, vector<16x16xf32>
    %cst_13 = arith.constant dense<0xFF800000> : vector<16xf32>
    %24 = vector.multi_reduction <maximumf>, %23, %cst_13 [1] : vector<16x16xf32> to vector<16xf32>
    %25 = vector.shape_cast %24 : vector<16xf32> to vector<16x1xf32>
    %26 = vector.broadcast %25 : vector<16x1xf32> to vector<16x16xf32>
    %27 = arith.subf %23, %26 : vector<16x16xf32>
    %28 = math.exp %27 : vector<16x16xf32>
    %cst_14 = arith.constant dense<0.000000e+00> : vector<16xf32>
    %29 = vector.multi_reduction <add>, %28, %cst_14 [1] : vector<16x16xf32> to vector<16xf32>
    %30 = vector.shape_cast %29 : vector<16xf32> to vector<16x1xf32>
    %31 = tpu.reciprocal %30 {approx = true} : vector<16x1xf32> -> vector<16x1xf32>
    %32 = vector.broadcast %31 : vector<16x1xf32> to vector<16x16xf32>
    %33 = arith.mulf %28, %32 : vector<16x16xf32>
    %c0_15 = arith.constant 0 : index
    %c0_16 = arith.constant 0 : index
    %c0_17 = arith.constant 0 : index
    %c0_18 = arith.constant 0 : index
    %34 = vector.load %arg16[%c0_15, %c0_16, %c0_17, %c0_18] : memref<1x8x16x16xf32, #tpu.memory_space<vmem>>, vector<1x1x16x16xf32>
    %35 = vector.shape_cast %34 : vector<1x1x16x16xf32> to vector<16x16xf32>
    %36 = vector.shape_cast %33 : vector<16x16xf32> to vector<1x1x16x16xf32>
    tpu.vector_store %arg16[%c0_15, %c0_16, %c0_17, %c0_18], %36 {strides = array<i32>} : memref<1x8x16x16xf32, #tpu.memory_space<vmem>>, vector<1x1x16x16xf32>,
    %cst_19 = arith.constant dense<0.000000e+00> : vector<16x16xf32>
    %37 = tpu.matmul %33, %14, %cst_19 {dimension_numbers = #tpu.dot_dimension_numbers<[1], [0], [0], [1], [0, 0, 1, 1], [], []>} : vector<16x16xf32>, vector<16x16xf32>, vector<16x16xf32> -> vector<16x16xf32>
    %38 = vector.extract_strided_slice %9 {offsets = [0, 16], sizes = [16, 16], strides = [1, 1]} : vector<16x128xf32> to vector<16x16xf32>
    %39 = vector.extract_strided_slice %10 {offsets = [0, 16], sizes = [16, 16], strides = [1, 1]} : vector<16x128xf32> to vector<16x16xf32>
    %40 = vector.extract_strided_slice %11 {offsets = [0, 16], sizes = [16, 16], strides = [1, 1]} : vector<16x128xf32> to vector<16x16xf32>
    "tpu.trace_start"() <{level = 10 : i32, message = "qd,kd->qk"}> : () -> ()
    %cst_20 = arith.constant dense<0.000000e+00> : vector<16x16xf32>
    %41 = tpu.matmul %38, %39, %cst_20 {dimension_numbers = #tpu.dot_dimension_numbers<[1], [1], [0], [0], [0, 0, 1, 0], [], []>} : vector<16x16xf32>, vector<16x16xf32>, vector<16x16xf32> -> vector<16x16xf32>
    "tpu.trace_stop"() : () -> ()
    %cst_21 = arith.constant 2.500000e-01 : f32
    %42 = vector.broadcast %cst_21 : f32 to vector<16x16xf32>
    %43 = arith.mulf %41, %42 : vector<16x16xf32>
    %cst_22 = arith.constant 0.000000e+00 : f32
    %44 = vector.broadcast %cst_22 : f32 to vector<1x16xf32>
    %45 = arith.cmpf oeq, %3, %44 : vector<1x16xf32>
    %cst_23 = arith.constant -1.000000e+09 : f32
    %46 = vector.shape_cast %45 : vector<1x16xi1> to vector<1x16xi1>
    %47 = vector.broadcast %46 : vector<1x16xi1> to vector<16x16xi1>
    %48 = vector.broadcast %cst_23 : f32 to vector<16x16xf32>
    %49 = arith.select %47, %48, %43 : vector<16x16xi1>, vector<16x16xf32>
    %cst_24 = arith.constant dense<0xFF800000> : vector<16xf32>
    %50 = vector.multi_reduction <maximumf>, %49, %cst_24 [1] : vector<16x16xf32> to vector<16xf32>
    %51 = vector.shape_cast %50 : vector<16xf32> to vector<16x1xf32>
    %52 = vector.broadcast %51 : vector<16x1xf32> to vector<16x16xf32>
    %53 = arith.subf %49, %52 : vector<16x16xf32>
    %54 = math.exp %53 : vector<16x16xf32>
    %cst_25 = arith.constant dense<0.000000e+00> : vector<16xf32>
    %55 = vector.multi_reduction <add>, %54, %cst_25 [1] : vector<16x16xf32> to vector<16xf32>
    %56 = vector.shape_cast %55 : vector<16xf32> to vector<16x1xf32>
    %57 = tpu.reciprocal %56 {approx = true} : vector<16x1xf32> -> vector<16x1xf32>
    %58 = vector.broadcast %57 : vector<16x1xf32> to vector<16x16xf32>
    %59 = arith.mulf %54, %58 : vector<16x16xf32>
    %c0_26 = arith.constant 0 : index
    %c1 = arith.constant 1 : index
    %c0_27 = arith.constant 0 : index
    %c0_28 = arith.constant 0 : index
    %60 = vector.load %arg16[%c0_26, %c1, %c0_27, %c0_28] : memref<1x8x16x16xf32, #tpu.memory_space<vmem>>, vector<1x1x16x16xf32>
    %61 = vector.shape_cast %60 : vector<1x1x16x16xf32> to vector<16x16xf32>
    %62 = vector.shape_cast %59 : vector<16x16xf32> to vector<1x1x16x16xf32>
    tpu.vector_store %arg16[%c0_26, %c1, %c0_27, %c0_28], %62 {strides = array<i32>} : memref<1x8x16x16xf32, #tpu.memory_space<vmem>>, vector<1x1x16x16xf32>,
    %cst_29 = arith.constant dense<0.000000e+00> : vector<16x16xf32>
    %63 = tpu.matmul %59, %40, %cst_29 {dimension_numbers = #tpu.dot_dimension_numbers<[1], [0], [0], [1], [0, 0, 1, 1], [], []>} : vector<16x16xf32>, vector<16x16xf32>, vector<16x16xf32> -> vector<16x16xf32>
    %64 = vector.extract_strided_slice %9 {offsets = [0, 32], sizes = [16, 16], strides = [1, 1]} : vector<16x128xf32> to vector<16x16xf32>
    %65 = vector.extract_strided_slice %10 {offsets = [0, 32], sizes = [16, 16], strides = [1, 1]} : vector<16x128xf32> to vector<16x16xf32>
    %66 = vector.extract_strided_slice %11 {offsets = [0, 32], sizes = [16, 16], strides = [1, 1]} : vector<16x128xf32> to vector<16x16xf32>
    "tpu.trace_start"() <{level = 10 : i32, message = "qd,kd->qk"}> : () -> ()
    %cst_30 = arith.constant dense<0.000000e+00> : vector<16x16xf32>
    %67 = tpu.matmul %64, %65, %cst_30 {dimension_numbers = #tpu.dot_dimension_numbers<[1], [1], [0], [0], [0, 0, 1, 0], [], []>} : vector<16x16xf32>, vector<16x16xf32>, vector<16x16xf32> -> vector<16x16xf32>
    "tpu.trace_stop"() : () -> ()
    %cst_31 = arith.constant 2.500000e-01 : f32
    %68 = vector.broadcast %cst_31 : f32 to vector<16x16xf32>
    %69 = arith.mulf %67, %68 : vector<16x16xf32>
    %cst_32 = arith.constant 0.000000e+00 : f32
    %70 = vector.broadcast %cst_32 : f32 to vector<1x16xf32>
    %71 = arith.cmpf oeq, %3, %70 : vector<1x16xf32>
    %cst_33 = arith.constant -1.000000e+09 : f32
    %72 = vector.shape_cast %71 : vector<1x16xi1> to vector<1x16xi1>
    %73 = vector.broadcast %72 : vector<1x16xi1> to vector<16x16xi1>
    %74 = vector.broadcast %cst_33 : f32 to vector<16x16xf32>
    %75 = arith.select %73, %74, %69 : vector<16x16xi1>, vector<16x16xf32>
    %cst_34 = arith.constant dense<0xFF800000> : vector<16xf32>
    %76 = vector.multi_reduction <maximumf>, %75, %cst_34 [1] : vector<16x16xf32> to vector<16xf32>
    %77 = vector.shape_cast %76 : vector<16xf32> to vector<16x1xf32>
    %78 = vector.broadcast %77 : vector<16x1xf32> to vector<16x16xf32>
    %79 = arith.subf %75, %78 : vector<16x16xf32>
    %80 = math.exp %79 : vector<16x16xf32>
    %cst_35 = arith.constant dense<0.000000e+00> : vector<16xf32>
    %81 = vector.multi_reduction <add>, %80, %cst_35 [1] : vector<16x16xf32> to vector<16xf32>
    %82 = vector.shape_cast %81 : vector<16xf32> to vector<16x1xf32>
    %83 = tpu.reciprocal %82 {approx = true} : vector<16x1xf32> -> vector<16x1xf32>
    %84 = vector.broadcast %83 : vector<16x1xf32> to vector<16x16xf32>
    %85 = arith.mulf %80, %84 : vector<16x16xf32>
    %c0_36 = arith.constant 0 : index
    %c2 = arith.constant 2 : index
    %c0_37 = arith.constant 0 : index
    %c0_38 = arith.constant 0 : index
    %86 = vector.load %arg16[%c0_36, %c2, %c0_37, %c0_38] : memref<1x8x16x16xf32, #tpu.memory_space<vmem>>, vector<1x1x16x16xf32>
    %87 = vector.shape_cast %86 : vector<1x1x16x16xf32> to vector<16x16xf32>
    %88 = vector.shape_cast %85 : vector<16x16xf32> to vector<1x1x16x16xf32>
    tpu.vector_store %arg16[%c0_36, %c2, %c0_37, %c0_38], %88 {strides = array<i32>} : memref<1x8x16x16xf32, #tpu.memory_space<vmem>>, vector<1x1x16x16xf32>,
    %cst_39 = arith.constant dense<0.000000e+00> : vector<16x16xf32>
    %89 = tpu.matmul %85, %66, %cst_39 {dimension_numbers = #tpu.dot_dimension_numbers<[1], [0], [0], [1], [0, 0, 1, 1], [], []>} : vector<16x16xf32>, vector<16x16xf32>, vector<16x16xf32> -> vector<16x16xf32>
    %90 = vector.extract_strided_slice %9 {offsets = [0, 48], sizes = [16, 16], strides = [1, 1]} : vector<16x128xf32> to vector<16x16xf32>
    %91 = vector.extract_strided_slice %10 {offsets = [0, 48], sizes = [16, 16], strides = [1, 1]} : vector<16x128xf32> to vector<16x16xf32>
    %92 = vector.extract_strided_slice %11 {offsets = [0, 48], sizes = [16, 16], strides = [1, 1]} : vector<16x128xf32> to vector<16x16xf32>
    "tpu.trace_start"() <{level = 10 : i32, message = "qd,kd->qk"}> : () -> ()
    %cst_40 = arith.constant dense<0.000000e+00> : vector<16x16xf32>
    %93 = tpu.matmul %90, %91, %cst_40 {dimension_numbers = #tpu.dot_dimension_numbers<[1], [1], [0], [0], [0, 0, 1, 0], [], []>} : vector<16x16xf32>, vector<16x16xf32>, vector<16x16xf32> -> vector<16x16xf32>
    "tpu.trace_stop"() : () -> ()
    %cst_41 = arith.constant 2.500000e-01 : f32
    %94 = vector.broadcast %cst_41 : f32 to vector<16x16xf32>
    %95 = arith.mulf %93, %94 : vector<16x16xf32>
    %cst_42 = arith.constant 0.000000e+00 : f32
    %96 = vector.broadcast %cst_42 : f32 to vector<1x16xf32>
    %97 = arith.cmpf oeq, %3, %96 : vector<1x16xf32>
    %cst_43 = arith.constant -1.000000e+09 : f32
    %98 = vector.shape_cast %97 : vector<1x16xi1> to vector<1x16xi1>
    %99 = vector.broadcast %98 : vector<1x16xi1> to vector<16x16xi1>
    %100 = vector.broadcast %cst_43 : f32 to vector<16x16xf32>
    %101 = arith.select %99, %100, %95 : vector<16x16xi1>, vector<16x16xf32>
    %cst_44 = arith.constant dense<0xFF800000> : vector<16xf32>
    %102 = vector.multi_reduction <maximumf>, %101, %cst_44 [1] : vector<16x16xf32> to vector<16xf32>
    %103 = vector.shape_cast %102 : vector<16xf32> to vector<16x1xf32>
    %104 = vector.broadcast %103 : vector<16x1xf32> to vector<16x16xf32>
    %105 = arith.subf %101, %104 : vector<16x16xf32>
    %106 = math.exp %105 : vector<16x16xf32>
    %cst_45 = arith.constant dense<0.000000e+00> : vector<16xf32>
    %107 = vector.multi_reduction <add>, %106, %cst_45 [1] : vector<16x16xf32> to vector<16xf32>
    %108 = vector.shape_cast %107 : vector<16xf32> to vector<16x1xf32>
    %109 = tpu.reciprocal %108 {approx = true} : vector<16x1xf32> -> vector<16x1xf32>
    %110 = vector.broadcast %109 : vector<16x1xf32> to vector<16x16xf32>
    %111 = arith.mulf %106, %110 : vector<16x16xf32>
    %c0_46 = arith.constant 0 : index
    %c3 = arith.constant 3 : index
    %c0_47 = arith.constant 0 : index
    %c0_48 = arith.constant 0 : index
    %112 = vector.load %arg16[%c0_46, %c3, %c0_47, %c0_48] : memref<1x8x16x16xf32, #tpu.memory_space<vmem>>, vector<1x1x16x16xf32>
    %113 = vector.shape_cast %112 : vector<1x1x16x16xf32> to vector<16x16xf32>
    %114 = vector.shape_cast %111 : vector<16x16xf32> to vector<1x1x16x16xf32>
    tpu.vector_store %arg16[%c0_46, %c3, %c0_47, %c0_48], %114 {strides = array<i32>} : memref<1x8x16x16xf32, #tpu.memory_space<vmem>>, vector<1x1x16x16xf32>,
    %cst_49 = arith.constant dense<0.000000e+00> : vector<16x16xf32>
    %115 = tpu.matmul %111, %92, %cst_49 {dimension_numbers = #tpu.dot_dimension_numbers<[1], [0], [0], [1], [0, 0, 1, 1], [], []>} : vector<16x16xf32>, vector<16x16xf32>, vector<16x16xf32> -> vector<16x16xf32>
    %116 = vector.extract_strided_slice %9 {offsets = [0, 64], sizes = [16, 16], strides = [1, 1]} : vector<16x128xf32> to vector<16x16xf32>
    %117 = vector.extract_strided_slice %10 {offsets = [0, 64], sizes = [16, 16], strides = [1, 1]} : vector<16x128xf32> to vector<16x16xf32>
    %118 = vector.extract_strided_slice %11 {offsets = [0, 64], sizes = [16, 16], strides = [1, 1]} : vector<16x128xf32> to vector<16x16xf32>
    "tpu.trace_start"() <{level = 10 : i32, message = "qd,kd->qk"}> : () -> ()
    %cst_50 = arith.constant dense<0.000000e+00> : vector<16x16xf32>
    %119 = tpu.matmul %116, %117, %cst_50 {dimension_numbers = #tpu.dot_dimension_numbers<[1], [1], [0], [0], [0, 0, 1, 0], [], []>} : vector<16x16xf32>, vector<16x16xf32>, vector<16x16xf32> -> vector<16x16xf32>
    "tpu.trace_stop"() : () -> ()
    %cst_51 = arith.constant 2.500000e-01 : f32
    %120 = vector.broadcast %cst_51 : f32 to vector<16x16xf32>
    %121 = arith.mulf %119, %120 : vector<16x16xf32>
    %cst_52 = arith.constant 0.000000e+00 : f32
    %122 = vector.broadcast %cst_52 : f32 to vector<1x16xf32>
    %123 = arith.cmpf oeq, %3, %122 : vector<1x16xf32>
    %cst_53 = arith.constant -1.000000e+09 : f32
    %124 = vector.shape_cast %123 : vector<1x16xi1> to vector<1x16xi1>
    %125 = vector.broadcast %124 : vector<1x16xi1> to vector<16x16xi1>
    %126 = vector.broadcast %cst_53 : f32 to vector<16x16xf32>
    %127 = arith.select %125, %126, %121 : vector<16x16xi1>, vector<16x16xf32>
    %cst_54 = arith.constant dense<0xFF800000> : vector<16xf32>
    %128 = vector.multi_reduction <maximumf>, %127, %cst_54 [1] : vector<16x16xf32> to vector<16xf32>
    %129 = vector.shape_cast %128 : vector<16xf32> to vector<16x1xf32>
    %130 = vector.broadcast %129 : vector<16x1xf32> to vector<16x16xf32>
    %131 = arith.subf %127, %130 : vector<16x16xf32>
    %132 = math.exp %131 : vector<16x16xf32>
    %cst_55 = arith.constant dense<0.000000e+00> : vector<16xf32>
    %133 = vector.multi_reduction <add>, %132, %cst_55 [1] : vector<16x16xf32> to vector<16xf32>
    %134 = vector.shape_cast %133 : vector<16xf32> to vector<16x1xf32>
    %135 = tpu.reciprocal %134 {approx = true} : vector<16x1xf32> -> vector<16x1xf32>
    %136 = vector.broadcast %135 : vector<16x1xf32> to vector<16x16xf32>
    %137 = arith.mulf %132, %136 : vector<16x16xf32>
    %c0_56 = arith.constant 0 : index
    %c4 = arith.constant 4 : index
    %c0_57 = arith.constant 0 : index
    %c0_58 = arith.constant 0 : index
    %138 = vector.load %arg16[%c0_56, %c4, %c0_57, %c0_58] : memref<1x8x16x16xf32, #tpu.memory_space<vmem>>, vector<1x1x16x16xf32>
    %139 = vector.shape_cast %138 : vector<1x1x16x16xf32> to vector<16x16xf32>
    %140 = vector.shape_cast %137 : vector<16x16xf32> to vector<1x1x16x16xf32>
    tpu.vector_store %arg16[%c0_56, %c4, %c0_57, %c0_58], %140 {strides = array<i32>} : memref<1x8x16x16xf32, #tpu.memory_space<vmem>>, vector<1x1x16x16xf32>,
    %cst_59 = arith.constant dense<0.000000e+00> : vector<16x16xf32>
    %141 = tpu.matmul %137, %118, %cst_59 {dimension_numbers = #tpu.dot_dimension_numbers<[1], [0], [0], [1], [0, 0, 1, 1], [], []>} : vector<16x16xf32>, vector<16x16xf32>, vector<16x16xf32> -> vector<16x16xf32>
    %142 = vector.extract_strided_slice %9 {offsets = [0, 80], sizes = [16, 16], strides = [1, 1]} : vector<16x128xf32> to vector<16x16xf32>
    %143 = vector.extract_strided_slice %10 {offsets = [0, 80], sizes = [16, 16], strides = [1, 1]} : vector<16x128xf32> to vector<16x16xf32>
    %144 = vector.extract_strided_slice %11 {offsets = [0, 80], sizes = [16, 16], strides = [1, 1]} : vector<16x128xf32> to vector<16x16xf32>
    "tpu.trace_start"() <{level = 10 : i32, message = "qd,kd->qk"}> : () -> ()
    %cst_60 = arith.constant dense<0.000000e+00> : vector<16x16xf32>
    %145 = tpu.matmul %142, %143, %cst_60 {dimension_numbers = #tpu.dot_dimension_numbers<[1], [1], [0], [0], [0, 0, 1, 0], [], []>} : vector<16x16xf32>, vector<16x16xf32>, vector<16x16xf32> -> vector<16x16xf32>
    "tpu.trace_stop"() : () -> ()
    %cst_61 = arith.constant 2.500000e-01 : f32
    %146 = vector.broadcast %cst_61 : f32 to vector<16x16xf32>
    %147 = arith.mulf %145, %146 : vector<16x16xf32>
    %cst_62 = arith.constant 0.000000e+00 : f32
    %148 = vector.broadcast %cst_62 : f32 to vector<1x16xf32>
    %149 = arith.cmpf oeq, %3, %148 : vector<1x16xf32>
    %cst_63 = arith.constant -1.000000e+09 : f32
    %150 = vector.shape_cast %149 : vector<1x16xi1> to vector<1x16xi1>
    %151 = vector.broadcast %150 : vector<1x16xi1> to vector<16x16xi1>
    %152 = vector.broadcast %cst_63 : f32 to vector<16x16xf32>
    %153 = arith.select %151, %152, %147 : vector<16x16xi1>, vector<16x16xf32>
    %cst_64 = arith.constant dense<0xFF800000> : vector<16xf32>
    %154 = vector.multi_reduction <maximumf>, %153, %cst_64 [1] : vector<16x16xf32> to vector<16xf32>
    %155 = vector.shape_cast %154 : vector<16xf32> to vector<16x1xf32>
    %156 = vector.broadcast %155 : vector<16x1xf32> to vector<16x16xf32>
    %157 = arith.subf %153, %156 : vector<16x16xf32>
    %158 = math.exp %157 : vector<16x16xf32>
    %cst_65 = arith.constant dense<0.000000e+00> : vector<16xf32>
    %159 = vector.multi_reduction <add>, %158, %cst_65 [1] : vector<16x16xf32> to vector<16xf32>
    %160 = vector.shape_cast %159 : vector<16xf32> to vector<16x1xf32>
    %161 = tpu.reciprocal %160 {approx = true} : vector<16x1xf32> -> vector<16x1xf32>
    %162 = vector.broadcast %161 : vector<16x1xf32> to vector<16x16xf32>
    %163 = arith.mulf %158, %162 : vector<16x16xf32>
    %c0_66 = arith.constant 0 : index
    %c5 = arith.constant 5 : index
    %c0_67 = arith.constant 0 : index
    %c0_68 = arith.constant 0 : index
    %164 = vector.load %arg16[%c0_66, %c5, %c0_67, %c0_68] : memref<1x8x16x16xf32, #tpu.memory_space<vmem>>, vector<1x1x16x16xf32>
    %165 = vector.shape_cast %164 : vector<1x1x16x16xf32> to vector<16x16xf32>
    %166 = vector.shape_cast %163 : vector<16x16xf32> to vector<1x1x16x16xf32>
    tpu.vector_store %arg16[%c0_66, %c5, %c0_67, %c0_68], %166 {strides = array<i32>} : memref<1x8x16x16xf32, #tpu.memory_space<vmem>>, vector<1x1x16x16xf32>,
    %cst_69 = arith.constant dense<0.000000e+00> : vector<16x16xf32>
    %167 = tpu.matmul %163, %144, %cst_69 {dimension_numbers = #tpu.dot_dimension_numbers<[1], [0], [0], [1], [0, 0, 1, 1], [], []>} : vector<16x16xf32>, vector<16x16xf32>, vector<16x16xf32> -> vector<16x16xf32>
    %168 = vector.extract_strided_slice %9 {offsets = [0, 96], sizes = [16, 16], strides = [1, 1]} : vector<16x128xf32> to vector<16x16xf32>
    %169 = vector.extract_strided_slice %10 {offsets = [0, 96], sizes = [16, 16], strides = [1, 1]} : vector<16x128xf32> to vector<16x16xf32>
    %170 = vector.extract_strided_slice %11 {offsets = [0, 96], sizes = [16, 16], strides = [1, 1]} : vector<16x128xf32> to vector<16x16xf32>
    "tpu.trace_start"() <{level = 10 : i32, message = "qd,kd->qk"}> : () -> ()
    %cst_70 = arith.constant dense<0.000000e+00> : vector<16x16xf32>
    %171 = tpu.matmul %168, %169, %cst_70 {dimension_numbers = #tpu.dot_dimension_numbers<[1], [1], [0], [0], [0, 0, 1, 0], [], []>} : vector<16x16xf32>, vector<16x16xf32>, vector<16x16xf32> -> vector<16x16xf32>
    "tpu.trace_stop"() : () -> ()
    %cst_71 = arith.constant 2.500000e-01 : f32
    %172 = vector.broadcast %cst_71 : f32 to vector<16x16xf32>
    %173 = arith.mulf %171, %172 : vector<16x16xf32>
    %cst_72 = arith.constant 0.000000e+00 : f32
    %174 = vector.broadcast %cst_72 : f32 to vector<1x16xf32>
    %175 = arith.cmpf oeq, %3, %174 : vector<1x16xf32>
    %cst_73 = arith.constant -1.000000e+09 : f32
    %176 = vector.shape_cast %175 : vector<1x16xi1> to vector<1x16xi1>
    %177 = vector.broadcast %176 : vector<1x16xi1> to vector<16x16xi1>
    %178 = vector.broadcast %cst_73 : f32 to vector<16x16xf32>
    %179 = arith.select %177, %178, %173 : vector<16x16xi1>, vector<16x16xf32>
    %cst_74 = arith.constant dense<0xFF800000> : vector<16xf32>
    %180 = vector.multi_reduction <maximumf>, %179, %cst_74 [1] : vector<16x16xf32> to vector<16xf32>
    %181 = vector.shape_cast %180 : vector<16xf32> to vector<16x1xf32>
    %182 = vector.broadcast %181 : vector<16x1xf32> to vector<16x16xf32>
    %183 = arith.subf %179, %182 : vector<16x16xf32>
    %184 = math.exp %183 : vector<16x16xf32>
    %cst_75 = arith.constant dense<0.000000e+00> : vector<16xf32>
    %185 = vector.multi_reduction <add>, %184, %cst_75 [1] : vector<16x16xf32> to vector<16xf32>
    %186 = vector.shape_cast %185 : vector<16xf32> to vector<16x1xf32>
    %187 = tpu.reciprocal %186 {approx = true} : vector<16x1xf32> -> vector<16x1xf32>
    %188 = vector.broadcast %187 : vector<16x1xf32> to vector<16x16xf32>
    %189 = arith.mulf %184, %188 : vector<16x16xf32>
    %c0_76 = arith.constant 0 : index
    %c6 = arith.constant 6 : index
    %c0_77 = arith.constant 0 : index
    %c0_78 = arith.constant 0 : index
    %190 = vector.load %arg16[%c0_76, %c6, %c0_77, %c0_78] : memref<1x8x16x16xf32, #tpu.memory_space<vmem>>, vector<1x1x16x16xf32>
    %191 = vector.shape_cast %190 : vector<1x1x16x16xf32> to vector<16x16xf32>
    %192 = vector.shape_cast %189 : vector<16x16xf32> to vector<1x1x16x16xf32>
    tpu.vector_store %arg16[%c0_76, %c6, %c0_77, %c0_78], %192 {strides = array<i32>} : memref<1x8x16x16xf32, #tpu.memory_space<vmem>>, vector<1x1x16x16xf32>,
    %cst_79 = arith.constant dense<0.000000e+00> : vector<16x16xf32>
    %193 = tpu.matmul %189, %170, %cst_79 {dimension_numbers = #tpu.dot_dimension_numbers<[1], [0], [0], [1], [0, 0, 1, 1], [], []>} : vector<16x16xf32>, vector<16x16xf32>, vector<16x16xf32> -> vector<16x16xf32>
    %194 = vector.extract_strided_slice %9 {offsets = [0, 112], sizes = [16, 16], strides = [1, 1]} : vector<16x128xf32> to vector<16x16xf32>
    %195 = vector.extract_strided_slice %10 {offsets = [0, 112], sizes = [16, 16], strides = [1, 1]} : vector<16x128xf32> to vector<16x16xf32>
    %196 = vector.extract_strided_slice %11 {offsets = [0, 112], sizes = [16, 16], strides = [1, 1]} : vector<16x128xf32> to vector<16x16xf32>
    "tpu.trace_start"() <{level = 10 : i32, message = "qd,kd->qk"}> : () -> ()
    %cst_80 = arith.constant dense<0.000000e+00> : vector<16x16xf32>
    %197 = tpu.matmul %194, %195, %cst_80 {dimension_numbers = #tpu.dot_dimension_numbers<[1], [1], [0], [0], [0, 0, 1, 0], [], []>} : vector<16x16xf32>, vector<16x16xf32>, vector<16x16xf32> -> vector<16x16xf32>
    "tpu.trace_stop"() : () -> ()
    %cst_81 = arith.constant 2.500000e-01 : f32
    %198 = vector.broadcast %cst_81 : f32 to vector<16x16xf32>
    %199 = arith.mulf %197, %198 : vector<16x16xf32>
    %cst_82 = arith.constant 0.000000e+00 : f32
    %200 = vector.broadcast %cst_82 : f32 to vector<1x16xf32>
    %201 = arith.cmpf oeq, %3, %200 : vector<1x16xf32>
    %cst_83 = arith.constant -1.000000e+09 : f32
    %202 = vector.shape_cast %201 : vector<1x16xi1> to vector<1x16xi1>
    %203 = vector.broadcast %202 : vector<1x16xi1> to vector<16x16xi1>
    %204 = vector.broadcast %cst_83 : f32 to vector<16x16xf32>
    %205 = arith.select %203, %204, %199 : vector<16x16xi1>, vector<16x16xf32>
    %cst_84 = arith.constant dense<0xFF800000> : vector<16xf32>
    %206 = vector.multi_reduction <maximumf>, %205, %cst_84 [1] : vector<16x16xf32> to vector<16xf32>
    %207 = vector.shape_cast %206 : vector<16xf32> to vector<16x1xf32>
    %208 = vector.broadcast %207 : vector<16x1xf32> to vector<16x16xf32>
    %209 = arith.subf %205, %208 : vector<16x16xf32>
    %210 = math.exp %209 : vector<16x16xf32>
    %cst_85 = arith.constant dense<0.000000e+00> : vector<16xf32>
    %211 = vector.multi_reduction <add>, %210, %cst_85 [1] : vector<16x16xf32> to vector<16xf32>
    %212 = vector.shape_cast %211 : vector<16xf32> to vector<16x1xf32>
    %213 = tpu.reciprocal %212 {approx = true} : vector<16x1xf32> -> vector<16x1xf32>
    %214 = vector.broadcast %213 : vector<16x1xf32> to vector<16x16xf32>
    %215 = arith.mulf %210, %214 : vector<16x16xf32>
    %c0_86 = arith.constant 0 : index
    %c7 = arith.constant 7 : index
    %c0_87 = arith.constant 0 : index
    %c0_88 = arith.constant 0 : index
    %216 = vector.load %arg16[%c0_86, %c7, %c0_87, %c0_88] : memref<1x8x16x16xf32, #tpu.memory_space<vmem>>, vector<1x1x16x16xf32>
    %217 = vector.shape_cast %216 : vector<1x1x16x16xf32> to vector<16x16xf32>
    %218 = vector.shape_cast %215 : vector<16x16xf32> to vector<1x1x16x16xf32>
    tpu.vector_store %arg16[%c0_86, %c7, %c0_87, %c0_88], %218 {strides = array<i32>} : memref<1x8x16x16xf32, #tpu.memory_space<vmem>>, vector<1x1x16x16xf32>,
    %cst_89 = arith.constant dense<0.000000e+00> : vector<16x16xf32>
    %219 = tpu.matmul %215, %196, %cst_89 {dimension_numbers = #tpu.dot_dimension_numbers<[1], [0], [0], [1], [0, 0, 1, 1], [], []>} : vector<16x16xf32>, vector<16x16xf32>, vector<16x16xf32> -> vector<16x16xf32>
    %220 = tpu.concatenate %37, %63, %89, %115, %141, %167, %193, %219 in 1 : vector<16x16xf32>, vector<16x16xf32>, vector<16x16xf32>, vector<16x16xf32>, vector<16x16xf32>, vector<16x16xf32>, vector<16x16xf32>, vector<16x16xf32> -> vector<16x128xf32>
    %c0_90 = arith.constant 0 : index
    %c0_91 = arith.constant 0 : index
    %221 = vector.load %arg5[%c0_90, %c0_91] : memref<128x128xf32, #tpu.memory_space<vmem>>, vector<128x128xf32>
    %cst_92 = arith.constant dense<0.000000e+00> : vector<16x128xf32>
    %222 = tpu.matmul %220, %221, %cst_92 {dimension_numbers = #tpu.dot_dimension_numbers<[1], [0], [0], [1], [0, 0, 1, 1], [], []>} : vector<16x128xf32>, vector<128x128xf32>, vector<16x128xf32> -> vector<16x128xf32>
    %c0_93 = arith.constant 0 : index
    %c0_94 = arith.constant 0 : index
    %223 = vector.load %arg6[%c0_93, %c0_94] : memref<1x128xf32, #tpu.memory_space<vmem>>, vector<1x128xf32>
    %224 = vector.broadcast %223 : vector<1x128xf32> to vector<16x128xf32>
    %225 = arith.addf %222, %224 : vector<16x128xf32>
    %226 = arith.addf %1, %225 : vector<16x128xf32>
    %cst_95 = arith.constant dense<0.000000e+00> : vector<16xf32>
    %227 = vector.multi_reduction <add>, %226, %cst_95 [1] : vector<16x128xf32> to vector<16xf32>
    %228 = vector.shape_cast %227 : vector<16xf32> to vector<16x1xf32>
    %cst_96 = arith.constant 1.280000e+02 : f32
    %229 = vector.broadcast %cst_96 : f32 to vector<16x1xf32>
    %230 = arith.divf %228, %229 : vector<16x1xf32>
    %231 = vector.broadcast %230 : vector<16x1xf32> to vector<16x128xf32>
    %232 = arith.subf %226, %231 : vector<16x128xf32>
    %233 = arith.mulf %232, %232 : vector<16x128xf32>
    %cst_97 = arith.constant dense<0.000000e+00> : vector<16xf32>
    %234 = vector.multi_reduction <add>, %233, %cst_97 [1] : vector<16x128xf32> to vector<16xf32>
    %235 = vector.shape_cast %234 : vector<16xf32> to vector<16x1xf32>
    %cst_98 = arith.constant 1.280000e+02 : f32
    %236 = vector.broadcast %cst_98 : f32 to vector<16x1xf32>
    %237 = arith.divf %235, %236 : vector<16x1xf32>
    %238 = vector.broadcast %230 : vector<16x1xf32> to vector<16x128xf32>
    %239 = arith.subf %226, %238 : vector<16x128xf32>
    %cst_99 = arith.constant 9.99999974E-6 : f32
    %240 = vector.broadcast %cst_99 : f32 to vector<16x1xf32>
    %241 = arith.addf %237, %240 : vector<16x1xf32>
    %242 = math.rsqrt %241 : vector<16x1xf32>
    %243 = vector.broadcast %242 : vector<16x1xf32> to vector<16x128xf32>
    %244 = arith.mulf %239, %243 : vector<16x128xf32>
    %c0_100 = arith.constant 0 : index
    %c0_101 = arith.constant 0 : index
    %245 = vector.load %arg7[%c0_100, %c0_101] : memref<1x128xf32, #tpu.memory_space<vmem>>, vector<1x128xf32>
    %246 = vector.broadcast %245 : vector<1x128xf32> to vector<16x128xf32>
    %247 = arith.mulf %244, %246 : vector<16x128xf32>
    %c0_102 = arith.constant 0 : index
    %c0_103 = arith.constant 0 : index
    %248 = vector.load %arg8[%c0_102, %c0_103] : memref<1x128xf32, #tpu.memory_space<vmem>>, vector<1x128xf32>
    %249 = vector.broadcast %248 : vector<1x128xf32> to vector<16x128xf32>
    %250 = arith.addf %247, %249 : vector<16x128xf32>
    %c0_104 = arith.constant 0 : index
    %c0_105 = arith.constant 0 : index
    %251 = vector.load %arg9[%c0_104, %c0_105] : memref<128x512xf32, #tpu.memory_space<vmem>>, vector<128x512xf32>
    %cst_106 = arith.constant dense<0.000000e+00> : vector<16x512xf32>
    %252 = tpu.matmul %250, %251, %cst_106 {dimension_numbers = #tpu.dot_dimension_numbers<[1], [0], [0], [1], [0, 0, 1, 1], [], []>} : vector<16x128xf32>, vector<128x512xf32>, vector<16x512xf32> -> vector<16x512xf32>
    %c0_107 = arith.constant 0 : index
    %c0_108 = arith.constant 0 : index
    %253 = vector.load %arg10[%c0_107, %c0_108] : memref<1x512xf32, #tpu.memory_space<vmem>>, vector<1x512xf32>
    %254 = vector.broadcast %253 : vector<1x512xf32> to vector<16x512xf32>
    %255 = arith.addf %252, %254 : vector<16x512xf32>
    %cst_109 = arith.constant 0.000000e+00 : f32
    %256 = vector.broadcast %cst_109 : f32 to vector<16x512xf32>
    %257 = arith.maximumf %255, %256 : vector<16x512xf32>
    %c0_110 = arith.constant 0 : index
    %c0_111 = arith.constant 0 : index
    %258 = vector.load %arg11[%c0_110, %c0_111] : memref<512x128xf32, #tpu.memory_space<vmem>>, vector<512x128xf32>
    %cst_112 = arith.constant dense<0.000000e+00> : vector<16x128xf32>
    %259 = tpu.matmul %257, %258, %cst_112 {dimension_numbers = #tpu.dot_dimension_numbers<[1], [0], [0], [1], [0, 0, 1, 1], [], []>} : vector<16x512xf32>, vector<512x128xf32>, vector<16x128xf32> -> vector<16x128xf32>
    %c0_113 = arith.constant 0 : index
    %c0_114 = arith.constant 0 : index
    %260 = vector.load %arg12[%c0_113, %c0_114] : memref<1x128xf32, #tpu.memory_space<vmem>>, vector<1x128xf32>
    %261 = vector.broadcast %260 : vector<1x128xf32> to vector<16x128xf32>
    %262 = arith.addf %259, %261 : vector<16x128xf32>
    %263 = arith.addf %250, %262 : vector<16x128xf32>
    %cst_115 = arith.constant dense<0.000000e+00> : vector<16xf32>
    %264 = vector.multi_reduction <add>, %263, %cst_115 [1] : vector<16x128xf32> to vector<16xf32>
    %265 = vector.shape_cast %264 : vector<16xf32> to vector<16x1xf32>
    %cst_116 = arith.constant 1.280000e+02 : f32
    %266 = vector.broadcast %cst_116 : f32 to vector<16x1xf32>
    %267 = arith.divf %265, %266 : vector<16x1xf32>
    %268 = vector.broadcast %267 : vector<16x1xf32> to vector<16x128xf32>
    %269 = arith.subf %263, %268 : vector<16x128xf32>
    %270 = arith.mulf %269, %269 : vector<16x128xf32>
    %cst_117 = arith.constant dense<0.000000e+00> : vector<16xf32>
    %271 = vector.multi_reduction <add>, %270, %cst_117 [1] : vector<16x128xf32> to vector<16xf32>
    %272 = vector.shape_cast %271 : vector<16xf32> to vector<16x1xf32>
    %cst_118 = arith.constant 1.280000e+02 : f32
    %273 = vector.broadcast %cst_118 : f32 to vector<16x1xf32>
    %274 = arith.divf %272, %273 : vector<16x1xf32>
    %275 = vector.broadcast %267 : vector<16x1xf32> to vector<16x128xf32>
    %276 = arith.subf %263, %275 : vector<16x128xf32>
    %cst_119 = arith.constant 9.99999974E-6 : f32
    %277 = vector.broadcast %cst_119 : f32 to vector<16x1xf32>
    %278 = arith.addf %274, %277 : vector<16x1xf32>
    %279 = math.rsqrt %278 : vector<16x1xf32>
    %280 = vector.broadcast %279 : vector<16x1xf32> to vector<16x128xf32>
    %281 = arith.mulf %276, %280 : vector<16x128xf32>
    %c0_120 = arith.constant 0 : index
    %c0_121 = arith.constant 0 : index
    %282 = vector.load %arg13[%c0_120, %c0_121] : memref<1x128xf32, #tpu.memory_space<vmem>>, vector<1x128xf32>
    %283 = vector.broadcast %282 : vector<1x128xf32> to vector<16x128xf32>
    %284 = arith.mulf %281, %283 : vector<16x128xf32>
    %c0_122 = arith.constant 0 : index
    %c0_123 = arith.constant 0 : index
    %285 = vector.load %arg14[%c0_122, %c0_123] : memref<1x128xf32, #tpu.memory_space<vmem>>, vector<1x128xf32>
    %286 = vector.broadcast %285 : vector<1x128xf32> to vector<16x128xf32>
    %287 = arith.addf %284, %286 : vector<16x128xf32>
    %c0_124 = arith.constant 0 : index
    %c0_125 = arith.constant 0 : index
    %c0_126 = arith.constant 0 : index
    %288 = vector.load %arg15[%c0_124, %c0_125, %c0_126] : memref<1x16x128xf32, #tpu.memory_space<vmem>>, vector<1x16x128xf32>
    %289 = vector.shape_cast %288 : vector<1x16x128xf32> to vector<16x128xf32>
    %290 = vector.shape_cast %287 : vector<16x128xf32> to vector<1x16x128xf32>
    tpu.vector_store %arg15[%c0_124, %c0_125, %c0_126], %290 {strides = array<i32>} : memref<1x16x128xf32, #tpu.memory_space<vmem>>, vector<1x16x128xf32>,
    return
  }
  func.func @transform_0(%arg0: i32) -> (i32, i32, i32) {
    %c0_i32 = arith.constant 0 : i32
    %c0_i32_0 = arith.constant 0 : i32
    %c0_i32_1 = arith.constant 0 : i32
    return %arg0, %c0_i32, %c0_i32_0 : i32, i32, i32
  }
  func.func @transform_1(%arg0: i32) -> (i32, i32, i32) {
    %c0_i32 = arith.constant 0 : i32
    %c0_i32_0 = arith.constant 0 : i32
    %c0_i32_1 = arith.constant 0 : i32
    return %arg0, %c0_i32, %c0_i32_0 : i32, i32, i32
  }
  func.func @transform_2(%arg0: i32) -> (i32, i32) {
    %c0_i32 = arith.constant 0 : i32
    %c0_i32_0 = arith.constant 0 : i32
    %c0_i32_1 = arith.constant 0 : i32
    return %c0_i32, %c0_i32_0 : i32, i32
  }
  func.func @transform_3(%arg0: i32) -> (i32, i32) {
    %c0_i32 = arith.constant 0 : i32
    %c0_i32_0 = arith.constant 0 : i32
    %c0_i32_1 = arith.constant 0 : i32
    return %c0_i32, %c0_i32_0 : i32, i32
  }
  func.func @transform_4(%arg0: i32) -> (i32, i32) {
    %c0_i32 = arith.constant 0 : i32
    %c0_i32_0 = arith.constant 0 : i32
    %c0_i32_1 = arith.constant 0 : i32
    return %c0_i32, %c0_i32_0 : i32, i32
  }
  func.func @transform_5(%arg0: i32) -> (i32, i32) {
    %c0_i32 = arith.constant 0 : i32
    %c0_i32_0 = arith.constant 0 : i32
    %c0_i32_1 = arith.constant 0 : i32
    return %c0_i32, %c0_i32_0 : i32, i32
  }
  func.func @transform_6(%arg0: i32) -> (i32, i32) {
    %c0_i32 = arith.constant 0 : i32
    %c0_i32_0 = arith.constant 0 : i32
    %c0_i32_1 = arith.constant 0 : i32
    return %c0_i32, %c0_i32_0 : i32, i32
  }
  func.func @transform_7(%arg0: i32) -> (i32, i32) {
    %c0_i32 = arith.constant 0 : i32
    %c0_i32_0 = arith.constant 0 : i32
    %c0_i32_1 = arith.constant 0 : i32
    return %c0_i32, %c0_i32_0 : i32, i32
  }
  func.func @transform_8(%arg0: i32) -> (i32, i32) {
    %c0_i32 = arith.constant 0 : i32
    %c0_i32_0 = arith.constant 0 : i32
    %c0_i32_1 = arith.constant 0 : i32
    return %c0_i32, %c0_i32_0 : i32, i32
  }
  func.func @transform_9(%arg0: i32) -> (i32, i32) {
    %c0_i32 = arith.constant 0 : i32
    %c0_i32_0 = arith.constant 0 : i32
    %c0_i32_1 = arith.constant 0 : i32
    return %c0_i32, %c0_i32_0 : i32, i32
  }
  func.func @transform_10(%arg0: i32) -> (i32, i32) {
    %c0_i32 = arith.constant 0 : i32
    %c0_i32_0 = arith.constant 0 : i32
    %c0_i32_1 = arith.constant 0 : i32
    return %c0_i32, %c0_i32_0 : i32, i32
  }
  func.func @transform_11(%arg0: i32) -> (i32, i32) {
    %c0_i32 = arith.constant 0 : i32
    %c0_i32_0 = arith.constant 0 : i32
    %c0_i32_1 = arith.constant 0 : i32
    return %c0_i32, %c0_i32_0 : i32, i32
  }
  func.func @transform_12(%arg0: i32) -> (i32, i32) {
    %c0_i32 = arith.constant 0 : i32
    %c0_i32_0 = arith.constant 0 : i32
    %c0_i32_1 = arith.constant 0 : i32
    return %c0_i32, %c0_i32_0 : i32, i32
  }
  func.func @transform_13(%arg0: i32) -> (i32, i32) {
    %c0_i32 = arith.constant 0 : i32
    %c0_i32_0 = arith.constant 0 : i32
    %c0_i32_1 = arith.constant 0 : i32
    return %c0_i32, %c0_i32_0 : i32, i32
  }
  func.func @transform_14(%arg0: i32) -> (i32, i32, i32) {
    %c0_i32 = arith.constant 0 : i32
    %c0_i32_0 = arith.constant 0 : i32
    %c0_i32_1 = arith.constant 0 : i32
    return %arg0, %c0_i32, %c0_i32_0 : i32, i32, i32
  }
  func.func @transform_15(%arg0: i32) -> (i32, i32, i32, i32) {
    %c0_i32 = arith.constant 0 : i32
    %c0_i32_0 = arith.constant 0 : i32
    %c0_i32_1 = arith.constant 0 : i32
    %c0_i32_2 = arith.constant 0 : i32
    return %arg0, %c0_i32, %c0_i32_0, %c0_i32_1 : i32, i32, i32, i32
  }
}

</mosaic_0001>

<llo_original>
// kernel: encoder_layer_forward.1
$region0: #{encoder_layer_forward.1}
  #allocation0 [shape = 'u32[]', space=smem, size = 0x4, offset = 0x4, fixed_abs, tag = 'smem constant byte address 0x4 - core index']
  #allocation1 [shape = 'u32[144,128]{1,0:T(1,128)}', space=vmem, size = 0x12000, scoped, tag = 'internal scratch']
  %s0 = inlined_call_operand.hbm [shape: f32[4,16,128], index: 0, kind: input, shape index: {}]
  %s1 = inlined_call_operand.vmem [shape: f32[4,1,16], index: 1, kind: input, shape index: {}]
  %s2 = inlined_call_operand.hbm [shape: f32[128,384], index: 2, kind: input, shape index: {}]
  %s3 = inlined_call_operand.vmem [shape: f32[1,384], index: 3, kind: input, shape index: {}]
  %s4 = inlined_call_operand.hbm [shape: f32[128,128], index: 4, kind: input, shape index: {}]
  %s5 = inlined_call_operand.vmem [shape: f32[1,128], index: 5, kind: input, shape index: {}]
  %s6 = inlined_call_operand.vmem [shape: f32[1,128], index: 6, kind: input, shape index: {}]
  %s7 = inlined_call_operand.vmem [shape: f32[1,128], index: 7, kind: input, shape index: {}]
  %s8 = inlined_call_operand.hbm [shape: f32[128,512], index: 8, kind: input, shape index: {}]
  %s9 = inlined_call_operand.vmem [shape: f32[1,512], index: 9, kind: input, shape index: {}]
  %s10 = inlined_call_operand.hbm [shape: f32[512,128], index: 10, kind: input, shape index: {}]
  %s11 = inlined_call_operand.vmem [shape: f32[1,128], index: 11, kind: input, shape index: {}]
  %s12 = inlined_call_operand.vmem [shape: f32[1,128], index: 12, kind: input, shape index: {}]
  %s13 = inlined_call_operand.vmem [shape: f32[1,128], index: 13, kind: input, shape index: {}]
  %s14 = inlined_call_operand.hbm [shape: f32[4,16,128], index: 14, kind: output, shape index: {0}]
  %s15 = inlined_call_operand.hbm [shape: f32[4,8,16,16], index: 15, kind: output, shape index: {1}]
  %16 = xla_tuple %s14, %s15
  %s17 = sld [smem:[#allocation0]]
  $region117: #{encoder_layer_forward.1} parent=0
    _
  %s19 = ssub.s32 1, %s17
  %s20 = scalar_select 0, %s19, %s17
  $region1: #{encoder_layer_forward.1} parent=0
    #allocation2 [shape = 'u8[16384]{0}', space=vmem, size = 0x4000, scoped, tag = 'input window, operand 0']
    #allocation3 [shape = 's32[2]{0}', space=sflag, size = 0x8, scoped, tag = 'scoped memory for encoder_layer_forward.1']
    #allocation4 [shape = 's32[2]{0}', space=sflag, size = 0x8, scoped, tag = 'scoped memory for encoder_layer_forward.1']
    #allocation5 [shape = 'u8[196608]{0}', space=vmem, size = 0x30000, scoped, tag = 'input window, operand 2, single buffered']
    #allocation6 [shape = 's32[1]{0}', space=sflag, size = 0x4, scoped, tag = 'scoped memory for encoder_layer_forward.1']
    #allocation7 [shape = 'u8[65536]{0}', space=vmem, size = 0x10000, scoped, tag = 'input window, operand 4, single buffered']
    #allocation8 [shape = 'u8[262144]{0}', space=vmem, size = 0x40000, scoped, tag = 'input window, operand 8, single buffered']
    #allocation9 [shape = 's32[1]{0}', space=sflag, size = 0x4, scoped, tag = 'scoped memory for encoder_layer_forward.1']
    #allocation10 [shape = 'u8[262144]{0}', space=vmem, size = 0x40000, scoped, tag = 'input window, operand 10, single buffered']
    #allocation11 [shape = 'u8[16384]{0}', space=vmem, size = 0x4000, scoped, tag = 'output window, operand 0']
    #allocation12 [shape = 'u8[131072]{0}', space=vmem, size = 0x20000, scoped, tag = 'output window, operand 1']
    #allocation13 [shape = 's32[2]{0}', space=sflag, size = 0x8, scoped, tag = 'scoped memory for encoder_layer_forward.1']
    %21 = vsyncpa [#allocation3], 0
    %s22 = scalar_lea.sflag [#allocation3], 1
    %23 = vsyncpa %s22, 0
    %24 = vsyncpa [#allocation6], 0
    %25 = vsyncpa [#allocation9], 0
    %26 = vsyncpa [#allocation4], 0
    %s27 = scalar_lea.sflag [#allocation4], 1
    %28 = vsyncpa %s27, 0
    %29 = vsyncpa [#allocation13], 0
    %s30 = scalar_lea.sflag [#allocation13], 1
    %31 = vsyncpa %s30, 0
    loop: start=0, step=1, limit=6
    $region2: #{encoder_layer_forward.1} parent=1 // loop_pre_header
      _
    $region3: #{encoder_layer_forward.1} parent=1 // loop_header
      %s33 = sphi 0, %s37
      %p34 = scmp.ge.s32.totalorder %s33, 6
      %s43 = sphi 0, %s45
      %s46 = sphi 0, %s43
      %s47 = sphi 0, %s46
      %s63 = sphi 0, %s47
      %s69 = sphi 0, %s71
      %s72 = sphi 0, %s69
      %s73 = sphi 0, %s72
      %s89 = sphi 0, %s73
      %s93 = sphi 0, %s93
      %s95 = sphi 0, %s93
      %s96 = sphi 0, %s95
      %s110 = sphi 0, %s96
      %s114 = sphi 0, %s114
      %s116 = sphi 0, %s114
      %s117 = sphi 0, %s116
      %s131 = sphi 0, %s117
      %s135 = sphi 0, %s135
      %s137 = sphi 0, %s135
      %s138 = sphi 0, %s137
      %s152 = sphi 0, %s138
      %s156 = sphi 0, %s156
      %s158 = sphi 0, %s156
      %s159 = sphi 0, %s158
      %s173 = sphi 0, %s159
      %s177 = sphi 0, %s177
      %s179 = sphi 0, %s177
      %s180 = sphi 0, %s179
      %s194 = sphi 0, %s180
      %s198 = sphi 0, %s198
      %s200 = sphi 0, %s198
      %s201 = sphi 0, %s200
      %s215 = sphi 0, %s201
      %s219 = sphi 0, %s219
      %s221 = sphi 0, %s219
      %s222 = sphi 0, %s221
      %s236 = sphi 0, %s222
      %s240 = sphi 0, %s240
      %s242 = sphi 0, %s240
      %s243 = sphi 0, %s242
      %s257 = sphi 0, %s243
      %s261 = sphi 0, %s261
      %s263 = sphi 0, %s261
      %s264 = sphi 0, %s263
      %s278 = sphi 0, %s264
      %s282 = sphi 0, %s282
      %s284 = sphi 0, %s282
      %s285 = sphi 0, %s284
      %s299 = sphi 0, %s285
      %s303 = sphi 0, %s303
      %s305 = sphi 0, %s303
      %s306 = sphi 0, %s305
      %s320 = sphi 0, %s306
      %s324 = sphi 0, %s324
      %s326 = sphi 0, %s324
      %s327 = sphi 0, %s326
      %s341 = sphi 0, %s327
      %s347 = sphi 0, %s349
      %s350 = sphi 0, %s347
      %s351 = sphi 0, %s350
      %s367 = sphi 0, %s351
      %s373 = sphi 0, %s375
      %s376 = sphi 0, %s373
      %s377 = sphi 0, %s376
      %s393 = sphi 0, %s377
    $region4: #{encoder_layer_forward.1} parent=1 // loop_header_branch
      %36 = sbr.rel (%p34) target = $region8
    $region5: #{encoder_layer_forward.1} parent=1 // loop_body
      %s38 = ssub.s32 %s33, 1
      %s39 = ssub.s32 %s33, 2
      %s40 = sadd.s32 %s33, 1
      %s41 = ssub.s32 %s33, %s40
      %p42 = scmp.eq.s32.totalorder %s41, 0
      %s44 = sadd.s32 %s43, 1
      %s45 = scalar_select %p42, %s43, %s44
      %p48 = pneg %p42
      %p49 = scmp.eq.s32.totalorder %s33, 3
      %p50 = por %p48, %p49
      %p51 = scmp.ne.s32.totalorder %s43, %s46
      %p52 = scmp.eq.s32.totalorder %s33, 0
      %p53 = por %p51, %p52
      %p54 = scmp.ne.s32.totalorder %s43, %s46
      %p55 = scmp.eq.s32.totalorder %s38, 3
      %p56 = por %p54, %p55
      %p57 = scmp.ne.s32.totalorder %s46, %s47
      %p58 = scmp.eq.s32.totalorder %s38, 0
      %p59 = por %p57, %p58
      %p60 = scmp.ne.s32.totalorder %s46, %s47
      %p61 = scmp.eq.s32.totalorder %s39, 3
      %p62 = por %p60, %p61
      %p64 = scmp.ne.s32.totalorder %s47, %s63
      %p65 = scmp.eq.s32.totalorder %s39, 0
      %p66 = por %p64, %p65
      %s67 = ssub.s32 %s33, %s40
      %p68 = scmp.eq.s32.totalorder %s67, 0
      %s70 = sadd.s32 %s69, 1
      %s71 = scalar_select %p68, %s69, %s70
      %p74 = pneg %p68
      %p75 = scmp.eq.s32.totalorder %s33, 3
      %p76 = por %p74, %p75
      %p77 = scmp.ne.s32.totalorder %s69, %s72
      %p78 = scmp.eq.s32.totalorder %s33, 0
      %p79 = por %p77, %p78
      %p80 = scmp.ne.s32.totalorder %s69, %s72
      %p81 = scmp.eq.s32.totalorder %s38, 3
      %p82 = por %p80, %p81
      %p83 = scmp.ne.s32.totalorder %s72, %s73
      %p84 = scmp.eq.s32.totalorder %s38, 0
      %p85 = por %p83, %p84
      %p86 = scmp.ne.s32.totalorder %s72, %s73
      %p87 = scmp.eq.s32.totalorder %s39, 3
      %p88 = por %p86, %p87
      %p90 = scmp.ne.s32.totalorder %s73, %s89
      %p91 = scmp.eq.s32.totalorder %s39, 0
      %p92 = por %p90, %p91
      %s94 = sadd.s32 %s93, 1
      %p97 = scmp.eq.s32.totalorder %s33, 3
      %p98 = scmp.ne.s32.totalorder %s93, %s95
      %p99 = scmp.eq.s32.totalorder %s33, 0
      %p100 = por %p98, %p99
      %p101 = scmp.ne.s32.totalorder %s93, %s95
      %p102 = scmp.eq.s32.totalorder %s38, 3
      %p103 = por %p101, %p102
      %p104 = scmp.ne.s32.totalorder %s95, %s96
      %p105 = scmp.eq.s32.totalorder %s38, 0
      %p106 = por %p104, %p105
      %p107 = scmp.ne.s32.totalorder %s95, %s96
      %p108 = scmp.eq.s32.totalorder %s39, 3
      %p109 = por %p107, %p108
      %p111 = scmp.ne.s32.totalorder %s96, %s110
      %p112 = scmp.eq.s32.totalorder %s39, 0
      %p113 = por %p111, %p112
      %s115 = sadd.s32 %s114, 1
      %p118 = scmp.eq.s32.totalorder %s33, 3
      %p119 = scmp.ne.s32.totalorder %s114, %s116
      %p120 = scmp.eq.s32.totalorder %s33, 0
      %p121 = por %p119, %p120
      %p122 = scmp.ne.s32.totalorder %s114, %s116
      %p123 = scmp.eq.s32.totalorder %s38, 3
      %p124 = por %p122, %p123
      %p125 = scmp.ne.s32.totalorder %s116, %s117
      %p126 = scmp.eq.s32.totalorder %s38, 0
      %p127 = por %p125, %p126
      %p128 = scmp.ne.s32.totalorder %s116, %s117
      %p129 = scmp.eq.s32.totalorder %s39, 3
      %p130 = por %p128, %p129
      %p132 = scmp.ne.s32.totalorder %s117, %s131
      %p133 = scmp.eq.s32.totalorder %s39, 0
      %p134 = por %p132, %p133
      %s136 = sadd.s32 %s135, 1
      %p139 = scmp.eq.s32.totalorder %s33, 3
      %p140 = scmp.ne.s32.totalorder %s135, %s137
      %p141 = scmp.eq.s32.totalorder %s33, 0
      %p142 = por %p140, %p141
      %p143 = scmp.ne.s32.totalorder %s135, %s137
      %p144 = scmp.eq.s32.totalorder %s38, 3
      %p145 = por %p143, %p144
      %p146 = scmp.ne.s32.totalorder %s137, %s138
      %p147 = scmp.eq.s32.totalorder %s38, 0
      %p148 = por %p146, %p147
      %p149 = scmp.ne.s32.totalorder %s137, %s138
      %p150 = scmp.eq.s32.totalorder %s39, 3
      %p151 = por %p149, %p150
      %p153 = scmp.ne.s32.totalorder %s138, %s152
      %p154 = scmp.eq.s32.totalorder %s39, 0
      %p155 = por %p153, %p154
      %s157 = sadd.s32 %s156, 1
      %p160 = scmp.eq.s32.totalorder %s33, 3
      %p161 = scmp.ne.s32.totalorder %s156, %s158
      %p162 = scmp.eq.s32.totalorder %s33, 0
      %p163 = por %p161, %p162
      %p164 = scmp.ne.s32.totalorder %s156, %s158
      %p165 = scmp.eq.s32.totalorder %s38, 3
      %p166 = por %p164, %p165
      %p167 = scmp.ne.s32.totalorder %s158, %s159
      %p168 = scmp.eq.s32.totalorder %s38, 0
      %p169 = por %p167, %p168
      %p170 = scmp.ne.s32.totalorder %s158, %s159
      %p171 = scmp.eq.s32.totalorder %s39, 3
      %p172 = por %p170, %p171
      %p174 = scmp.ne.s32.totalorder %s159, %s173
      %p175 = scmp.eq.s32.totalorder %s39, 0
      %p176 = por %p174, %p175
      %s178 = sadd.s32 %s177, 1
      %p181 = scmp.eq.s32.totalorder %s33, 3
      %p182 = scmp.ne.s32.totalorder %s177, %s179
      %p183 = scmp.eq.s32.totalorder %s33, 0
      %p184 = por %p182, %p183
      %p185 = scmp.ne.s32.totalorder %s177, %s179
      %p186 = scmp.eq.s32.totalorder %s38, 3
      %p187 = por %p185, %p186
      %p188 = scmp.ne.s32.totalorder %s179, %s180
      %p189 = scmp.eq.s32.totalorder %s38, 0
      %p190 = por %p188, %p189
      %p191 = scmp.ne.s32.totalorder %s179, %s180
      %p192 = scmp.eq.s32.totalorder %s39, 3
      %p193 = por %p191, %p192
      %p195 = scmp.ne.s32.totalorder %s180, %s194
      %p196 = scmp.eq.s32.totalorder %s39, 0
      %p197 = por %p195, %p196
      %s199 = sadd.s32 %s198, 1
      %p202 = scmp.eq.s32.totalorder %s33, 3
      %p203 = scmp.ne.s32.totalorder %s198, %s200
      %p204 = scmp.eq.s32.totalorder %s33, 0
      %p205 = por %p203, %p204
      %p206 = scmp.ne.s32.totalorder %s198, %s200
      %p207 = scmp.eq.s32.totalorder %s38, 3
      %p208 = por %p206, %p207
      %p209 = scmp.ne.s32.totalorder %s200, %s201
      %p210 = scmp.eq.s32.totalorder %s38, 0
      %p211 = por %p209, %p210
      %p212 = scmp.ne.s32.totalorder %s200, %s201
      %p213 = scmp.eq.s32.totalorder %s39, 3
      %p214 = por %p212, %p213
      %p216 = scmp.ne.s32.totalorder %s201, %s215
      %p217 = scmp.eq.s32.totalorder %s39, 0
      %p218 = por %p216, %p217
      %s220 = sadd.s32 %s219, 1
      %p223 = scmp.eq.s32.totalorder %s33, 3
      %p224 = scmp.ne.s32.totalorder %s219, %s221
      %p225 = scmp.eq.s32.totalorder %s33, 0
      %p226 = por %p224, %p225
      %p227 = scmp.ne.s32.totalorder %s219, %s221
      %p228 = scmp.eq.s32.totalorder %s38, 3
      %p229 = por %p227, %p228
      %p230 = scmp.ne.s32.totalorder %s221, %s222
      %p231 = scmp.eq.s32.totalorder %s38, 0
      %p232 = por %p230, %p231
      %p233 = scmp.ne.s32.totalorder %s221, %s222
      %p234 = scmp.eq.s32.totalorder %s39, 3
      %p235 = por %p233, %p234
      %p237 = scmp.ne.s32.totalorder %s222, %s236
      %p238 = scmp.eq.s32.totalorder %s39, 0
      %p239 = por %p237, %p238
      %s241 = sadd.s32 %s240, 1
      %p244 = scmp.eq.s32.totalorder %s33, 3
      %p245 = scmp.ne.s32.totalorder %s240, %s242
      %p246 = scmp.eq.s32.totalorder %s33, 0
      %p247 = por %p245, %p246
      %p248 = scmp.ne.s32.totalorder %s240, %s242
      %p249 = scmp.eq.s32.totalorder %s38, 3
      %p250 = por %p248, %p249
      %p251 = scmp.ne.s32.totalorder %s242, %s243
      %p252 = scmp.eq.s32.totalorder %s38, 0
      %p253 = por %p251, %p252
      %p254 = scmp.ne.s32.totalorder %s242, %s243
      %p255 = scmp.eq.s32.totalorder %s39, 3
      %p256 = por %p254, %p255
      %p258 = scmp.ne.s32.totalorder %s243, %s257
      %p259 = scmp.eq.s32.totalorder %s39, 0
      %p260 = por %p258, %p259
      %s262 = sadd.s32 %s261, 1
      %p265 = scmp.eq.s32.totalorder %s33, 3
      %p266 = scmp.ne.s32.totalorder %s261, %s263
      %p267 = scmp.eq.s32.totalorder %s33, 0
      %p268 = por %p266, %p267
      %p269 = scmp.ne.s32.totalorder %s261, %s263
      %p270 = scmp.eq.s32.totalorder %s38, 3
      %p271 = por %p269, %p270
      %p272 = scmp.ne.s32.totalorder %s263, %s264
      %p273 = scmp.eq.s32.totalorder %s38, 0
      %p274 = por %p272, %p273
      %p275 = scmp.ne.s32.totalorder %s263, %s264
      %p276 = scmp.eq.s32.totalorder %s39, 3
      %p277 = por %p275, %p276
      %p279 = scmp.ne.s32.totalorder %s264, %s278
      %p280 = scmp.eq.s32.totalorder %s39, 0
      %p281 = por %p279, %p280
      %s283 = sadd.s32 %s282, 1
      %p286 = scmp.eq.s32.totalorder %s33, 3
      %p287 = scmp.ne.s32.totalorder %s282, %s284
      %p288 = scmp.eq.s32.totalorder %s33, 0
      %p289 = por %p287, %p288
      %p290 = scmp.ne.s32.totalorder %s282, %s284
      %p291 = scmp.eq.s32.totalorder %s38, 3
      %p292 = por %p290, %p291
      %p293 = scmp.ne.s32.totalorder %s284, %s285
      %p294 = scmp.eq.s32.totalorder %s38, 0
      %p295 = por %p293, %p294
      %p296 = scmp.ne.s32.totalorder %s284, %s285
      %p297 = scmp.eq.s32.totalorder %s39, 3
      %p298 = por %p296, %p297
      %p300 = scmp.ne.s32.totalorder %s285, %s299
      %p301 = scmp.eq.s32.totalorder %s39, 0
      %p302 = por %p300, %p301
      %s304 = sadd.s32 %s303, 1
      %p307 = scmp.eq.s32.totalorder %s33, 3
      %p308 = scmp.ne.s32.totalorder %s303, %s305
      %p309 = scmp.eq.s32.totalorder %s33, 0
      %p310 = por %p308, %p309
      %p311 = scmp.ne.s32.totalorder %s303, %s305
      %p312 = scmp.eq.s32.totalorder %s38, 3
      %p313 = por %p311, %p312
      %p314 = scmp.ne.s32.totalorder %s305, %s306
      %p315 = scmp.eq.s32.totalorder %s38, 0
      %p316 = por %p314, %p315
      %p317 = scmp.ne.s32.totalorder %s305, %s306
      %p318 = scmp.eq.s32.totalorder %s39, 3
      %p319 = por %p317, %p318
      %p321 = scmp.ne.s32.totalorder %s306, %s320
      %p322 = scmp.eq.s32.totalorder %s39, 0
      %p323 = por %p321, %p322
      %s325 = sadd.s32 %s324, 1
      %p328 = scmp.eq.s32.totalorder %s33, 3
      %p329 = scmp.ne.s32.totalorder %s324, %s326
      %p330 = scmp.eq.s32.totalorder %s33, 0
      %p331 = por %p329, %p330
      %p332 = scmp.ne.s32.totalorder %s324, %s326
      %p333 = scmp.eq.s32.totalorder %s38, 3
      %p334 = por %p332, %p333
      %p335 = scmp.ne.s32.totalorder %s326, %s327
      %p336 = scmp.eq.s32.totalorder %s38, 0
      %p337 = por %p335, %p336
      %p338 = scmp.ne.s32.totalorder %s326, %s327
      %p339 = scmp.eq.s32.totalorder %s39, 3
      %p340 = por %p338, %p339
      %p342 = scmp.ne.s32.totalorder %s327, %s341
      %p343 = scmp.eq.s32.totalorder %s39, 0
      %p344 = por %p342, %p343
      %s345 = ssub.s32 %s33, %s40
      %p346 = scmp.eq.s32.totalorder %s345, 0
      %s348 = sadd.s32 %s347, 1
      %s349 = scalar_select %p346, %s347, %s348
      %p352 = pneg %p346
      %p353 = scmp.eq.s32.totalorder %s33, 3
      %p354 = por %p352, %p353
      %p355 = scmp.ne.s32.totalorder %s347, %s350
      %p356 = scmp.eq.s32.totalorder %s33, 0
      %p357 = por %p355, %p356
      %p358 = scmp.ne.s32.totalorder %s347, %s350
      %p359 = scmp.eq.s32.totalorder %s38, 3
      %p360 = por %p358, %p359
      %p361 = scmp.ne.s32.totalorder %s350, %s351
      %p362 = scmp.eq.s32.totalorder %s38, 0
      %p363 = por %p361, %p362
      %p364 = scmp.ne.s32.totalorder %s350, %s351
      %p365 = scmp.eq.s32.totalorder %s39, 3
      %p366 = por %p364, %p365
      %p368 = scmp.ne.s32.totalorder %s351, %s367
      %p369 = scmp.eq.s32.totalorder %s39, 0
      %p370 = por %p368, %p369
      %s371 = ssub.s32 %s33, %s40
      %p372 = scmp.eq.s32.totalorder %s371, 0
      %s374 = sadd.s32 %s373, 1
      %s375 = scalar_select %p372, %s373, %s374
      %p378 = pneg %p372
      %p379 = scmp.eq.s32.totalorder %s33, 3
      %p380 = por %p378, %p379
      %p381 = scmp.ne.s32.totalorder %s373, %s376
      %p382 = scmp.eq.s32.totalorder %s33, 0
      %p383 = por %p381, %p382
      %p384 = scmp.ne.s32.totalorder %s373, %s376
      %p385 = scmp.eq.s32.totalorder %s38, 3
      %p386 = por %p384, %p385
      %p387 = scmp.ne.s32.totalorder %s376, %s377
      %p388 = scmp.eq.s32.totalorder %s38, 0
      %p389 = por %p387, %p388
      %p390 = scmp.ne.s32.totalorder %s376, %s377
      %p391 = scmp.eq.s32.totalorder %s39, 3
      %p392 = por %p390, %p391
      %p394 = scmp.ne.s32.totalorder %s377, %s393
      %p395 = scmp.eq.s32.totalorder %s39, 0
      %p396 = por %p394, %p395
      %p397 = scmp.le.s32.totalorder 1, %s33
      %p398 = scmp.lt.s32.totalorder %s33, 5
      %p399 = pnand %p397, %p398
      %p400 = pneg %p399
      // Predicated region
      $region9: #{encoder_layer_forward.1} parent=5 // pred_check
        _
      $region10: #{encoder_layer_forward.1} parent=5 // pred_check_branch
        %402 = sbr.rel (%p399) target = $region12
      $region11: #{encoder_layer_forward.1} parent=5 // pred_region
        %s403 = ssub.s32 %s33, 1
        // Predicated region
        $region13: #{encoder_layer_forward.1} parent=11 // pred_check
          %p404 = pneg %p106
        $region14: #{encoder_layer_forward.1} parent=11 // pred_check_branch
          %406 = sbr.rel (%p404) target = $region16
        $region15: #{encoder_layer_forward.1} parent=11 // pred_region
          %s408 = ssub.s32 6144, 6144
          %409 = vsyncadd [#allocation6], %s408
          %s410 = sshll.u32 [#allocation5], 4
          %s411 = int_to_ptr.vmem [resolvable:$true] %s410
          %416 = dma.hbm_to_vmem [thread:$0]  %s2, 6144, %s411, [#allocation6], 384, 384, 24
        $region16: #{encoder_layer_forward.1} parent=11 // pred_fallthru
          _
        // Predicated region
        $region17: #{encoder_layer_forward.1} parent=11 // pred_check
          %p417 = pneg %p127
        $region18: #{encoder_layer_forward.1} parent=11 // pred_check_branch
          %419 = sbr.rel (%p417) target = $region20
        $region19: #{encoder_layer_forward.1} parent=11 // pred_region
          _
        $region20: #{encoder_layer_forward.1} parent=11 // pred_fallthru
          _
        // Predicated region
        $region21: #{encoder_layer_forward.1} parent=11 // pred_check
          %p420 = pneg %p148
        $region22: #{encoder_layer_forward.1} parent=11 // pred_check_branch
          %422 = sbr.rel (%p420) target = $region24
        $region23: #{encoder_layer_forward.1} parent=11 // pred_region
          %s424 = ssub.s32 2048, 2048
          %425 = vsyncadd [#allocation6], %s424
          %s426 = sshll.u32 [#allocation7], 4
          %s427 = int_to_ptr.vmem [resolvable:$true] %s426
          %432 = dma.hbm_to_vmem [thread:$0]  %s4, 2048, %s427, [#allocation6], 128, 128, 8
        $region24: #{encoder_layer_forward.1} parent=11 // pred_fallthru
          _
        // Predicated region
        $region25: #{encoder_layer_forward.1} parent=11 // pred_check
          %p433 = pneg %p169
        $region26: #{encoder_layer_forward.1} parent=11 // pred_check_branch
          %435 = sbr.rel (%p433) target = $region28
        $region27: #{encoder_layer_forward.1} parent=11 // pred_region
          _
        $region28: #{encoder_layer_forward.1} parent=11 // pred_fallthru
          _
        // Predicated region
        $region29: #{encoder_layer_forward.1} parent=11 // pred_check
          %p436 = pneg %p190
        $region30: #{encoder_layer_forward.1} parent=11 // pred_check_branch
          %438 = sbr.rel (%p436) target = $region32
        $region31: #{encoder_layer_forward.1} parent=11 // pred_region
          _
        $region32: #{encoder_layer_forward.1} parent=11 // pred_fallthru
          _
        // Predicated region
        $region33: #{encoder_layer_forward.1} parent=11 // pred_check
          %p439 = pneg %p211
        $region34: #{encoder_layer_forward.1} parent=11 // pred_check_branch
          %441 = sbr.rel (%p439) target = $region36
        $region35: #{encoder_layer_forward.1} parent=11 // pred_region
          _
        $region36: #{encoder_layer_forward.1} parent=11 // pred_fallthru
          _
        // Predicated region
        $region37: #{encoder_layer_forward.1} parent=11 // pred_check
          %p442 = pneg %p232
        $region38: #{encoder_layer_forward.1} parent=11 // pred_check_branch
          %444 = sbr.rel (%p442) target = $region40
        $region39: #{encoder_layer_forward.1} parent=11 // pred_region
          %s446 = ssub.s32 8192, 8192
          %447 = vsyncadd [#allocation9], %s446
          %s448 = sshll.u32 [#allocation8], 4
          %s449 = int_to_ptr.vmem [resolvable:$true] %s448
          %454 = dma.hbm_to_vmem [thread:$0]  %s8, 8192, %s449, [#allocation9], 512, 512, 32
        $region40: #{encoder_layer_forward.1} parent=11 // pred_fallthru
          _
        // Predicated region
        $region41: #{encoder_layer_forward.1} parent=11 // pred_check
          %p455 = pneg %p253
        $region42: #{encoder_layer_forward.1} parent=11 // pred_check_branch
          %457 = sbr.rel (%p455) target = $region44
        $region43: #{encoder_layer_forward.1} parent=11 // pred_region
          _
        $region44: #{encoder_layer_forward.1} parent=11 // pred_fallthru
          _
        // Predicated region
        $region45: #{encoder_layer_forward.1} parent=11 // pred_check
          %p458 = pneg %p274
        $region46: #{encoder_layer_forward.1} parent=11 // pred_check_branch
          %460 = sbr.rel (%p458) target = $region48
        $region47: #{encoder_layer_forward.1} parent=11 // pred_region
          %s462 = ssub.s32 8192, 8192
          %463 = vsyncadd [#allocation9], %s462
          %s464 = sshll.u32 [#allocation10], 4
          %s465 = int_to_ptr.vmem [resolvable:$true] %s464
          %470 = dma.hbm_to_vmem [thread:$0]  %s10, 8192, %s465, [#allocation9], 128, 128, 8
        $region48: #{encoder_layer_forward.1} parent=11 // pred_fallthru
          _
        // Predicated region
        $region49: #{encoder_layer_forward.1} parent=11 // pred_check
          %p471 = pneg %p295
        $region50: #{encoder_layer_forward.1} parent=11 // pred_check_branch
          %473 = sbr.rel (%p471) target = $region52
        $region51: #{encoder_layer_forward.1} parent=11 // pred_region
          _
        $region52: #{encoder_layer_forward.1} parent=11 // pred_fallthru
          _
        // Predicated region
        $region53: #{encoder_layer_forward.1} parent=11 // pred_check
          %p474 = pneg %p316
        $region54: #{encoder_layer_forward.1} parent=11 // pred_check_branch
          %476 = sbr.rel (%p474) target = $region56
        $region55: #{encoder_layer_forward.1} parent=11 // pred_region
          _
        $region56: #{encoder_layer_forward.1} parent=11 // pred_fallthru
          _
        // Predicated region
        $region57: #{encoder_layer_forward.1} parent=11 // pred_check
          %p477 = pneg %p337
        $region58: #{encoder_layer_forward.1} parent=11 // pred_check_branch
          %479 = sbr.rel (%p477) target = $region60
        $region59: #{encoder_layer_forward.1} parent=11 // pred_region
          _
        $region60: #{encoder_layer_forward.1} parent=11 // pred_fallthru
          _
      $region12: #{encoder_layer_forward.1} parent=5 // pred_fallthru
        _
      %p480 = scmp.lt.s32.totalorder %s33, 4
      // Predicated region
      $region61: #{encoder_layer_forward.1} parent=5 // pred_check
        %p481 = pneg %p480
      $region62: #{encoder_layer_forward.1} parent=5 // pred_check_branch
        %483 = sbr.rel (%p481) target = $region64
      $region63: #{encoder_layer_forward.1} parent=5 // pred_region
        // Predicated region
        $region65: #{encoder_layer_forward.1} parent=63 // pred_check
          %p484 = pneg %p53
        $region66: #{encoder_layer_forward.1} parent=63 // pred_check_branch
          %486 = sbr.rel (%p484) target = $region68
        $region67: #{encoder_layer_forward.1} parent=63 // pred_region
          %s487 = sand.u32 %s43, 1
          %s488 = scalar_lea.sflag [#allocation3], %s487
          %s489 = sand.u32 %s43, 1
          %s490 = smul.addr %s489, 16
          %s491 = scalar_lea.vmem [#allocation2], %s490
          %s493 = ssub.s32 256, 256
          %494 = vsyncadd %s488, %s493
          %s495 = smul.addr %s33, 2
          %s496 = smul.addr %s495, 128
          %s497 = scalar_lea.hbm %s0, %s496
          %s498 = sshll.u32 %s491, 4
          %s499 = int_to_ptr.vmem [resolvable:$true] %s498
          %504 = dma.hbm_to_vmem [thread:$0]  %s497, 256, %s499, %s488, 128, 128, 8
        $region68: #{encoder_layer_forward.1} parent=63 // pred_fallthru
          _
        // Predicated region
        $region69: #{encoder_layer_forward.1} parent=63 // pred_check
          %p505 = pneg %p79
        $region70: #{encoder_layer_forward.1} parent=63 // pred_check_branch
          %507 = sbr.rel (%p505) target = $region72
        $region71: #{encoder_layer_forward.1} parent=63 // pred_region
          %p508 = scmp.lt.s32.totalorder %s33, 3
          %s509 = scalar_select %p508, %s33, 3
          %s510 = scalar_lea.vmem %s1, %s509
        $region72: #{encoder_layer_forward.1} parent=63 // pred_fallthru
          _
      $region64: #{encoder_layer_forward.1} parent=5 // pred_fallthru
        _
      %p511 = scmp.le.s32.totalorder 1, %s33
      %p512 = scmp.lt.s32.totalorder %s33, 5
      %p513 = pnand %p511, %p512
      %p514 = pneg %p513
      // Predicated region
      $region73: #{encoder_layer_forward.1} parent=5 // pred_check
        _
      $region74: #{encoder_layer_forward.1} parent=5 // pred_check_branch
        %516 = sbr.rel (%p513) target = $region76
      $region75: #{encoder_layer_forward.1} parent=5 // pred_region
        %s517 = ssub.s32 %s33, 1
        %s518 = sand.u32 %s46, 1
        %s519 = scalar_lea.sflag [#allocation3], %s518
        %s520 = sand.u32 %s46, 1
        %s521 = smul.addr %s520, 16
        %s522 = scalar_lea.vmem [#allocation2], %s521
        // Predicated region
        $region77: #{encoder_layer_forward.1} parent=75 // pred_check
          %p523 = pneg %p59
        $region78: #{encoder_layer_forward.1} parent=75 // pred_check_branch
          %525 = sbr.rel (%p523) target = $region80
        $region79: #{encoder_layer_forward.1} parent=75 // pred_region
          %526 = dma.done %s519, 256
        $region80: #{encoder_layer_forward.1} parent=75 // pred_fallthru
          _
        // Predicated region
        $region81: #{encoder_layer_forward.1} parent=75 // pred_check
          %p527 = pneg %p106
        $region82: #{encoder_layer_forward.1} parent=75 // pred_check_branch
          %529 = sbr.rel (%p527) target = $region84
        $region83: #{encoder_layer_forward.1} parent=75 // pred_region
          %530 = dma.done [#allocation6], 6144
        $region84: #{encoder_layer_forward.1} parent=75 // pred_fallthru
          _
        // Predicated region
        $region85: #{encoder_layer_forward.1} parent=75 // pred_check
          %p531 = pneg %p148
        $region86: #{encoder_layer_forward.1} parent=75 // pred_check_branch
          %533 = sbr.rel (%p531) target = $region88
        $region87: #{encoder_layer_forward.1} parent=75 // pred_region
          %534 = dma.done [#allocation6], 2048
        $region88: #{encoder_layer_forward.1} parent=75 // pred_fallthru
          _
        // Predicated region
        $region89: #{encoder_layer_forward.1} parent=75 // pred_check
          %p535 = pneg %p232
        $region90: #{encoder_layer_forward.1} parent=75 // pred_check_branch
          %537 = sbr.rel (%p535) target = $region92
        $region91: #{encoder_layer_forward.1} parent=75 // pred_region
          %538 = dma.done [#allocation9], 8192
        $region92: #{encoder_layer_forward.1} parent=75 // pred_fallthru
          _
        // Predicated region
        $region93: #{encoder_layer_forward.1} parent=75 // pred_check
          %p539 = pneg %p274
        $region94: #{encoder_layer_forward.1} parent=75 // pred_check_branch
          %541 = sbr.rel (%p539) target = $region96
        $region95: #{encoder_layer_forward.1} parent=75 // pred_region
          %542 = dma.done [#allocation9], 8192
        $region96: #{encoder_layer_forward.1} parent=75 // pred_fallthru
          _
        %s543 = sand.u32 %s46, 1
        %s544 = scalar_lea.sflag [#allocation3], %s543
        %s545 = sand.u32 %s46, 1
        %s546 = smul.addr %s545, 16
        %s547 = scalar_lea.vmem [#allocation2], %s546
        %p548 = pneg %p59
        %p549 = pneg %p56
        %p550 = scmp.lt.s32.totalorder %s38, 3
        %s551 = scalar_select %p550, %s38, 3
        %s552 = scalar_lea.vmem %s1, %s551
        %p553 = pneg %p85
        %p554 = pneg %p82
        %p555 = pneg %p106
        %p556 = pneg %p103
        %p557 = pneg %p127
        %p558 = pneg %p124
        %p559 = pneg %p148
        %p560 = pneg %p145
        %p561 = pneg %p169
        %p562 = pneg %p166
        %p563 = pneg %p190
        %p564 = pneg %p187
        %p565 = pneg %p211
        %p566 = pneg %p208
        %p567 = pneg %p232
        %p568 = pneg %p229
        %p569 = pneg %p253
        %p570 = pneg %p250
        %p571 = pneg %p274
        %p572 = pneg %p271
        %p573 = pneg %p295
        %p574 = pneg %p292
        %p575 = pneg %p316
        %p576 = pneg %p313
        %p577 = pneg %p337
        %p578 = pneg %p334
        %p579 = pneg %p363
        %p580 = pneg %p360
        %s581 = sand.u32 %s350, 1
        %s582 = scalar_lea.sflag [#allocation4], %s581
        %s583 = sand.u32 %s350, 1
        %s584 = smul.addr %s583, 16
        %s585 = scalar_lea.vmem [#allocation11], %s584
        %p586 = pneg %p389
        %p587 = pneg %p386
        %s588 = sand.u32 %s376, 1
        %s589 = scalar_lea.sflag [#allocation13], %s588
        %s590 = sand.u32 %s376, 1
        %s591 = smul.addr %s590, 128
        %s592 = scalar_lea.vmem [#allocation12], %s591
        %p593 = scmp.lt.s32.totalorder %s38, 3
        %s594 = scalar_select %p593, %s38, 3
        %s595 = scalar_lea.vmem %s1, %s594
        %v596 = vld [vmem:[%s522] sm:$0xff]
        %v597 = vld [vmem:[%s522 + $0x8] sm:$0xff]
        %v598 = vld [vmem:[%s595] sm:$0x1]
        %v599 = vld [vmem:[#allocation5] sm:$0xff]
        %v600 = vld [vmem:[#allocation5 + $0x8] sm:$0xff]
        %v601 = vld [vmem:[#allocation5 + $0x10] sm:$0xff]
        %v602 = vld [vmem:[#allocation5 + $0x18] sm:$0xff]
        %v603 = vld [vmem:[#allocation5 + $0x20] sm:$0xff]
        %v604 = vld [vmem:[#allocation5 + $0x28] sm:$0xff]
        %v605 = vld [vmem:[#allocation5 + $0x30] sm:$0xff]
        %v606 = vld [vmem:[#allocation5 + $0x38] sm:$0xff]
        %v607 = vld [vmem:[#allocation5 + $0x40] sm:$0xff]
        %v608 = vld [vmem:[#allocation5 + $0x48] sm:$0xff]
        %v609 = vld [vmem:[#allocation5 + $0x50] sm:$0xff]
        %v610 = vld [vmem:[#allocation5 + $0x58] sm:$0xff]
        %v611 = vld [vmem:[#allocation5 + $0x60] sm:$0xff]
        %v612 = vld [vmem:[#allocation5 + $0x68] sm:$0xff]
        %v613 = vld [vmem:[#allocation5 + $0x70] sm:$0xff]
        %v614 = vld [vmem:[#allocation5 + $0x78] sm:$0xff]
        %v615 = vld [vmem:[#allocation5 + $0x80] sm:$0xff]
        %v616 = vld [vmem:[#allocation5 + $0x88] sm:$0xff]
        %v617 = vld [vmem:[#allocation5 + $0x90] sm:$0xff]
        %v618 = vld [vmem:[#allocation5 + $0x98] sm:$0xff]
        %v619 = vld [vmem:[#allocation5 + $0xa0] sm:$0xff]
        %v620 = vld [vmem:[#allocation5 + $0xa8] sm:$0xff]
        %v621 = vld [vmem:[#allocation5 + $0xb0] sm:$0xff]
        %v622 = vld [vmem:[#allocation5 + $0xb8] sm:$0xff]
        %v623 = vld [vmem:[#allocation5 + $0xc0] sm:$0xff]
        %v624 = vld [vmem:[#allocation5 + $0xc8] sm:$0xff]
        %v625 = vld [vmem:[#allocation5 + $0xd0] sm:$0xff]
        %v626 = vld [vmem:[#allocation5 + $0xd8] sm:$0xff]
        %v627 = vld [vmem:[#allocation5 + $0xe0] sm:$0xff]
        %v628 = vld [vmem:[#allocation5 + $0xe8] sm:$0xff]
        %v629 = vld [vmem:[#allocation5 + $0xf0] sm:$0xff]
        %v630 = vld [vmem:[#allocation5 + $0xf8] sm:$0xff]
        %v631 = vld [vmem:[#allocation5 + $0x100] sm:$0xff]
        %v632 = vld [vmem:[#allocation5 + $0x108] sm:$0xff]
        %v633 = vld [vmem:[#allocation5 + $0x110] sm:$0xff]
        %v634 = vld [vmem:[#allocation5 + $0x118] sm:$0xff]
        %v635 = vld [vmem:[#allocation5 + $0x120] sm:$0xff]
        %v636 = vld [vmem:[#allocation5 + $0x128] sm:$0xff]
        %v637 = vld [vmem:[#allocation5 + $0x130] sm:$0xff]
        %v638 = vld [vmem:[#allocation5 + $0x138] sm:$0xff]
        %v639 = vld [vmem:[#allocation5 + $0x140] sm:$0xff]
        %v640 = vld [vmem:[#allocation5 + $0x148] sm:$0xff]
        %v641 = vld [vmem:[#allocation5 + $0x150] sm:$0xff]
        %v642 = vld [vmem:[#allocation5 + $0x158] sm:$0xff]
        %v643 = vld [vmem:[#allocation5 + $0x160] sm:$0xff]
        %v644 = vld [vmem:[#allocation5 + $0x168] sm:$0xff]
        %v645 = vld [vmem:[#allocation5 + $0x170] sm:$0xff]
        %v646 = vld [vmem:[#allocation5 + $0x178] sm:$0xff]
        %v647 = vld [vmem:[%s3] sm:$0x7]
        %v649 = vlaneseq
        %v650 = vshrl.u32 %v649, 7
        %v651 = vsub.s32 0, %v650
        %v652 = vrot.slane %v647, %v651
        %v653 = vlaneseq
        %v654 = vshrl.u32 %v653, 7
        %v655 = vsub.s32 1, %v654
        %v656 = vrot.slane %v647, %v655
        %v657 = vlaneseq
        %v658 = vshrl.u32 %v657, 7
        %v659 = vsub.s32 2, %v658
        %v660 = vrot.slane %v647, %v659
        %664 = vmatprep.subr.mxu0 %v645
        %665 = vmatpush1.msra.mxu0 %v644
        %666 = vmatprep.subr.mxu0 %v642
        %667 = vmatpush1.msra.mxu0 %v641
        %668 = vmatprep.subr.mxu0 %v639
        %669 = vmatpush1.msra.mxu0 %v638
        %670 = vmatprep.subr.mxu0 %v636
        %671 = vmatpush1.msra.mxu0 %v635
        %672 = vmatprep.subr.mxu0 %v633
        %673 = vmatpush1.msra.mxu0 %v632
        %674 = vmatprep.subr.mxu0 %v630
        %675 = vmatpush1.msra.mxu0 %v629
        %676 = vmatprep.subr.mxu0 %v627
        %677 = vmatpush1.msra.mxu0 %v626
        %678 = vmatprep.subr.mxu0 %v624
        %679 = vmatpush1.msra.mxu0 %v623
        %680 = vmatprep.subr.mxu0 %v621
        %681 = vmatpush1.msra.mxu0 %v620
        %682 = vmatprep.subr.mxu0 %v618
        %683 = vmatpush1.msra.mxu0 %v617
        %684 = vmatprep.subr.mxu0 %v615
        %685 = vmatpush1.msra.mxu0 %v614
        %686 = vmatprep.subr.mxu0 %v612
        %687 = vmatpush1.msra.mxu0 %v611
        %688 = vmatprep.subr.mxu0 %v609
        %689 = vmatpush1.msra.mxu0 %v608
        %690 = vmatprep.subr.mxu0 %v606
        %691 = vmatpush1.msra.mxu0 %v605
        %692 = vmatprep.subr.mxu0 %v603
        %693 = vmatpush1.msra.mxu0 %v602
        %694 = vmatprep.subr.mxu0 %v600
        %695 = vmatpush1.msra.mxu0 %v599
        %696 = vmatprep.subr.mxu0 0.0
        %697 = vmatpush2.msra.mxu0 0.0
        %698 = vmatprep.subr.mxu0 0.0
        %699 = vmatpush2.msra.mxu0 0.0
        %700 = vmatprep.subr.mxu0 0.0
        %701 = vmatpush2.msra.mxu0 0.0
        %702 = vmatprep.subr.mxu0 0.0
        %703 = vmatpush2.msra.mxu0 0.0
        %704 = vmatprep.subr.mxu0 0.0
        %705 = vmatpush2.msra.mxu0 0.0
        %706 = vmatprep.subr.mxu0 0.0
        %707 = vmatpush2.msra.mxu0 0.0
        %708 = vmatprep.subr.mxu0 0.0
        %709 = vmatpush2.msra.mxu0 0.0
        %710 = vmatprep.subr.mxu0 0.0
        %711 = vmatpush2.msra.mxu0 0.0
        %712 = vmatprep.subr.mxu0 0.0
        %713 = vmatpush2.msra.mxu0 0.0
        %714 = vmatprep.subr.mxu0 0.0
        %715 = vmatpush2.msra.mxu0 0.0
        %716 = vmatprep.subr.mxu0 0.0
        %717 = vmatpush2.msra.mxu0 0.0
        %718 = vmatprep.subr.mxu0 0.0
        %719 = vmatpush2.msra.mxu0 0.0
        %720 = vmatprep.subr.mxu0 0.0
        %721 = vmatpush2.msra.mxu0 0.0
        %722 = vmatprep.subr.mxu0 0.0
        %723 = vmatpush2.msra.mxu0 0.0
        %724 = vmatprep.subr.mxu0 0.0
        %725 = vmatpush2.msra.mxu0 0.0
        %726 = vmatprep.subr.mxu0 0.0
        %727 = vmatpush2.msra.mxu0 0.0
        %728 = vmatprep.mubr.f32.mxu0 0.0
        %729 = vmatmul.mubr.f32.gmra.mxu0 %v596
        %v730 = vpop.f32.mrf.mxu0
        %v731 = vadd.f32 %v652, %v730
        %v732 = vpop.f32.mrf.mxu0
        %v733 = vadd.f32 %v656, %v732
        %734 = vmatprep.mubr.f32.mxu0 0.0
        %735 = vmatmul.mubr.f32.gmra.mxu0 %v597
        %v736 = vpop.f32.mrf.mxu0
        %v737 = vadd.f32 %v652, %v736
        %v738 = vpop.f32.mrf.mxu0
        %v739 = vadd.f32 %v656, %v738
        %740 = vdwg.mxu0
        %741 = vmatprep.subr.mxu0 0.0
        %742 = vmatpush1.msra.mxu0 %v646
        %743 = vmatprep.subr.mxu0 0.0
        %744 = vmatpush1.msra.mxu0 %v643
        %745 = vmatprep.subr.mxu0 0.0
        %746 = vmatpush1.msra.mxu0 %v640
        %747 = vmatprep.subr.mxu0 0.0
        %748 = vmatpush1.msra.mxu0 %v637
        %749 = vmatprep.subr.mxu0 0.0
        %750 = vmatpush1.msra.mxu0 %v634
        %751 = vmatprep.subr.mxu0 0.0
        %752 = vmatpush1.msra.mxu0 %v631
        %753 = vmatprep.subr.mxu0 0.0
        %754 = vmatpush1.msra.mxu0 %v628
        %755 = vmatprep.subr.mxu0 0.0
        %756 = vmatpush1.msra.mxu0 %v625
        %757 = vmatprep.subr.mxu0 0.0
        %758 = vmatpush1.msra.mxu0 %v622
        %759 = vmatprep.subr.mxu0 0.0
        %760 = vmatpush1.msra.mxu0 %v619
        %761 = vmatprep.subr.mxu0 0.0
        %762 = vmatpush1.msra.mxu0 %v616
        %763 = vmatprep.subr.mxu0 0.0
        %764 = vmatpush1.msra.mxu0 %v613
        %765 = vmatprep.subr.mxu0 0.0
        %766 = vmatpush1.msra.mxu0 %v610
        %767 = vmatprep.subr.mxu0 0.0
        %768 = vmatpush1.msra.mxu0 %v607
        %769 = vmatprep.subr.mxu0 0.0
        %770 = vmatpush1.msra.mxu0 %v604
        %771 = vmatprep.subr.mxu0 0.0
        %772 = vmatpush1.msra.mxu0 %v601
        %773 = vmatprep.subr.mxu0 0.0
        %774 = vmatpush2.msra.mxu0 0.0
        %775 = vmatprep.subr.mxu0 0.0
        %776 = vmatpush2.msra.mxu0 0.0
        %777 = vmatprep.subr.mxu0 0.0
        %778 = vmatpush2.msra.mxu0 0.0
        %779 = vmatprep.subr.mxu0 0.0
        %780 = vmatpush2.msra.mxu0 0.0
        %781 = vmatprep.subr.mxu0 0.0
        %782 = vmatpush2.msra.mxu0 0.0
        %783 = vmatprep.subr.mxu0 0.0
        %784 = vmatpush2.msra.mxu0 0.0
        %785 = vmatprep.subr.mxu0 0.0
        %786 = vmatpush2.msra.mxu0 0.0
        %787 = vmatprep.subr.mxu0 0.0
        %788 = vmatpush2.msra.mxu0 0.0
        %789 = vmatprep.subr.mxu0 0.0
        %790 = vmatpush2.msra.mxu0 0.0
        %791 = vmatprep.subr.mxu0 0.0
        %792 = vmatpush2.msra.mxu0 0.0
        %793 = vmatprep.subr.mxu0 0.0
        %794 = vmatpush2.msra.mxu0 0.0
        %795 = vmatprep.subr.mxu0 0.0
        %796 = vmatpush2.msra.mxu0 0.0
        %797 = vmatprep.subr.mxu0 0.0
        %798 = vmatpush2.msra.mxu0 0.0
        %799 = vmatprep.subr.mxu0 0.0
        %800 = vmatpush2.msra.mxu0 0.0
        %801 = vmatprep.subr.mxu0 0.0
        %802 = vmatpush2.msra.mxu0 0.0
        %803 = vmatprep.subr.mxu0 0.0
        %804 = vmatpush2.msra.mxu0 0.0
        %805 = vmatprep.mubr.f32.mxu0 0.0
        %806 = vmatmul.mubr.f32.gmra.mxu0 %v596
        %v807 = vpop.f32.mrf.mxu0
        %v808 = vadd.f32 %v660, %v807
        %v809 = vpop.f32.mrf.mxu0
        %810 = vmatprep.mubr.f32.mxu0 0.0
        %811 = vmatmul.mubr.f32.gmra.mxu0 %v597
        %v812 = vpop.f32.mrf.mxu0
        %v813 = vadd.f32 %v660, %v812
        %v814 = vpop.f32.mrf.mxu0
        %815 = vdwg.mxu0
        %vm816 = vcmask 130048
        %v818 = vsel %vm816, %v731, 0
        %v821 = vsel %vm816, %v737, 0
        %v824 = vsel %vm816, %v733, 0
        %v827 = vsel %vm816, %v739, 0
        %829 = vmatprep.subr.mxu0 0.0
        %830 = vmatpush1.xpose.msra.mxu0 0.0
        %831 = vmatprep.subr.mxu0 0.0
        %832 = vmatpush1.xpose.msra.mxu0 0.0
        %833 = vmatprep.subr.mxu0 0.0
        %834 = vmatpush1.xpose.msra.mxu0 0.0
        %835 = vmatprep.subr.mxu0 0.0
        %836 = vmatpush1.xpose.msra.mxu0 0.0
        %837 = vmatprep.subr.mxu0 0.0
        %838 = vmatpush1.xpose.msra.mxu0 0.0
        %839 = vmatprep.subr.mxu0 0.0
        %840 = vmatpush1.xpose.msra.mxu0 0.0
        %841 = vmatprep.subr.mxu0 0.0
        %842 = vmatpush1.xpose.msra.mxu0 0.0
        %843 = vmatprep.subr.mxu0 0.0
        %844 = vmatpush1.xpose.msra.mxu0 0.0
        %845 = vmatprep.subr.mxu0 0.0
        %846 = vmatpush1.xpose.msra.mxu0 0.0
        %847 = vmatprep.subr.mxu0 0.0
        %848 = vmatpush1.xpose.msra.mxu0 0.0
        %849 = vmatprep.subr.mxu0 0.0
        %850 = vmatpush1.xpose.msra.mxu0 0.0
        %851 = vmatprep.subr.mxu0 0.0
        %852 = vmatpush1.xpose.msra.mxu0 0.0
        %853 = vmatprep.subr.mxu0 0.0
        %854 = vmatpush1.xpose.msra.mxu0 0.0
        %855 = vmatprep.subr.mxu0 0.0
        %856 = vmatpush1.xpose.msra.mxu0 0.0
        %857 = vmatprep.subr.mxu0 0.0
        %858 = vmatpush1.xpose.msra.mxu0 %v827
        %859 = vmatprep.subr.mxu0 0.0
        %860 = vmatpush1.xpose.msra.mxu0 %v824
        %861 = vmatprep.subr.mxu0 0.0
        %862 = vmatpush2.xpose.msra.mxu0 0.0
        %863 = vmatprep.subr.mxu0 0.0
        %864 = vmatpush2.xpose.msra.mxu0 0.0
        %865 = vmatprep.subr.mxu0 0.0
        %866 = vmatpush2.xpose.msra.mxu0 0.0
        %867 = vmatprep.subr.mxu0 0.0
        %868 = vmatpush2.xpose.msra.mxu0 0.0
        %869 = vmatprep.subr.mxu0 0.0
        %870 = vmatpush2.xpose.msra.mxu0 0.0
        %871 = vmatprep.subr.mxu0 0.0
        %872 = vmatpush2.xpose.msra.mxu0 0.0
        %873 = vmatprep.subr.mxu0 0.0
        %874 = vmatpush2.xpose.msra.mxu0 0.0
        %875 = vmatprep.subr.mxu0 0.0
        %876 = vmatpush2.xpose.msra.mxu0 0.0
        %877 = vmatprep.subr.mxu0 0.0
        %878 = vmatpush2.xpose.msra.mxu0 0.0
        %879 = vmatprep.subr.mxu0 0.0
        %880 = vmatpush2.xpose.msra.mxu0 0.0
        %881 = vmatprep.subr.mxu0 0.0
        %882 = vmatpush2.xpose.msra.mxu0 0.0
        %883 = vmatprep.subr.mxu0 0.0
        %884 = vmatpush2.xpose.msra.mxu0 0.0
        %885 = vmatprep.subr.mxu0 0.0
        %886 = vmatpush2.xpose.msra.mxu0 0.0
        %887 = vmatprep.subr.mxu0 0.0
        %888 = vmatpush2.xpose.msra.mxu0 0.0
        %889 = vmatprep.subr.mxu0 0.0
        %890 = vmatpush2.xpose.msra.mxu0 0.0
        %891 = vmatprep.subr.mxu0 0.0
        %892 = vmatpush2.xpose.msra.mxu0 0.0
        %893 = vmatprep.mubr.f32.mxu0 0.0
        %894 = vmatmul.mubr.f32.gmra.mxu0 %v818
        %v895 = vpop.f32.mrf.mxu0
        %v896 = vadd.f32 0.0, %v895
        %v897 = vpop.f32.mrf.mxu0
        %898 = vmatprep.mubr.f32.mxu0 0.0
        %899 = vmatmul.mubr.f32.gmra.mxu0 %v821
        %v900 = vpop.f32.mrf.mxu0
        %v901 = vadd.f32 0.0, %v900
        %v902 = vpop.f32.mrf.mxu0
        %903 = vdwg.mxu0
        %v904 = vmul.f32 %v896, 0.25
        %v905 = vmul.f32 %v901, 0.25
        %vm906 = vcmp.eq.f32.partialorder %v598, 0.0
        %v907 = vsel %vm906, 1, 0
        %v908 = vlaneseq
        %v909 = vshrl.u32 %v908, 7
        %v910 = vsub.s32 0, %v909
        %v911 = vrot.slane %v907, %v910
        %vm912 = vcmp.eq.s32.totalorder %v911, 1
        %v913 = vsel %vm912, -1e+09, %v904
        %v914 = vsel %vm912, -1e+09, %v905
        %v915 = vsel %vm816, %v913, -inf
        %916 = vmax.xlane.f32.xlu0 %v915
        %v917 = vpop.xlane.xlu0 %916
        %v918 = vsel %vm816, %v914, -inf
        %919 = vmax.xlane.f32.xlu0 %v918
        %v920 = vpop.xlane.xlu0 %919
        %v921 = vsub.f32 %v913, %v917
        %v922 = vsub.f32 %v914, %v920
        %v923 = vmul.f32 %v921, 1.442695
        %v924 = vpow.pop %v923
        %v925 = vmul.f32 %v922, 1.442695
        %v926 = vpow.pop %v925
        %v927 = vsel %vm816, %v924, 0.0
        %928 = vadd.xlane.f32.xlu0 %v927
        %v929 = vpop.xlane.xlu0 %928
        %v930 = vsel %vm816, %v926, 0.0
        %931 = vadd.xlane.f32.xlu0 %v930
        %v932 = vpop.xlane.xlu0 %931
        %v933 = vrcp.pop %v929
        %v934 = vrcp.pop %v932
        %v935 = vmul.f32 %v924, %v933
        %v936 = vmul.f32 %v926, %v934
        %937 = vst.msk [vmem:[%s592] sm:$0xff] %vm816, %v935
        %938 = vst.msk [vmem:[%s592 + $0x8] sm:$0xff] %vm816, %v936
        %v940 = vsel %vm816, %v935, 0
        %v943 = vsel %vm816, %v936, 0
        %945 = vmatprep.subr.mxu0 0.0
        %946 = vmatpush1.msra.mxu0 0.0
        %947 = vmatprep.subr.mxu0 0.0
        %948 = vmatpush1.msra.mxu0 0.0
        %949 = vmatprep.subr.mxu0 0.0
        %950 = vmatpush1.msra.mxu0 0.0
        %951 = vmatprep.subr.mxu0 0.0
        %952 = vmatpush1.msra.mxu0 0.0
        %953 = vmatprep.subr.mxu0 0.0
        %954 = vmatpush1.msra.mxu0 0.0
        %955 = vmatprep.subr.mxu0 0.0
        %956 = vmatpush1.msra.mxu0 0.0
        %957 = vmatprep.subr.mxu0 0.0
        %958 = vmatpush1.msra.mxu0 0.0
        %959 = vmatprep.subr.mxu0 0.0
        %960 = vmatpush1.msra.mxu0 0.0
        %961 = vmatprep.subr.mxu0 0.0
        %962 = vmatpush1.msra.mxu0 0.0
        %963 = vmatprep.subr.mxu0 0.0
        %964 = vmatpush1.msra.mxu0 0.0
        %965 = vmatprep.subr.mxu0 0.0
        %966 = vmatpush1.msra.mxu0 0.0
        %967 = vmatprep.subr.mxu0 0.0
        %968 = vmatpush1.msra.mxu0 0.0
        %969 = vmatprep.subr.mxu0 0.0
        %970 = vmatpush1.msra.mxu0 0.0
        %971 = vmatprep.subr.mxu0 0.0
        %972 = vmatpush1.msra.mxu0 0.0
        %973 = vmatprep.subr.mxu0 0.0
        %974 = vmatpush1.msra.mxu0 %v813
        %975 = vmatprep.subr.mxu0 0.0
        %976 = vmatpush1.msra.mxu0 %v808
        %977 = vmatprep.subr.mxu0 0.0
        %978 = vmatpush2.msra.mxu0 0.0
        %979 = vmatprep.subr.mxu0 0.0
        %980 = vmatpush2.msra.mxu0 0.0
        %981 = vmatprep.subr.mxu0 0.0
        %982 = vmatpush2.msra.mxu0 0.0
        %983 = vmatprep.subr.mxu0 0.0
        %984 = vmatpush2.msra.mxu0 0.0
        %985 = vmatprep.subr.mxu0 0.0
        %986 = vmatpush2.msra.mxu0 0.0
        %987 = vmatprep.subr.mxu0 0.0
        %988 = vmatpush2.msra.mxu0 0.0
        %989 = vmatprep.subr.mxu0 0.0
        %990 = vmatpush2.msra.mxu0 0.0
        %991 = vmatprep.subr.mxu0 0.0
        %992 = vmatpush2.msra.mxu0 0.0
        %993 = vmatprep.subr.mxu0 0.0
        %994 = vmatpush2.msra.mxu0 0.0
        %995 = vmatprep.subr.mxu0 0.0
        %996 = vmatpush2.msra.mxu0 0.0
        %997 = vmatprep.subr.mxu0 0.0
        %998 = vmatpush2.msra.mxu0 0.0
        %999 = vmatprep.subr.mxu0 0.0
        %1000 = vmatpush2.msra.mxu0 0.0
        %1001 = vmatprep.subr.mxu0 0.0
        %1002 = vmatpush2.msra.mxu0 0.0
        %1003 = vmatprep.subr.mxu0 0.0
        %1004 = vmatpush2.msra.mxu0 0.0
        %1005 = vmatprep.subr.mxu0 0.0
        %1006 = vmatpush2.msra.mxu0 0.0
        %1007 = vmatprep.subr.mxu0 0.0
        %1008 = vmatpush2.msra.mxu0 0.0
        %1009 = vmatprep.mubr.f32.mxu0 0.0
        %1010 = vmatmul.mubr.f32.gmra.mxu0 %v940
        %v1011 = vpop.f32.mrf.mxu0
        %v1012 = vadd.f32 0.0, %v1011
        %v1013 = vpop.f32.mrf.mxu0
        %1014 = vmatprep.mubr.f32.mxu0 0.0
        %1015 = vmatmul.mubr.f32.gmra.mxu0 %v943
        %v1016 = vpop.f32.mrf.mxu0
        %v1017 = vadd.f32 0.0, %v1016
        %v1018 = vpop.f32.mrf.mxu0
        %1019 = vdwg.mxu0
        %1020 = vrot.lane.b32.xlu0 %v731, 112
        %v1021 = vpop.permute.xlu0 %1020
        %1022 = vrot.lane.b32.xlu0 %v737, 112
        %v1023 = vpop.permute.xlu0 %1022
        %1024 = vrot.lane.b32.xlu0 %v733, 112
        %v1025 = vpop.permute.xlu0 %1024
        %1026 = vrot.lane.b32.xlu0 %v739, 112
        %v1027 = vpop.permute.xlu0 %1026
        %v1028 = vsel %vm816, %v1021, 0
        %v1030 = vsel %vm816, %v1023, 0
        %v1032 = vsel %vm816, %v1025, 0
        %v1034 = vsel %vm816, %v1027, 0
        %1036 = vmatprep.subr.mxu0 0.0
        %1037 = vmatpush1.xpose.msra.mxu0 0.0
        %1038 = vmatprep.subr.mxu0 0.0
        %1039 = vmatpush1.xpose.msra.mxu0 0.0
        %1040 = vmatprep.subr.mxu0 0.0
        %1041 = vmatpush1.xpose.msra.mxu0 0.0
        %1042 = vmatprep.subr.mxu0 0.0
        %1043 = vmatpush1.xpose.msra.mxu0 0.0
        %1044 = vmatprep.subr.mxu0 0.0
        %1045 = vmatpush1.xpose.msra.mxu0 0.0
        %1046 = vmatprep.subr.mxu0 0.0
        %1047 = vmatpush1.xpose.msra.mxu0 0.0
        %1048 = vmatprep.subr.mxu0 0.0
        %1049 = vmatpush1.xpose.msra.mxu0 0.0
        %1050 = vmatprep.subr.mxu0 0.0
        %1051 = vmatpush1.xpose.msra.mxu0 0.0
        %1052 = vmatprep.subr.mxu0 0.0
        %1053 = vmatpush1.xpose.msra.mxu0 0.0
        %1054 = vmatprep.subr.mxu0 0.0
        %1055 = vmatpush1.xpose.msra.mxu0 0.0
        %1056 = vmatprep.subr.mxu0 0.0
        %1057 = vmatpush1.xpose.msra.mxu0 0.0
        %1058 = vmatprep.subr.mxu0 0.0
        %1059 = vmatpush1.xpose.msra.mxu0 0.0
        %1060 = vmatprep.subr.mxu0 0.0
        %1061 = vmatpush1.xpose.msra.mxu0 0.0
        %1062 = vmatprep.subr.mxu0 0.0
        %1063 = vmatpush1.xpose.msra.mxu0 0.0
        %1064 = vmatprep.subr.mxu0 0.0
        %1065 = vmatpush1.xpose.msra.mxu0 %v1034
        %1066 = vmatprep.subr.mxu0 0.0
        %1067 = vmatpush1.xpose.msra.mxu0 %v1032
        %1068 = vmatprep.subr.mxu0 0.0
        %1069 = vmatpush2.xpose.msra.mxu0 0.0
        %1070 = vmatprep.subr.mxu0 0.0
        %1071 = vmatpush2.xpose.msra.mxu0 0.0
        %1072 = vmatprep.subr.mxu0 0.0
        %1073 = vmatpush2.xpose.msra.mxu0 0.0
        %1074 = vmatprep.subr.mxu0 0.0
        %1075 = vmatpush2.xpose.msra.mxu0 0.0
        %1076 = vmatprep.subr.mxu0 0.0
        %1077 = vmatpush2.xpose.msra.mxu0 0.0
        %1078 = vmatprep.subr.mxu0 0.0
        %1079 = vmatpush2.xpose.msra.mxu0 0.0
        %1080 = vmatprep.subr.mxu0 0.0
        %1081 = vmatpush2.xpose.msra.mxu0 0.0
        %1082 = vmatprep.subr.mxu0 0.0
        %1083 = vmatpush2.xpose.msra.mxu0 0.0
        %1084 = vmatprep.subr.mxu0 0.0
        %1085 = vmatpush2.xpose.msra.mxu0 0.0
        %1086 = vmatprep.subr.mxu0 0.0
        %1087 = vmatpush2.xpose.msra.mxu0 0.0
        %1088 = vmatprep.subr.mxu0 0.0
        %1089 = vmatpush2.xpose.msra.mxu0 0.0
        %1090 = vmatprep.subr.mxu0 0.0
        %1091 = vmatpush2.xpose.msra.mxu0 0.0
        %1092 = vmatprep.subr.mxu0 0.0
        %1093 = vmatpush2.xpose.msra.mxu0 0.0
        %1094 = vmatprep.subr.mxu0 0.0
        %1095 = vmatpush2.xpose.msra.mxu0 0.0
        %1096 = vmatprep.subr.mxu0 0.0
        %1097 = vmatpush2.xpose.msra.mxu0 0.0
        %1098 = vmatprep.subr.mxu0 0.0
        %1099 = vmatpush2.xpose.msra.mxu0 0.0
        %1100 = vmatprep.mubr.f32.mxu0 0.0
        %1101 = vmatmul.mubr.f32.gmra.mxu0 %v1028
        %v1102 = vpop.f32.mrf.mxu0
        %v1103 = vadd.f32 0.0, %v1102
        %v1104 = vpop.f32.mrf.mxu0
        %1105 = vmatprep.mubr.f32.mxu0 0.0
        %1106 = vmatmul.mubr.f32.gmra.mxu0 %v1030
        %v1107 = vpop.f32.mrf.mxu0
        %v1108 = vadd.f32 0.0, %v1107
        %v1109 = vpop.f32.mrf.mxu0
        %1110 = vdwg.mxu0
        %v1111 = vmul.f32 %v1103, 0.25
        %v1112 = vmul.f32 %v1108, 0.25
        %v1113 = vsel %vm912, -1e+09, %v1111
        %v1114 = vsel %vm912, -1e+09, %v1112
        %v1115 = vsel %vm816, %v1113, -inf
        %1116 = vmax.xlane.f32.xlu0 %v1115
        %v1117 = vpop.xlane.xlu0 %1116
        %v1118 = vsel %vm816, %v1114, -inf
        %1119 = vmax.xlane.f32.xlu0 %v1118
        %v1120 = vpop.xlane.xlu0 %1119
        %v1121 = vsub.f32 %v1113, %v1117
        %v1122 = vsub.f32 %v1114, %v1120
        %v1123 = vmul.f32 %v1121, 1.442695
        %v1124 = vpow.pop %v1123
        %v1125 = vmul.f32 %v1122, 1.442695
        %v1126 = vpow.pop %v1125
        %v1127 = vsel %vm816, %v1124, 0.0
        %1128 = vadd.xlane.f32.xlu0 %v1127
        %v1129 = vpop.xlane.xlu0 %1128
        %v1130 = vsel %vm816, %v1126, 0.0
        %1131 = vadd.xlane.f32.xlu0 %v1130
        %v1132 = vpop.xlane.xlu0 %1131
        %v1133 = vrcp.pop %v1129
        %v1134 = vrcp.pop %v1132
        %v1135 = vmul.f32 %v1124, %v1133
        %v1136 = vmul.f32 %v1126, %v1134
        %s1137 = scalar_lea.vmem %s592, 16 [#allocation12]
        %1138 = vst.msk [vmem:[%s1137] sm:$0xff] %vm816, %v1135
        %1139 = vst.msk [vmem:[%s1137 + $0x8] sm:$0xff] %vm816, %v1136
        %1142 = vrot.lane.b32.xlu0 %v808, 112
        %v1143 = vpop.permute.xlu0 %1142
        %1144 = vrot.lane.b32.xlu0 %v813, 112
        %v1145 = vpop.permute.xlu0 %1144
        %v1149 = vsel %vm816, %v1135, 0
        %v1152 = vsel %vm816, %v1136, 0
        %1154 = vmatprep.subr.mxu0 0.0
        %1155 = vmatpush1.msra.mxu0 0.0
        %1156 = vmatprep.subr.mxu0 0.0
        %1157 = vmatpush1.msra.mxu0 0.0
        %1158 = vmatprep.subr.mxu0 0.0
        %1159 = vmatpush1.msra.mxu0 0.0
        %1160 = vmatprep.subr.mxu0 0.0
        %1161 = vmatpush1.msra.mxu0 0.0
        %1162 = vmatprep.subr.mxu0 0.0
        %1163 = vmatpush1.msra.mxu0 0.0
        %1164 = vmatprep.subr.mxu0 0.0
        %1165 = vmatpush1.msra.mxu0 0.0
        %1166 = vmatprep.subr.mxu0 0.0
        %1167 = vmatpush1.msra.mxu0 0.0
        %1168 = vmatprep.subr.mxu0 0.0
        %1169 = vmatpush1.msra.mxu0 0.0
        %1170 = vmatprep.subr.mxu0 0.0
        %1171 = vmatpush1.msra.mxu0 0.0
        %1172 = vmatprep.subr.mxu0 0.0
        %1173 = vmatpush1.msra.mxu0 0.0
        %1174 = vmatprep.subr.mxu0 0.0
        %1175 = vmatpush1.msra.mxu0 0.0
        %1176 = vmatprep.subr.mxu0 0.0
        %1177 = vmatpush1.msra.mxu0 0.0
        %1178 = vmatprep.subr.mxu0 0.0
        %1179 = vmatpush1.msra.mxu0 0.0
        %1180 = vmatprep.subr.mxu0 0.0
        %1181 = vmatpush1.msra.mxu0 0.0
        %1182 = vmatprep.subr.mxu0 0.0
        %1183 = vmatpush1.msra.mxu0 %v1145
        %1184 = vmatprep.subr.mxu0 0.0
        %1185 = vmatpush1.msra.mxu0 %v1143
        %1186 = vmatprep.subr.mxu0 0.0
        %1187 = vmatpush2.msra.mxu0 0.0
        %1188 = vmatprep.subr.mxu0 0.0
        %1189 = vmatpush2.msra.mxu0 0.0
        %1190 = vmatprep.subr.mxu0 0.0
        %1191 = vmatpush2.msra.mxu0 0.0
        %1192 = vmatprep.subr.mxu0 0.0
        %1193 = vmatpush2.msra.mxu0 0.0
        %1194 = vmatprep.subr.mxu0 0.0
        %1195 = vmatpush2.msra.mxu0 0.0
        %1196 = vmatprep.subr.mxu0 0.0
        %1197 = vmatpush2.msra.mxu0 0.0
        %1198 = vmatprep.subr.mxu0 0.0
        %1199 = vmatpush2.msra.mxu0 0.0
        %1200 = vmatprep.subr.mxu0 0.0
        %1201 = vmatpush2.msra.mxu0 0.0
        %1202 = vmatprep.subr.mxu0 0.0
        %1203 = vmatpush2.msra.mxu0 0.0
        %1204 = vmatprep.subr.mxu0 0.0
        %1205 = vmatpush2.msra.mxu0 0.0
        %1206 = vmatprep.subr.mxu0 0.0
        %1207 = vmatpush2.msra.mxu0 0.0
        %1208 = vmatprep.subr.mxu0 0.0
        %1209 = vmatpush2.msra.mxu0 0.0
        %1210 = vmatprep.subr.mxu0 0.0
        %1211 = vmatpush2.msra.mxu0 0.0
        %1212 = vmatprep.subr.mxu0 0.0
        %1213 = vmatpush2.msra.mxu0 0.0
        %1214 = vmatprep.subr.mxu0 0.0
        %1215 = vmatpush2.msra.mxu0 0.0
        %1216 = vmatprep.subr.mxu0 0.0
        %1217 = vmatpush2.msra.mxu0 0.0
        %1218 = vmatprep.mubr.f32.mxu0 0.0
        %1219 = vmatmul.mubr.f32.gmra.mxu0 %v1149
        %v1220 = vpop.f32.mrf.mxu0
        %v1221 = vadd.f32 0.0, %v1220
        %v1222 = vpop.f32.mrf.mxu0
        %1223 = vmatprep.mubr.f32.mxu0 0.0
        %1224 = vmatmul.mubr.f32.gmra.mxu0 %v1152
        %v1225 = vpop.f32.mrf.mxu0
        %v1226 = vadd.f32 0.0, %v1225
        %v1227 = vpop.f32.mrf.mxu0
        %1228 = vdwg.mxu0
        %1229 = vrot.lane.b32.xlu0 %v731, 96
        %v1230 = vpop.permute.xlu0 %1229
        %1231 = vrot.lane.b32.xlu0 %v737, 96
        %v1232 = vpop.permute.xlu0 %1231
        %1233 = vrot.lane.b32.xlu0 %v733, 96
        %v1234 = vpop.permute.xlu0 %1233
        %1235 = vrot.lane.b32.xlu0 %v739, 96
        %v1236 = vpop.permute.xlu0 %1235
        %v1237 = vsel %vm816, %v1230, 0
        %v1239 = vsel %vm816, %v1232, 0
        %v1241 = vsel %vm816, %v1234, 0
        %v1243 = vsel %vm816, %v1236, 0
        %1245 = vmatprep.subr.mxu0 0.0
        %1246 = vmatpush1.xpose.msra.mxu0 0.0
        %1247 = vmatprep.subr.mxu0 0.0
        %1248 = vmatpush1.xpose.msra.mxu0 0.0
        %1249 = vmatprep.subr.mxu0 0.0
        %1250 = vmatpush1.xpose.msra.mxu0 0.0
        %1251 = vmatprep.subr.mxu0 0.0
        %1252 = vmatpush1.xpose.msra.mxu0 0.0
        %1253 = vmatprep.subr.mxu0 0.0
        %1254 = vmatpush1.xpose.msra.mxu0 0.0
        %1255 = vmatprep.subr.mxu0 0.0
        %1256 = vmatpush1.xpose.msra.mxu0 0.0
        %1257 = vmatprep.subr.mxu0 0.0
        %1258 = vmatpush1.xpose.msra.mxu0 0.0
        %1259 = vmatprep.subr.mxu0 0.0
        %1260 = vmatpush1.xpose.msra.mxu0 0.0
        %1261 = vmatprep.subr.mxu0 0.0
        %1262 = vmatpush1.xpose.msra.mxu0 0.0
        %1263 = vmatprep.subr.mxu0 0.0
        %1264 = vmatpush1.xpose.msra.mxu0 0.0
        %1265 = vmatprep.subr.mxu0 0.0
        %1266 = vmatpush1.xpose.msra.mxu0 0.0
        %1267 = vmatprep.subr.mxu0 0.0
        %1268 = vmatpush1.xpose.msra.mxu0 0.0
        %1269 = vmatprep.subr.mxu0 0.0
        %1270 = vmatpush1.xpose.msra.mxu0 0.0
        %1271 = vmatprep.subr.mxu0 0.0
        %1272 = vmatpush1.xpose.msra.mxu0 0.0
        %1273 = vmatprep.subr.mxu0 0.0
        %1274 = vmatpush1.xpose.msra.mxu0 %v1243
        %1275 = vmatprep.subr.mxu0 0.0
        %1276 = vmatpush1.xpose.msra.mxu0 %v1241
        %1277 = vmatprep.subr.mxu0 0.0
        %1278 = vmatpush2.xpose.msra.mxu0 0.0
        %1279 = vmatprep.subr.mxu0 0.0
        %1280 = vmatpush2.xpose.msra.mxu0 0.0
        %1281 = vmatprep.subr.mxu0 0.0
        %1282 = vmatpush2.xpose.msra.mxu0 0.0
        %1283 = vmatprep.subr.mxu0 0.0
        %1284 = vmatpush2.xpose.msra.mxu0 0.0
        %1285 = vmatprep.subr.mxu0 0.0
        %1286 = vmatpush2.xpose.msra.mxu0 0.0
        %1287 = vmatprep.subr.mxu0 0.0
        %1288 = vmatpush2.xpose.msra.mxu0 0.0
        %1289 = vmatprep.subr.mxu0 0.0
        %1290 = vmatpush2.xpose.msra.mxu0 0.0
        %1291 = vmatprep.subr.mxu0 0.0
        %1292 = vmatpush2.xpose.msra.mxu0 0.0
        %1293 = vmatprep.subr.mxu0 0.0
        %1294 = vmatpush2.xpose.msra.mxu0 0.0
        %1295 = vmatprep.subr.mxu0 0.0
        %1296 = vmatpush2.xpose.msra.mxu0 0.0
        %1297 = vmatprep.subr.mxu0 0.0
        %1298 = vmatpush2.xpose.msra.mxu0 0.0
        %1299 = vmatprep.subr.mxu0 0.0
        %1300 = vmatpush2.xpose.msra.mxu0 0.0
        %1301 = vmatprep.subr.mxu0 0.0
        %1302 = vmatpush2.xpose.msra.mxu0 0.0
        %1303 = vmatprep.subr.mxu0 0.0
        %1304 = vmatpush2.xpose.msra.mxu0 0.0
        %1305 = vmatprep.subr.mxu0 0.0
        %1306 = vmatpush2.xpose.msra.mxu0 0.0
        %1307 = vmatprep.subr.mxu0 0.0
        %1308 = vmatpush2.xpose.msra.mxu0 0.0
        %1309 = vmatprep.mubr.f32.mxu0 0.0
        %1310 = vmatmul.mubr.f32.gmra.mxu0 %v1237
        %v1311 = vpop.f32.mrf.mxu0
        %v1312 = vadd.f32 0.0, %v1311
        %v1313 = vpop.f32.mrf.mxu0
        %1314 = vmatprep.mubr.f32.mxu0 0.0
        %1315 = vmatmul.mubr.f32.gmra.mxu0 %v1239
        %v1316 = vpop.f32.mrf.mxu0
        %v1317 = vadd.f32 0.0, %v1316
        %v1318 = vpop.f32.mrf.mxu0
        %1319 = vdwg.mxu0
        %v1320 = vmul.f32 %v1312, 0.25
        %v1321 = vmul.f32 %v1317, 0.25
        %v1322 = vsel %vm912, -1e+09, %v1320
        %v1323 = vsel %vm912, -1e+09, %v1321
        %v1324 = vsel %vm816, %v1322, -inf
        %1325 = vmax.xlane.f32.xlu0 %v1324
        %v1326 = vpop.xlane.xlu0 %1325
        %v1327 = vsel %vm816, %v1323, -inf
        %1328 = vmax.xlane.f32.xlu0 %v1327
        %v1329 = vpop.xlane.xlu0 %1328
        %v1330 = vsub.f32 %v1322, %v1326
        %v1331 = vsub.f32 %v1323, %v1329
        %v1332 = vmul.f32 %v1330, 1.442695
        %v1333 = vpow.pop %v1332
        %v1334 = vmul.f32 %v1331, 1.442695
        %v1335 = vpow.pop %v1334
        %v1336 = vsel %vm816, %v1333, 0.0
        %1337 = vadd.xlane.f32.xlu0 %v1336
        %v1338 = vpop.xlane.xlu0 %1337
        %v1339 = vsel %vm816, %v1335, 0.0
        %1340 = vadd.xlane.f32.xlu0 %v1339
        %v1341 = vpop.xlane.xlu0 %1340
        %v1342 = vrcp.pop %v1338
        %v1343 = vrcp.pop %v1341
        %v1344 = vmul.f32 %v1333, %v1342
        %v1345 = vmul.f32 %v1335, %v1343
        %s1346 = scalar_lea.vmem %s592, 32 [#allocation12]
        %1347 = vst.msk [vmem:[%s1346] sm:$0xff] %vm816, %v1344
        %1348 = vst.msk [vmem:[%s1346 + $0x8] sm:$0xff] %vm816, %v1345
        %1349 = vrot.lane.b32.xlu0 %v808, 96
        %v1350 = vpop.permute.xlu0 %1349
        %1351 = vrot.lane.b32.xlu0 %v813, 96
        %v1352 = vpop.permute.xlu0 %1351
        %v1356 = vsel %vm816, %v1344, 0
        %v1359 = vsel %vm816, %v1345, 0
        %1361 = vmatprep.subr.mxu0 0.0
        %1362 = vmatpush1.msra.mxu0 0.0
        %1363 = vmatprep.subr.mxu0 0.0
        %1364 = vmatpush1.msra.mxu0 0.0
        %1365 = vmatprep.subr.mxu0 0.0
        %1366 = vmatpush1.msra.mxu0 0.0
        %1367 = vmatprep.subr.mxu0 0.0
        %1368 = vmatpush1.msra.mxu0 0.0
        %1369 = vmatprep.subr.mxu0 0.0
        %1370 = vmatpush1.msra.mxu0 0.0
        %1371 = vmatprep.subr.mxu0 0.0
        %1372 = vmatpush1.msra.mxu0 0.0
        %1373 = vmatprep.subr.mxu0 0.0
        %1374 = vmatpush1.msra.mxu0 0.0
        %1375 = vmatprep.subr.mxu0 0.0
        %1376 = vmatpush1.msra.mxu0 0.0
        %1377 = vmatprep.subr.mxu0 0.0
        %1378 = vmatpush1.msra.mxu0 0.0
        %1379 = vmatprep.subr.mxu0 0.0
        %1380 = vmatpush1.msra.mxu0 0.0
        %1381 = vmatprep.subr.mxu0 0.0
        %1382 = vmatpush1.msra.mxu0 0.0
        %1383 = vmatprep.subr.mxu0 0.0
        %1384 = vmatpush1.msra.mxu0 0.0
        %1385 = vmatprep.subr.mxu0 0.0
        %1386 = vmatpush1.msra.mxu0 0.0
        %1387 = vmatprep.subr.mxu0 0.0
        %1388 = vmatpush1.msra.mxu0 0.0
        %1389 = vmatprep.subr.mxu0 0.0
        %1390 = vmatpush1.msra.mxu0 %v1352
        %1391 = vmatprep.subr.mxu0 0.0
        %1392 = vmatpush1.msra.mxu0 %v1350
        %1393 = vmatprep.subr.mxu0 0.0
        %1394 = vmatpush2.msra.mxu0 0.0
        %1395 = vmatprep.subr.mxu0 0.0
        %1396 = vmatpush2.msra.mxu0 0.0
        %1397 = vmatprep.subr.mxu0 0.0
        %1398 = vmatpush2.msra.mxu0 0.0
        %1399 = vmatprep.subr.mxu0 0.0
        %1400 = vmatpush2.msra.mxu0 0.0
        %1401 = vmatprep.subr.mxu0 0.0
        %1402 = vmatpush2.msra.mxu0 0.0
        %1403 = vmatprep.subr.mxu0 0.0
        %1404 = vmatpush2.msra.mxu0 0.0
        %1405 = vmatprep.subr.mxu0 0.0
        %1406 = vmatpush2.msra.mxu0 0.0
        %1407 = vmatprep.subr.mxu0 0.0
        %1408 = vmatpush2.msra.mxu0 0.0
        %1409 = vmatprep.subr.mxu0 0.0
        %1410 = vmatpush2.msra.mxu0 0.0
        %1411 = vmatprep.subr.mxu0 0.0
        %1412 = vmatpush2.msra.mxu0 0.0
        %1413 = vmatprep.subr.mxu0 0.0
        %1414 = vmatpush2.msra.mxu0 0.0
        %1415 = vmatprep.subr.mxu0 0.0
        %1416 = vmatpush2.msra.mxu0 0.0
        %1417 = vmatprep.subr.mxu0 0.0
        %1418 = vmatpush2.msra.mxu0 0.0
        %1419 = vmatprep.subr.mxu0 0.0
        %1420 = vmatpush2.msra.mxu0 0.0
        %1421 = vmatprep.subr.mxu0 0.0
        %1422 = vmatpush2.msra.mxu0 0.0
        %1423 = vmatprep.subr.mxu0 0.0
        %1424 = vmatpush2.msra.mxu0 0.0
        %1425 = vmatprep.mubr.f32.mxu0 0.0
        %1426 = vmatmul.mubr.f32.gmra.mxu0 %v1356
        %v1427 = vpop.f32.mrf.mxu0
        %v1428 = vadd.f32 0.0, %v1427
        %v1429 = vpop.f32.mrf.mxu0
        %1430 = vmatprep.mubr.f32.mxu0 0.0
        %1431 = vmatmul.mubr.f32.gmra.mxu0 %v1359
        %v1432 = vpop.f32.mrf.mxu0
        %v1433 = vadd.f32 0.0, %v1432
        %v1434 = vpop.f32.mrf.mxu0
        %1435 = vdwg.mxu0
        %1436 = vrot.lane.b32.xlu0 %v731, 80
        %v1437 = vpop.permute.xlu0 %1436
        %1438 = vrot.lane.b32.xlu0 %v737, 80
        %v1439 = vpop.permute.xlu0 %1438
        %1440 = vrot.lane.b32.xlu0 %v733, 80
        %v1441 = vpop.permute.xlu0 %1440
        %1442 = vrot.lane.b32.xlu0 %v739, 80
        %v1443 = vpop.permute.xlu0 %1442
        %v1444 = vsel %vm816, %v1437, 0
        %v1446 = vsel %vm816, %v1439, 0
        %v1448 = vsel %vm816, %v1441, 0
        %v1450 = vsel %vm816, %v1443, 0
        %1452 = vmatprep.subr.mxu0 0.0
        %1453 = vmatpush1.xpose.msra.mxu0 0.0
        %1454 = vmatprep.subr.mxu0 0.0
        %1455 = vmatpush1.xpose.msra.mxu0 0.0
        %1456 = vmatprep.subr.mxu0 0.0
        %1457 = vmatpush1.xpose.msra.mxu0 0.0
        %1458 = vmatprep.subr.mxu0 0.0
        %1459 = vmatpush1.xpose.msra.mxu0 0.0
        %1460 = vmatprep.subr.mxu0 0.0
        %1461 = vmatpush1.xpose.msra.mxu0 0.0
        %1462 = vmatprep.subr.mxu0 0.0
        %1463 = vmatpush1.xpose.msra.mxu0 0.0
        %1464 = vmatprep.subr.mxu0 0.0
        %1465 = vmatpush1.xpose.msra.mxu0 0.0
        %1466 = vmatprep.subr.mxu0 0.0
        %1467 = vmatpush1.xpose.msra.mxu0 0.0
        %1468 = vmatprep.subr.mxu0 0.0
        %1469 = vmatpush1.xpose.msra.mxu0 0.0
        %1470 = vmatprep.subr.mxu0 0.0
        %1471 = vmatpush1.xpose.msra.mxu0 0.0
        %1472 = vmatprep.subr.mxu0 0.0
        %1473 = vmatpush1.xpose.msra.mxu0 0.0
        %1474 = vmatprep.subr.mxu0 0.0
        %1475 = vmatpush1.xpose.msra.mxu0 0.0
        %1476 = vmatprep.subr.mxu0 0.0
        %1477 = vmatpush1.xpose.msra.mxu0 0.0
        %1478 = vmatprep.subr.mxu0 0.0
        %1479 = vmatpush1.xpose.msra.mxu0 0.0
        %1480 = vmatprep.subr.mxu0 0.0
        %1481 = vmatpush1.xpose.msra.mxu0 %v1450
        %1482 = vmatprep.subr.mxu0 0.0
        %1483 = vmatpush1.xpose.msra.mxu0 %v1448
        %1484 = vmatprep.subr.mxu0 0.0
        %1485 = vmatpush2.xpose.msra.mxu0 0.0
        %1486 = vmatprep.subr.mxu0 0.0
        %1487 = vmatpush2.xpose.msra.mxu0 0.0
        %1488 = vmatprep.subr.mxu0 0.0
        %1489 = vmatpush2.xpose.msra.mxu0 0.0
        %1490 = vmatprep.subr.mxu0 0.0
        %1491 = vmatpush2.xpose.msra.mxu0 0.0
        %1492 = vmatprep.subr.mxu0 0.0
        %1493 = vmatpush2.xpose.msra.mxu0 0.0
        %1494 = vmatprep.subr.mxu0 0.0
        %1495 = vmatpush2.xpose.msra.mxu0 0.0
        %1496 = vmatprep.subr.mxu0 0.0
        %1497 = vmatpush2.xpose.msra.mxu0 0.0
        %1498 = vmatprep.subr.mxu0 0.0
        %1499 = vmatpush2.xpose.msra.mxu0 0.0
        %1500 = vmatprep.subr.mxu0 0.0
        %1501 = vmatpush2.xpose.msra.mxu0 0.0
        %1502 = vmatprep.subr.mxu0 0.0
        %1503 = vmatpush2.xpose.msra.mxu0 0.0
        %1504 = vmatprep.subr.mxu0 0.0
        %1505 = vmatpush2.xpose.msra.mxu0 0.0
        %1506 = vmatprep.subr.mxu0 0.0
        %1507 = vmatpush2.xpose.msra.mxu0 0.0
        %1508 = vmatprep.subr.mxu0 0.0
        %1509 = vmatpush2.xpose.msra.mxu0 0.0
        %1510 = vmatprep.subr.mxu0 0.0
        %1511 = vmatpush2.xpose.msra.mxu0 0.0
        %1512 = vmatprep.subr.mxu0 0.0
        %1513 = vmatpush2.xpose.msra.mxu0 0.0
        %1514 = vmatprep.subr.mxu0 0.0
        %1515 = vmatpush2.xpose.msra.mxu0 0.0
        %1516 = vmatprep.mubr.f32.mxu0 0.0
        %1517 = vmatmul.mubr.f32.gmra.mxu0 %v1444
        %v1518 = vpop.f32.mrf.mxu0
        %v1519 = vadd.f32 0.0, %v1518
        %v1520 = vpop.f32.mrf.mxu0
        %1521 = vmatprep.mubr.f32.mxu0 0.0
        %1522 = vmatmul.mubr.f32.gmra.mxu0 %v1446
        %v1523 = vpop.f32.mrf.mxu0
        %v1524 = vadd.f32 0.0, %v1523
        %v1525 = vpop.f32.mrf.mxu0
        %1526 = vdwg.mxu0
        %v1527 = vmul.f32 %v1519, 0.25
        %v1528 = vmul.f32 %v1524, 0.25
        %v1529 = vsel %vm912, -1e+09, %v1527
        %v1530 = vsel %vm912, -1e+09, %v1528
        %v1531 = vsel %vm816, %v1529, -inf
        %1532 = vmax.xlane.f32.xlu0 %v1531
        %v1533 = vpop.xlane.xlu0 %1532
        %v1534 = vsel %vm816, %v1530, -inf
        %1535 = vmax.xlane.f32.xlu0 %v1534
        %v1536 = vpop.xlane.xlu0 %1535
        %v1537 = vsub.f32 %v1529, %v1533
        %v1538 = vsub.f32 %v1530, %v1536
        %v1539 = vmul.f32 %v1537, 1.442695
        %v1540 = vpow.pop %v1539
        %v1541 = vmul.f32 %v1538, 1.442695
        %v1542 = vpow.pop %v1541
        %v1543 = vsel %vm816, %v1540, 0.0
        %1544 = vadd.xlane.f32.xlu0 %v1543
        %v1545 = vpop.xlane.xlu0 %1544
        %v1546 = vsel %vm816, %v1542, 0.0
        %1547 = vadd.xlane.f32.xlu0 %v1546
        %v1548 = vpop.xlane.xlu0 %1547
        %v1549 = vrcp.pop %v1545
        %v1550 = vrcp.pop %v1548
        %v1551 = vmul.f32 %v1540, %v1549
        %v1552 = vmul.f32 %v1542, %v1550
        %s1553 = scalar_lea.vmem %s592, 48 [#allocation12]
        %1554 = vst.msk [vmem:[%s1553] sm:$0xff] %vm816, %v1551
        %1555 = vst.msk [vmem:[%s1553 + $0x8] sm:$0xff] %vm816, %v1552
        %1556 = vrot.lane.b32.xlu0 %v808, 80
        %v1557 = vpop.permute.xlu0 %1556
        %1558 = vrot.lane.b32.xlu0 %v813, 80
        %v1559 = vpop.permute.xlu0 %1558
        %v1563 = vsel %vm816, %v1551, 0
        %v1566 = vsel %vm816, %v1552, 0
        %1568 = vmatprep.subr.mxu0 0.0
        %1569 = vmatpush1.msra.mxu0 0.0
        %1570 = vmatprep.subr.mxu0 0.0
        %1571 = vmatpush1.msra.mxu0 0.0
        %1572 = vmatprep.subr.mxu0 0.0
        %1573 = vmatpush1.msra.mxu0 0.0
        %1574 = vmatprep.subr.mxu0 0.0
        %1575 = vmatpush1.msra.mxu0 0.0
        %1576 = vmatprep.subr.mxu0 0.0
        %1577 = vmatpush1.msra.mxu0 0.0
        %1578 = vmatprep.subr.mxu0 0.0
        %1579 = vmatpush1.msra.mxu0 0.0
        %1580 = vmatprep.subr.mxu0 0.0
        %1581 = vmatpush1.msra.mxu0 0.0
        %1582 = vmatprep.subr.mxu0 0.0
        %1583 = vmatpush1.msra.mxu0 0.0
        %1584 = vmatprep.subr.mxu0 0.0
        %1585 = vmatpush1.msra.mxu0 0.0
        %1586 = vmatprep.subr.mxu0 0.0
        %1587 = vmatpush1.msra.mxu0 0.0
        %1588 = vmatprep.subr.mxu0 0.0
        %1589 = vmatpush1.msra.mxu0 0.0
        %1590 = vmatprep.subr.mxu0 0.0
        %1591 = vmatpush1.msra.mxu0 0.0
        %1592 = vmatprep.subr.mxu0 0.0
        %1593 = vmatpush1.msra.mxu0 0.0
        %1594 = vmatprep.subr.mxu0 0.0
        %1595 = vmatpush1.msra.mxu0 0.0
        %1596 = vmatprep.subr.mxu0 0.0
        %1597 = vmatpush1.msra.mxu0 %v1559
        %1598 = vmatprep.subr.mxu0 0.0
        %1599 = vmatpush1.msra.mxu0 %v1557
        %1600 = vmatprep.subr.mxu0 0.0
        %1601 = vmatpush2.msra.mxu0 0.0
        %1602 = vmatprep.subr.mxu0 0.0
        %1603 = vmatpush2.msra.mxu0 0.0
        %1604 = vmatprep.subr.mxu0 0.0
        %1605 = vmatpush2.msra.mxu0 0.0
        %1606 = vmatprep.subr.mxu0 0.0
        %1607 = vmatpush2.msra.mxu0 0.0
        %1608 = vmatprep.subr.mxu0 0.0
        %1609 = vmatpush2.msra.mxu0 0.0
        %1610 = vmatprep.subr.mxu0 0.0
        %1611 = vmatpush2.msra.mxu0 0.0
        %1612 = vmatprep.subr.mxu0 0.0
        %1613 = vmatpush2.msra.mxu0 0.0
        %1614 = vmatprep.subr.mxu0 0.0
        %1615 = vmatpush2.msra.mxu0 0.0
        %1616 = vmatprep.subr.mxu0 0.0
        %1617 = vmatpush2.msra.mxu0 0.0
        %1618 = vmatprep.subr.mxu0 0.0
        %1619 = vmatpush2.msra.mxu0 0.0
        %1620 = vmatprep.subr.mxu0 0.0
        %1621 = vmatpush2.msra.mxu0 0.0
        %1622 = vmatprep.subr.mxu0 0.0
        %1623 = vmatpush2.msra.mxu0 0.0
        %1624 = vmatprep.subr.mxu0 0.0
        %1625 = vmatpush2.msra.mxu0 0.0
        %1626 = vmatprep.subr.mxu0 0.0
        %1627 = vmatpush2.msra.mxu0 0.0
        %1628 = vmatprep.subr.mxu0 0.0
        %1629 = vmatpush2.msra.mxu0 0.0
        %1630 = vmatprep.subr.mxu0 0.0
        %1631 = vmatpush2.msra.mxu0 0.0
        %1632 = vmatprep.mubr.f32.mxu0 0.0
        %1633 = vmatmul.mubr.f32.gmra.mxu0 %v1563
        %v1634 = vpop.f32.mrf.mxu0
        %v1635 = vadd.f32 0.0, %v1634
        %v1636 = vpop.f32.mrf.mxu0
        %1637 = vmatprep.mubr.f32.mxu0 0.0
        %1638 = vmatmul.mubr.f32.gmra.mxu0 %v1566
        %v1639 = vpop.f32.mrf.mxu0
        %v1640 = vadd.f32 0.0, %v1639
        %v1641 = vpop.f32.mrf.mxu0
        %1642 = vdwg.mxu0
        %1643 = vrot.lane.b32.xlu0 %v731, 64
        %v1644 = vpop.permute.xlu0 %1643
        %1645 = vrot.lane.b32.xlu0 %v737, 64
        %v1646 = vpop.permute.xlu0 %1645
        %1647 = vrot.lane.b32.xlu0 %v733, 64
        %v1648 = vpop.permute.xlu0 %1647
        %1649 = vrot.lane.b32.xlu0 %v739, 64
        %v1650 = vpop.permute.xlu0 %1649
        %v1651 = vsel %vm816, %v1644, 0
        %v1653 = vsel %vm816, %v1646, 0
        %v1655 = vsel %vm816, %v1648, 0
        %v1657 = vsel %vm816, %v1650, 0
        %1659 = vmatprep.subr.mxu0 0.0
        %1660 = vmatpush1.xpose.msra.mxu0 0.0
        %1661 = vmatprep.subr.mxu0 0.0
        %1662 = vmatpush1.xpose.msra.mxu0 0.0
        %1663 = vmatprep.subr.mxu0 0.0
        %1664 = vmatpush1.xpose.msra.mxu0 0.0
        %1665 = vmatprep.subr.mxu0 0.0
        %1666 = vmatpush1.xpose.msra.mxu0 0.0
        %1667 = vmatprep.subr.mxu0 0.0
        %1668 = vmatpush1.xpose.msra.mxu0 0.0
        %1669 = vmatprep.subr.mxu0 0.0
        %1670 = vmatpush1.xpose.msra.mxu0 0.0
        %1671 = vmatprep.subr.mxu0 0.0
        %1672 = vmatpush1.xpose.msra.mxu0 0.0
        %1673 = vmatprep.subr.mxu0 0.0
        %1674 = vmatpush1.xpose.msra.mxu0 0.0
        %1675 = vmatprep.subr.mxu0 0.0
        %1676 = vmatpush1.xpose.msra.mxu0 0.0
        %1677 = vmatprep.subr.mxu0 0.0
        %1678 = vmatpush1.xpose.msra.mxu0 0.0
        %1679 = vmatprep.subr.mxu0 0.0
        %1680 = vmatpush1.xpose.msra.mxu0 0.0
        %1681 = vmatprep.subr.mxu0 0.0
        %1682 = vmatpush1.xpose.msra.mxu0 0.0
        %1683 = vmatprep.subr.mxu0 0.0
        %1684 = vmatpush1.xpose.msra.mxu0 0.0
        %1685 = vmatprep.subr.mxu0 0.0
        %1686 = vmatpush1.xpose.msra.mxu0 0.0
        %1687 = vmatprep.subr.mxu0 0.0
        %1688 = vmatpush1.xpose.msra.mxu0 %v1657
        %1689 = vmatprep.subr.mxu0 0.0
        %1690 = vmatpush1.xpose.msra.mxu0 %v1655
        %1691 = vmatprep.subr.mxu0 0.0
        %1692 = vmatpush2.xpose.msra.mxu0 0.0
        %1693 = vmatprep.subr.mxu0 0.0
        %1694 = vmatpush2.xpose.msra.mxu0 0.0
        %1695 = vmatprep.subr.mxu0 0.0
        %1696 = vmatpush2.xpose.msra.mxu0 0.0
        %1697 = vmatprep.subr.mxu0 0.0
        %1698 = vmatpush2.xpose.msra.mxu0 0.0
        %1699 = vmatprep.subr.mxu0 0.0
        %1700 = vmatpush2.xpose.msra.mxu0 0.0
        %1701 = vmatprep.subr.mxu0 0.0
        %1702 = vmatpush2.xpose.msra.mxu0 0.0
        %1703 = vmatprep.subr.mxu0 0.0
        %1704 = vmatpush2.xpose.msra.mxu0 0.0
        %1705 = vmatprep.subr.mxu0 0.0
        %1706 = vmatpush2.xpose.msra.mxu0 0.0
        %1707 = vmatprep.subr.mxu0 0.0
        %1708 = vmatpush2.xpose.msra.mxu0 0.0
        %1709 = vmatprep.subr.mxu0 0.0
        %1710 = vmatpush2.xpose.msra.mxu0 0.0
        %1711 = vmatprep.subr.mxu0 0.0
        %1712 = vmatpush2.xpose.msra.mxu0 0.0
        %1713 = vmatprep.subr.mxu0 0.0
        %1714 = vmatpush2.xpose.msra.mxu0 0.0
        %1715 = vmatprep.subr.mxu0 0.0
        %1716 = vmatpush2.xpose.msra.mxu0 0.0
        %1717 = vmatprep.subr.mxu0 0.0
        %1718 = vmatpush2.xpose.msra.mxu0 0.0
        %1719 = vmatprep.subr.mxu0 0.0
        %1720 = vmatpush2.xpose.msra.mxu0 0.0
        %1721 = vmatprep.subr.mxu0 0.0
        %1722 = vmatpush2.xpose.msra.mxu0 0.0
        %1723 = vmatprep.mubr.f32.mxu0 0.0
        %1724 = vmatmul.mubr.f32.gmra.mxu0 %v1651
        %v1725 = vpop.f32.mrf.mxu0
        %v1726 = vadd.f32 0.0, %v1725
        %v1727 = vpop.f32.mrf.mxu0
        %1728 = vmatprep.mubr.f32.mxu0 0.0
        %1729 = vmatmul.mubr.f32.gmra.mxu0 %v1653
        %v1730 = vpop.f32.mrf.mxu0
        %v1731 = vadd.f32 0.0, %v1730
        %v1732 = vpop.f32.mrf.mxu0
        %1733 = vdwg.mxu0
        %v1734 = vmul.f32 %v1726, 0.25
        %v1735 = vmul.f32 %v1731, 0.25
        %v1736 = vsel %vm912, -1e+09, %v1734
        %v1737 = vsel %vm912, -1e+09, %v1735
        %v1738 = vsel %vm816, %v1736, -inf
        %1739 = vmax.xlane.f32.xlu0 %v1738
        %v1740 = vpop.xlane.xlu0 %1739
        %v1741 = vsel %vm816, %v1737, -inf
        %1742 = vmax.xlane.f32.xlu0 %v1741
        %v1743 = vpop.xlane.xlu0 %1742
        %v1744 = vsub.f32 %v1736, %v1740
        %v1745 = vsub.f32 %v1737, %v1743
        %v1746 = vmul.f32 %v1744, 1.442695
        %v1747 = vpow.pop %v1746
        %v1748 = vmul.f32 %v1745, 1.442695
        %v1749 = vpow.pop %v1748
        %v1750 = vsel %vm816, %v1747, 0.0
        %1751 = vadd.xlane.f32.xlu0 %v1750
        %v1752 = vpop.xlane.xlu0 %1751
        %v1753 = vsel %vm816, %v1749, 0.0
        %1754 = vadd.xlane.f32.xlu0 %v1753
        %v1755 = vpop.xlane.xlu0 %1754
        %v1756 = vrcp.pop %v1752
        %v1757 = vrcp.pop %v1755
        %v1758 = vmul.f32 %v1747, %v1756
        %v1759 = vmul.f32 %v1749, %v1757
        %s1760 = scalar_lea.vmem %s592, 64 [#allocation12]
        %1761 = vst.msk [vmem:[%s1760] sm:$0xff] %vm816, %v1758
        %1762 = vst.msk [vmem:[%s1760 + $0x8] sm:$0xff] %vm816, %v1759
        %1763 = vrot.lane.b32.xlu0 %v808, 64
        %v1764 = vpop.permute.xlu0 %1763
        %1765 = vrot.lane.b32.xlu0 %v813, 64
        %v1766 = vpop.permute.xlu0 %1765
        %v1770 = vsel %vm816, %v1758, 0
        %v1773 = vsel %vm816, %v1759, 0
        %1775 = vmatprep.subr.mxu0 0.0
        %1776 = vmatpush1.msra.mxu0 0.0
        %1777 = vmatprep.subr.mxu0 0.0
        %1778 = vmatpush1.msra.mxu0 0.0
        %1779 = vmatprep.subr.mxu0 0.0
        %1780 = vmatpush1.msra.mxu0 0.0
        %1781 = vmatprep.subr.mxu0 0.0
        %1782 = vmatpush1.msra.mxu0 0.0
        %1783 = vmatprep.subr.mxu0 0.0
        %1784 = vmatpush1.msra.mxu0 0.0
        %1785 = vmatprep.subr.mxu0 0.0
        %1786 = vmatpush1.msra.mxu0 0.0
        %1787 = vmatprep.subr.mxu0 0.0
        %1788 = vmatpush1.msra.mxu0 0.0
        %1789 = vmatprep.subr.mxu0 0.0
        %1790 = vmatpush1.msra.mxu0 0.0
        %1791 = vmatprep.subr.mxu0 0.0
        %1792 = vmatpush1.msra.mxu0 0.0
        %1793 = vmatprep.subr.mxu0 0.0
        %1794 = vmatpush1.msra.mxu0 0.0
        %1795 = vmatprep.subr.mxu0 0.0
        %1796 = vmatpush1.msra.mxu0 0.0
        %1797 = vmatprep.subr.mxu0 0.0
        %1798 = vmatpush1.msra.mxu0 0.0
        %1799 = vmatprep.subr.mxu0 0.0
        %1800 = vmatpush1.msra.mxu0 0.0
        %1801 = vmatprep.subr.mxu0 0.0
        %1802 = vmatpush1.msra.mxu0 0.0
        %1803 = vmatprep.subr.mxu0 0.0
        %1804 = vmatpush1.msra.mxu0 %v1766
        %1805 = vmatprep.subr.mxu0 0.0
        %1806 = vmatpush1.msra.mxu0 %v1764
        %1807 = vmatprep.subr.mxu0 0.0
        %1808 = vmatpush2.msra.mxu0 0.0
        %1809 = vmatprep.subr.mxu0 0.0
        %1810 = vmatpush2.msra.mxu0 0.0
        %1811 = vmatprep.subr.mxu0 0.0
        %1812 = vmatpush2.msra.mxu0 0.0
        %1813 = vmatprep.subr.mxu0 0.0
        %1814 = vmatpush2.msra.mxu0 0.0
        %1815 = vmatprep.subr.mxu0 0.0
        %1816 = vmatpush2.msra.mxu0 0.0
        %1817 = vmatprep.subr.mxu0 0.0
        %1818 = vmatpush2.msra.mxu0 0.0
        %1819 = vmatprep.subr.mxu0 0.0
        %1820 = vmatpush2.msra.mxu0 0.0
        %1821 = vmatprep.subr.mxu0 0.0
        %1822 = vmatpush2.msra.mxu0 0.0
        %1823 = vmatprep.subr.mxu0 0.0
        %1824 = vmatpush2.msra.mxu0 0.0
        %1825 = vmatprep.subr.mxu0 0.0
        %1826 = vmatpush2.msra.mxu0 0.0
        %1827 = vmatprep.subr.mxu0 0.0
        %1828 = vmatpush2.msra.mxu0 0.0
        %1829 = vmatprep.subr.mxu0 0.0
        %1830 = vmatpush2.msra.mxu0 0.0
        %1831 = vmatprep.subr.mxu0 0.0
        %1832 = vmatpush2.msra.mxu0 0.0
        %1833 = vmatprep.subr.mxu0 0.0
        %1834 = vmatpush2.msra.mxu0 0.0
        %1835 = vmatprep.subr.mxu0 0.0
        %1836 = vmatpush2.msra.mxu0 0.0
        %1837 = vmatprep.subr.mxu0 0.0
        %1838 = vmatpush2.msra.mxu0 0.0
        %1839 = vmatprep.mubr.f32.mxu0 0.0
        %1840 = vmatmul.mubr.f32.gmra.mxu0 %v1770
        %v1841 = vpop.f32.mrf.mxu0
        %v1842 = vadd.f32 0.0, %v1841
        %v1843 = vpop.f32.mrf.mxu0
        %1844 = vmatprep.mubr.f32.mxu0 0.0
        %1845 = vmatmul.mubr.f32.gmra.mxu0 %v1773
        %v1846 = vpop.f32.mrf.mxu0
        %v1847 = vadd.f32 0.0, %v1846
        %v1848 = vpop.f32.mrf.mxu0
        %1849 = vdwg.mxu0
        %1850 = vrot.lane.b32.xlu0 %v731, 48
        %v1851 = vpop.permute.xlu0 %1850
        %1852 = vrot.lane.b32.xlu0 %v737, 48
        %v1853 = vpop.permute.xlu0 %1852
        %1854 = vrot.lane.b32.xlu0 %v733, 48
        %v1855 = vpop.permute.xlu0 %1854
        %1856 = vrot.lane.b32.xlu0 %v739, 48
        %v1857 = vpop.permute.xlu0 %1856
        %v1858 = vsel %vm816, %v1851, 0
        %v1860 = vsel %vm816, %v1853, 0
        %v1862 = vsel %vm816, %v1855, 0
        %v1864 = vsel %vm816, %v1857, 0
        %1866 = vmatprep.subr.mxu0 0.0
        %1867 = vmatpush1.xpose.msra.mxu0 0.0
        %1868 = vmatprep.subr.mxu0 0.0
        %1869 = vmatpush1.xpose.msra.mxu0 0.0
        %1870 = vmatprep.subr.mxu0 0.0
        %1871 = vmatpush1.xpose.msra.mxu0 0.0
        %1872 = vmatprep.subr.mxu0 0.0
        %1873 = vmatpush1.xpose.msra.mxu0 0.0
        %1874 = vmatprep.subr.mxu0 0.0
        %1875 = vmatpush1.xpose.msra.mxu0 0.0
        %1876 = vmatprep.subr.mxu0 0.0
        %1877 = vmatpush1.xpose.msra.mxu0 0.0
        %1878 = vmatprep.subr.mxu0 0.0
        %1879 = vmatpush1.xpose.msra.mxu0 0.0
        %1880 = vmatprep.subr.mxu0 0.0
        %1881 = vmatpush1.xpose.msra.mxu0 0.0
        %1882 = vmatprep.subr.mxu0 0.0
        %1883 = vmatpush1.xpose.msra.mxu0 0.0
        %1884 = vmatprep.subr.mxu0 0.0
        %1885 = vmatpush1.xpose.msra.mxu0 0.0
        %1886 = vmatprep.subr.mxu0 0.0
        %1887 = vmatpush1.xpose.msra.mxu0 0.0
        %1888 = vmatprep.subr.mxu0 0.0
        %1889 = vmatpush1.xpose.msra.mxu0 0.0
        %1890 = vmatprep.subr.mxu0 0.0
        %1891 = vmatpush1.xpose.msra.mxu0 0.0
        %1892 = vmatprep.subr.mxu0 0.0
        %1893 = vmatpush1.xpose.msra.mxu0 0.0
        %1894 = vmatprep.subr.mxu0 0.0
        %1895 = vmatpush1.xpose.msra.mxu0 %v1864
        %1896 = vmatprep.subr.mxu0 0.0
        %1897 = vmatpush1.xpose.msra.mxu0 %v1862
        %1898 = vmatprep.subr.mxu0 0.0
        %1899 = vmatpush2.xpose.msra.mxu0 0.0
        %1900 = vmatprep.subr.mxu0 0.0
        %1901 = vmatpush2.xpose.msra.mxu0 0.0
        %1902 = vmatprep.subr.mxu0 0.0
        %1903 = vmatpush2.xpose.msra.mxu0 0.0
        %1904 = vmatprep.subr.mxu0 0.0
        %1905 = vmatpush2.xpose.msra.mxu0 0.0
        %1906 = vmatprep.subr.mxu0 0.0
        %1907 = vmatpush2.xpose.msra.mxu0 0.0
        %1908 = vmatprep.subr.mxu0 0.0
        %1909 = vmatpush2.xpose.msra.mxu0 0.0
        %1910 = vmatprep.subr.mxu0 0.0
        %1911 = vmatpush2.xpose.msra.mxu0 0.0
        %1912 = vmatprep.subr.mxu0 0.0
        %1913 = vmatpush2.xpose.msra.mxu0 0.0
        %1914 = vmatprep.subr.mxu0 0.0
        %1915 = vmatpush2.xpose.msra.mxu0 0.0
        %1916 = vmatprep.subr.mxu0 0.0
        %1917 = vmatpush2.xpose.msra.mxu0 0.0
        %1918 = vmatprep.subr.mxu0 0.0
        %1919 = vmatpush2.xpose.msra.mxu0 0.0
        %1920 = vmatprep.subr.mxu0 0.0
        %1921 = vmatpush2.xpose.msra.mxu0 0.0
        %1922 = vmatprep.subr.mxu0 0.0
        %1923 = vmatpush2.xpose.msra.mxu0 0.0
        %1924 = vmatprep.subr.mxu0 0.0
        %1925 = vmatpush2.xpose.msra.mxu0 0.0
        %1926 = vmatprep.subr.mxu0 0.0
        %1927 = vmatpush2.xpose.msra.mxu0 0.0
        %1928 = vmatprep.subr.mxu0 0.0
        %1929 = vmatpush2.xpose.msra.mxu0 0.0
        %1930 = vmatprep.mubr.f32.mxu0 0.0
        %1931 = vmatmul.mubr.f32.gmra.mxu0 %v1858
        %v1932 = vpop.f32.mrf.mxu0
        %v1933 = vadd.f32 0.0, %v1932
        %v1934 = vpop.f32.mrf.mxu0
        %1935 = vmatprep.mubr.f32.mxu0 0.0
        %1936 = vmatmul.mubr.f32.gmra.mxu0 %v1860
        %v1937 = vpop.f32.mrf.mxu0
        %v1938 = vadd.f32 0.0, %v1937
        %v1939 = vpop.f32.mrf.mxu0
        %1940 = vdwg.mxu0
        %v1941 = vmul.f32 %v1933, 0.25
        %v1942 = vmul.f32 %v1938, 0.25
        %v1943 = vsel %vm912, -1e+09, %v1941
        %v1944 = vsel %vm912, -1e+09, %v1942
        %v1945 = vsel %vm816, %v1943, -inf
        %1946 = vmax.xlane.f32.xlu0 %v1945
        %v1947 = vpop.xlane.xlu0 %1946
        %v1948 = vsel %vm816, %v1944, -inf
        %1949 = vmax.xlane.f32.xlu0 %v1948
        %v1950 = vpop.xlane.xlu0 %1949
        %v1951 = vsub.f32 %v1943, %v1947
        %v1952 = vsub.f32 %v1944, %v1950
        %v1953 = vmul.f32 %v1951, 1.442695
        %v1954 = vpow.pop %v1953
        %v1955 = vmul.f32 %v1952, 1.442695
        %v1956 = vpow.pop %v1955
        %v1957 = vsel %vm816, %v1954, 0.0
        %1958 = vadd.xlane.f32.xlu0 %v1957
        %v1959 = vpop.xlane.xlu0 %1958
        %v1960 = vsel %vm816, %v1956, 0.0
        %1961 = vadd.xlane.f32.xlu0 %v1960
        %v1962 = vpop.xlane.xlu0 %1961
        %v1963 = vrcp.pop %v1959
        %v1964 = vrcp.pop %v1962
        %v1965 = vmul.f32 %v1954, %v1963
        %v1966 = vmul.f32 %v1956, %v1964
        %s1967 = scalar_lea.vmem %s592, 80 [#allocation12]
        %1968 = vst.msk [vmem:[%s1967] sm:$0xff] %vm816, %v1965
        %1969 = vst.msk [vmem:[%s1967 + $0x8] sm:$0xff] %vm816, %v1966
        %1970 = vrot.lane.b32.xlu0 %v808, 48
        %v1971 = vpop.permute.xlu0 %1970
        %1972 = vrot.lane.b32.xlu0 %v813, 48
        %v1973 = vpop.permute.xlu0 %1972
        %v1977 = vsel %vm816, %v1965, 0
        %v1980 = vsel %vm816, %v1966, 0
        %1982 = vmatprep.subr.mxu0 0.0
        %1983 = vmatpush1.msra.mxu0 0.0
        %1984 = vmatprep.subr.mxu0 0.0
        %1985 = vmatpush1.msra.mxu0 0.0
        %1986 = vmatprep.subr.mxu0 0.0
        %1987 = vmatpush1.msra.mxu0 0.0
        %1988 = vmatprep.subr.mxu0 0.0
        %1989 = vmatpush1.msra.mxu0 0.0
        %1990 = vmatprep.subr.mxu0 0.0
        %1991 = vmatpush1.msra.mxu0 0.0
        %1992 = vmatprep.subr.mxu0 0.0
        %1993 = vmatpush1.msra.mxu0 0.0
        %1994 = vmatprep.subr.mxu0 0.0
        %1995 = vmatpush1.msra.mxu0 0.0
        %1996 = vmatprep.subr.mxu0 0.0
        %1997 = vmatpush1.msra.mxu0 0.0
        %1998 = vmatprep.subr.mxu0 0.0
        %1999 = vmatpush1.msra.mxu0 0.0
        %2000 = vmatprep.subr.mxu0 0.0
        %2001 = vmatpush1.msra.mxu0 0.0
        %2002 = vmatprep.subr.mxu0 0.0
        %2003 = vmatpush1.msra.mxu0 0.0
        %2004 = vmatprep.subr.mxu0 0.0
        %2005 = vmatpush1.msra.mxu0 0.0
        %2006 = vmatprep.subr.mxu0 0.0
        %2007 = vmatpush1.msra.mxu0 0.0
        %2008 = vmatprep.subr.mxu0 0.0
        %2009 = vmatpush1.msra.mxu0 0.0
        %2010 = vmatprep.subr.mxu0 0.0
        %2011 = vmatpush1.msra.mxu0 %v1973
        %2012 = vmatprep.subr.mxu0 0.0
        %2013 = vmatpush1.msra.mxu0 %v1971
        %2014 = vmatprep.subr.mxu0 0.0
        %2015 = vmatpush2.msra.mxu0 0.0
        %2016 = vmatprep.subr.mxu0 0.0
        %2017 = vmatpush2.msra.mxu0 0.0
        %2018 = vmatprep.subr.mxu0 0.0
        %2019 = vmatpush2.msra.mxu0 0.0
        %2020 = vmatprep.subr.mxu0 0.0
        %2021 = vmatpush2.msra.mxu0 0.0
        %2022 = vmatprep.subr.mxu0 0.0
        %2023 = vmatpush2.msra.mxu0 0.0
        %2024 = vmatprep.subr.mxu0 0.0
        %2025 = vmatpush2.msra.mxu0 0.0
        %2026 = vmatprep.subr.mxu0 0.0
        %2027 = vmatpush2.msra.mxu0 0.0
        %2028 = vmatprep.subr.mxu0 0.0
        %2029 = vmatpush2.msra.mxu0 0.0
        %2030 = vmatprep.subr.mxu0 0.0
        %2031 = vmatpush2.msra.mxu0 0.0
        %2032 = vmatprep.subr.mxu0 0.0
        %2033 = vmatpush2.msra.mxu0 0.0
        %2034 = vmatprep.subr.mxu0 0.0
        %2035 = vmatpush2.msra.mxu0 0.0
        %2036 = vmatprep.subr.mxu0 0.0
        %2037 = vmatpush2.msra.mxu0 0.0
        %2038 = vmatprep.subr.mxu0 0.0
        %2039 = vmatpush2.msra.mxu0 0.0
        %2040 = vmatprep.subr.mxu0 0.0
        %2041 = vmatpush2.msra.mxu0 0.0
        %2042 = vmatprep.subr.mxu0 0.0
        %2043 = vmatpush2.msra.mxu0 0.0
        %2044 = vmatprep.subr.mxu0 0.0
        %2045 = vmatpush2.msra.mxu0 0.0
        %2046 = vmatprep.mubr.f32.mxu0 0.0
        %2047 = vmatmul.mubr.f32.gmra.mxu0 %v1977
        %v2048 = vpop.f32.mrf.mxu0
        %v2049 = vadd.f32 0.0, %v2048
        %v2050 = vpop.f32.mrf.mxu0
        %2051 = vmatprep.mubr.f32.mxu0 0.0
        %2052 = vmatmul.mubr.f32.gmra.mxu0 %v1980
        %v2053 = vpop.f32.mrf.mxu0
        %v2054 = vadd.f32 0.0, %v2053
        %v2055 = vpop.f32.mrf.mxu0
        %2056 = vdwg.mxu0
        %2057 = vrot.lane.b32.xlu0 %v731, 32
        %v2058 = vpop.permute.xlu0 %2057
        %2059 = vrot.lane.b32.xlu0 %v737, 32
        %v2060 = vpop.permute.xlu0 %2059
        %2061 = vrot.lane.b32.xlu0 %v733, 32
        %v2062 = vpop.permute.xlu0 %2061
        %2063 = vrot.lane.b32.xlu0 %v739, 32
        %v2064 = vpop.permute.xlu0 %2063
        %v2065 = vsel %vm816, %v2058, 0
        %v2067 = vsel %vm816, %v2060, 0
        %v2069 = vsel %vm816, %v2062, 0
        %v2071 = vsel %vm816, %v2064, 0
        %2073 = vmatprep.subr.mxu0 0.0
        %2074 = vmatpush1.xpose.msra.mxu0 0.0
        %2075 = vmatprep.subr.mxu0 0.0
        %2076 = vmatpush1.xpose.msra.mxu0 0.0
        %2077 = vmatprep.subr.mxu0 0.0
        %2078 = vmatpush1.xpose.msra.mxu0 0.0
        %2079 = vmatprep.subr.mxu0 0.0
        %2080 = vmatpush1.xpose.msra.mxu0 0.0
        %2081 = vmatprep.subr.mxu0 0.0
        %2082 = vmatpush1.xpose.msra.mxu0 0.0
        %2083 = vmatprep.subr.mxu0 0.0
        %2084 = vmatpush1.xpose.msra.mxu0 0.0
        %2085 = vmatprep.subr.mxu0 0.0
        %2086 = vmatpush1.xpose.msra.mxu0 0.0
        %2087 = vmatprep.subr.mxu0 0.0
        %2088 = vmatpush1.xpose.msra.mxu0 0.0
        %2089 = vmatprep.subr.mxu0 0.0
        %2090 = vmatpush1.xpose.msra.mxu0 0.0
        %2091 = vmatprep.subr.mxu0 0.0
        %2092 = vmatpush1.xpose.msra.mxu0 0.0
        %2093 = vmatprep.subr.mxu0 0.0
        %2094 = vmatpush1.xpose.msra.mxu0 0.0
        %2095 = vmatprep.subr.mxu0 0.0
        %2096 = vmatpush1.xpose.msra.mxu0 0.0
        %2097 = vmatprep.subr.mxu0 0.0
        %2098 = vmatpush1.xpose.msra.mxu0 0.0
        %2099 = vmatprep.subr.mxu0 0.0
        %2100 = vmatpush1.xpose.msra.mxu0 0.0
        %2101 = vmatprep.subr.mxu0 0.0
        %2102 = vmatpush1.xpose.msra.mxu0 %v2071
        %2103 = vmatprep.subr.mxu0 0.0
        %2104 = vmatpush1.xpose.msra.mxu0 %v2069
        %2105 = vmatprep.subr.mxu0 0.0
        %2106 = vmatpush2.xpose.msra.mxu0 0.0
        %2107 = vmatprep.subr.mxu0 0.0
        %2108 = vmatpush2.xpose.msra.mxu0 0.0
        %2109 = vmatprep.subr.mxu0 0.0
        %2110 = vmatpush2.xpose.msra.mxu0 0.0
        %2111 = vmatprep.subr.mxu0 0.0
        %2112 = vmatpush2.xpose.msra.mxu0 0.0
        %2113 = vmatprep.subr.mxu0 0.0
        %2114 = vmatpush2.xpose.msra.mxu0 0.0
        %2115 = vmatprep.subr.mxu0 0.0
        %2116 = vmatpush2.xpose.msra.mxu0 0.0
        %2117 = vmatprep.subr.mxu0 0.0
        %2118 = vmatpush2.xpose.msra.mxu0 0.0
        %2119 = vmatprep.subr.mxu0 0.0
        %2120 = vmatpush2.xpose.msra.mxu0 0.0
        %2121 = vmatprep.subr.mxu0 0.0
        %2122 = vmatpush2.xpose.msra.mxu0 0.0
        %2123 = vmatprep.subr.mxu0 0.0
        %2124 = vmatpush2.xpose.msra.mxu0 0.0
        %2125 = vmatprep.subr.mxu0 0.0
        %2126 = vmatpush2.xpose.msra.mxu0 0.0
        %2127 = vmatprep.subr.mxu0 0.0
        %2128 = vmatpush2.xpose.msra.mxu0 0.0
        %2129 = vmatprep.subr.mxu0 0.0
        %2130 = vmatpush2.xpose.msra.mxu0 0.0
        %2131 = vmatprep.subr.mxu0 0.0
        %2132 = vmatpush2.xpose.msra.mxu0 0.0
        %2133 = vmatprep.subr.mxu0 0.0
        %2134 = vmatpush2.xpose.msra.mxu0 0.0
        %2135 = vmatprep.subr.mxu0 0.0
        %2136 = vmatpush2.xpose.msra.mxu0 0.0
        %2137 = vmatprep.mubr.f32.mxu0 0.0
        %2138 = vmatmul.mubr.f32.gmra.mxu0 %v2065
        %v2139 = vpop.f32.mrf.mxu0
        %v2140 = vadd.f32 0.0, %v2139
        %v2141 = vpop.f32.mrf.mxu0
        %2142 = vmatprep.mubr.f32.mxu0 0.0
        %2143 = vmatmul.mubr.f32.gmra.mxu0 %v2067
        %v2144 = vpop.f32.mrf.mxu0
        %v2145 = vadd.f32 0.0, %v2144
        %v2146 = vpop.f32.mrf.mxu0
        %2147 = vdwg.mxu0
        %v2148 = vmul.f32 %v2140, 0.25
        %v2149 = vmul.f32 %v2145, 0.25
        %v2150 = vsel %vm912, -1e+09, %v2148
        %v2151 = vsel %vm912, -1e+09, %v2149
        %v2152 = vsel %vm816, %v2150, -inf
        %2153 = vmax.xlane.f32.xlu0 %v2152
        %v2154 = vpop.xlane.xlu0 %2153
        %v2155 = vsel %vm816, %v2151, -inf
        %2156 = vmax.xlane.f32.xlu0 %v2155
        %v2157 = vpop.xlane.xlu0 %2156
        %v2158 = vsub.f32 %v2150, %v2154
        %v2159 = vsub.f32 %v2151, %v2157
        %v2160 = vmul.f32 %v2158, 1.442695
        %v2161 = vpow.pop %v2160
        %v2162 = vmul.f32 %v2159, 1.442695
        %v2163 = vpow.pop %v2162
        %v2164 = vsel %vm816, %v2161, 0.0
        %2165 = vadd.xlane.f32.xlu0 %v2164
        %v2166 = vpop.xlane.xlu0 %2165
        %v2167 = vsel %vm816, %v2163, 0.0
        %2168 = vadd.xlane.f32.xlu0 %v2167
        %v2169 = vpop.xlane.xlu0 %2168
        %v2170 = vrcp.pop %v2166
        %v2171 = vrcp.pop %v2169
        %v2172 = vmul.f32 %v2161, %v2170
        %v2173 = vmul.f32 %v2163, %v2171
        %s2174 = scalar_lea.vmem %s592, 96 [#allocation12]
        %2175 = vst.msk [vmem:[%s2174] sm:$0xff] %vm816, %v2172
        %2176 = vst.msk [vmem:[%s2174 + $0x8] sm:$0xff] %vm816, %v2173
        %2177 = vrot.lane.b32.xlu0 %v808, 32
        %v2178 = vpop.permute.xlu0 %2177
        %2179 = vrot.lane.b32.xlu0 %v813, 32
        %v2180 = vpop.permute.xlu0 %2179
        %v2184 = vsel %vm816, %v2172, 0
        %v2187 = vsel %vm816, %v2173, 0
        %2189 = vmatprep.subr.mxu0 0.0
        %2190 = vmatpush1.msra.mxu0 0.0
        %2191 = vmatprep.subr.mxu0 0.0
        %2192 = vmatpush1.msra.mxu0 0.0
        %2193 = vmatprep.subr.mxu0 0.0
        %2194 = vmatpush1.msra.mxu0 0.0
        %2195 = vmatprep.subr.mxu0 0.0
        %2196 = vmatpush1.msra.mxu0 0.0
        %2197 = vmatprep.subr.mxu0 0.0
        %2198 = vmatpush1.msra.mxu0 0.0
        %2199 = vmatprep.subr.mxu0 0.0
        %2200 = vmatpush1.msra.mxu0 0.0
        %2201 = vmatprep.subr.mxu0 0.0
        %2202 = vmatpush1.msra.mxu0 0.0
        %2203 = vmatprep.subr.mxu0 0.0
        %2204 = vmatpush1.msra.mxu0 0.0
        %2205 = vmatprep.subr.mxu0 0.0
        %2206 = vmatpush1.msra.mxu0 0.0
        %2207 = vmatprep.subr.mxu0 0.0
        %2208 = vmatpush1.msra.mxu0 0.0
        %2209 = vmatprep.subr.mxu0 0.0
        %2210 = vmatpush1.msra.mxu0 0.0
        %2211 = vmatprep.subr.mxu0 0.0
        %2212 = vmatpush1.msra.mxu0 0.0
        %2213 = vmatprep.subr.mxu0 0.0
        %2214 = vmatpush1.msra.mxu0 0.0
        %2215 = vmatprep.subr.mxu0 0.0
        %2216 = vmatpush1.msra.mxu0 0.0
        %2217 = vmatprep.subr.mxu0 0.0
        %2218 = vmatpush1.msra.mxu0 %v2180
        %2219 = vmatprep.subr.mxu0 0.0
        %2220 = vmatpush1.msra.mxu0 %v2178
        %2221 = vmatprep.subr.mxu0 0.0
        %2222 = vmatpush2.msra.mxu0 0.0
        %2223 = vmatprep.subr.mxu0 0.0
        %2224 = vmatpush2.msra.mxu0 0.0
        %2225 = vmatprep.subr.mxu0 0.0
        %2226 = vmatpush2.msra.mxu0 0.0
        %2227 = vmatprep.subr.mxu0 0.0
        %2228 = vmatpush2.msra.mxu0 0.0
        %2229 = vmatprep.subr.mxu0 0.0
        %2230 = vmatpush2.msra.mxu0 0.0
        %2231 = vmatprep.subr.mxu0 0.0
        %2232 = vmatpush2.msra.mxu0 0.0
        %2233 = vmatprep.subr.mxu0 0.0
        %2234 = vmatpush2.msra.mxu0 0.0
        %2235 = vmatprep.subr.mxu0 0.0
        %2236 = vmatpush2.msra.mxu0 0.0
        %2237 = vmatprep.subr.mxu0 0.0
        %2238 = vmatpush2.msra.mxu0 0.0
        %2239 = vmatprep.subr.mxu0 0.0
        %2240 = vmatpush2.msra.mxu0 0.0
        %2241 = vmatprep.subr.mxu0 0.0
        %2242 = vmatpush2.msra.mxu0 0.0
        %2243 = vmatprep.subr.mxu0 0.0
        %2244 = vmatpush2.msra.mxu0 0.0
        %2245 = vmatprep.subr.mxu0 0.0
        %2246 = vmatpush2.msra.mxu0 0.0
        %2247 = vmatprep.subr.mxu0 0.0
        %2248 = vmatpush2.msra.mxu0 0.0
        %2249 = vmatprep.subr.mxu0 0.0
        %2250 = vmatpush2.msra.mxu0 0.0
        %2251 = vmatprep.subr.mxu0 0.0
        %2252 = vmatpush2.msra.mxu0 0.0
        %2253 = vmatprep.mubr.f32.mxu0 0.0
        %2254 = vmatmul.mubr.f32.gmra.mxu0 %v2184
        %v2255 = vpop.f32.mrf.mxu0
        %v2256 = vadd.f32 0.0, %v2255
        %v2257 = vpop.f32.mrf.mxu0
        %2258 = vmatprep.mubr.f32.mxu0 0.0
        %2259 = vmatmul.mubr.f32.gmra.mxu0 %v2187
        %v2260 = vpop.f32.mrf.mxu0
        %v2261 = vadd.f32 0.0, %v2260
        %v2262 = vpop.f32.mrf.mxu0
        %2263 = vdwg.mxu0
        %2264 = vrot.lane.b32.xlu0 %v731, 16
        %v2265 = vpop.permute.xlu0 %2264
        %2266 = vrot.lane.b32.xlu0 %v737, 16
        %v2267 = vpop.permute.xlu0 %2266
        %2268 = vrot.lane.b32.xlu0 %v733, 16
        %v2269 = vpop.permute.xlu0 %2268
        %2270 = vrot.lane.b32.xlu0 %v739, 16
        %v2271 = vpop.permute.xlu0 %2270
        %v2272 = vsel %vm816, %v2265, 0
        %v2274 = vsel %vm816, %v2267, 0
        %v2276 = vsel %vm816, %v2269, 0
        %v2278 = vsel %vm816, %v2271, 0
        %2280 = vmatprep.subr.mxu0 0.0
        %2281 = vmatpush1.xpose.msra.mxu0 0.0
        %2282 = vmatprep.subr.mxu0 0.0
        %2283 = vmatpush1.xpose.msra.mxu0 0.0
        %2284 = vmatprep.subr.mxu0 0.0
        %2285 = vmatpush1.xpose.msra.mxu0 0.0
        %2286 = vmatprep.subr.mxu0 0.0
        %2287 = vmatpush1.xpose.msra.mxu0 0.0
        %2288 = vmatprep.subr.mxu0 0.0
        %2289 = vmatpush1.xpose.msra.mxu0 0.0
        %2290 = vmatprep.subr.mxu0 0.0
        %2291 = vmatpush1.xpose.msra.mxu0 0.0
        %2292 = vmatprep.subr.mxu0 0.0
        %2293 = vmatpush1.xpose.msra.mxu0 0.0
        %2294 = vmatprep.subr.mxu0 0.0
        %2295 = vmatpush1.xpose.msra.mxu0 0.0
        %2296 = vmatprep.subr.mxu0 0.0
        %2297 = vmatpush1.xpose.msra.mxu0 0.0
        %2298 = vmatprep.subr.mxu0 0.0
        %2299 = vmatpush1.xpose.msra.mxu0 0.0
        %2300 = vmatprep.subr.mxu0 0.0
        %2301 = vmatpush1.xpose.msra.mxu0 0.0
        %2302 = vmatprep.subr.mxu0 0.0
        %2303 = vmatpush1.xpose.msra.mxu0 0.0
        %2304 = vmatprep.subr.mxu0 0.0
        %2305 = vmatpush1.xpose.msra.mxu0 0.0
        %2306 = vmatprep.subr.mxu0 0.0
        %2307 = vmatpush1.xpose.msra.mxu0 0.0
        %2308 = vmatprep.subr.mxu0 0.0
        %2309 = vmatpush1.xpose.msra.mxu0 %v2278
        %2310 = vmatprep.subr.mxu0 0.0
        %2311 = vmatpush1.xpose.msra.mxu0 %v2276
        %2312 = vmatprep.subr.mxu0 0.0
        %2313 = vmatpush2.xpose.msra.mxu0 0.0
        %2314 = vmatprep.subr.mxu0 0.0
        %2315 = vmatpush2.xpose.msra.mxu0 0.0
        %2316 = vmatprep.subr.mxu0 0.0
        %2317 = vmatpush2.xpose.msra.mxu0 0.0
        %2318 = vmatprep.subr.mxu0 0.0
        %2319 = vmatpush2.xpose.msra.mxu0 0.0
        %2320 = vmatprep.subr.mxu0 0.0
        %2321 = vmatpush2.xpose.msra.mxu0 0.0
        %2322 = vmatprep.subr.mxu0 0.0
        %2323 = vmatpush2.xpose.msra.mxu0 0.0
        %2324 = vmatprep.subr.mxu0 0.0
        %2325 = vmatpush2.xpose.msra.mxu0 0.0
        %2326 = vmatprep.subr.mxu0 0.0
        %2327 = vmatpush2.xpose.msra.mxu0 0.0
        %2328 = vmatprep.subr.mxu0 0.0
        %2329 = vmatpush2.xpose.msra.mxu0 0.0
        %2330 = vmatprep.subr.mxu0 0.0
        %2331 = vmatpush2.xpose.msra.mxu0 0.0
        %2332 = vmatprep.subr.mxu0 0.0
        %2333 = vmatpush2.xpose.msra.mxu0 0.0
        %2334 = vmatprep.subr.mxu0 0.0
        %2335 = vmatpush2.xpose.msra.mxu0 0.0
        %2336 = vmatprep.subr.mxu0 0.0
        %2337 = vmatpush2.xpose.msra.mxu0 0.0
        %2338 = vmatprep.subr.mxu0 0.0
        %2339 = vmatpush2.xpose.msra.mxu0 0.0
        %2340 = vmatprep.subr.mxu0 0.0
        %2341 = vmatpush2.xpose.msra.mxu0 0.0
        %2342 = vmatprep.subr.mxu0 0.0
        %2343 = vmatpush2.xpose.msra.mxu0 0.0
        %2344 = vmatprep.mubr.f32.mxu0 0.0
        %2345 = vmatmul.mubr.f32.gmra.mxu0 %v2272
        %v2346 = vpop.f32.mrf.mxu0
        %v2347 = vadd.f32 0.0, %v2346
        %v2348 = vpop.f32.mrf.mxu0
        %2349 = vmatprep.mubr.f32.mxu0 0.0
        %2350 = vmatmul.mubr.f32.gmra.mxu0 %v2274
        %v2351 = vpop.f32.mrf.mxu0
        %v2352 = vadd.f32 0.0, %v2351
        %v2353 = vpop.f32.mrf.mxu0
        %2354 = vdwg.mxu0
        %v2355 = vmul.f32 %v2347, 0.25
        %v2356 = vmul.f32 %v2352, 0.25
        %v2357 = vsel %vm912, -1e+09, %v2355
        %v2358 = vsel %vm912, -1e+09, %v2356
        %v2359 = vsel %vm816, %v2357, -inf
        %2360 = vmax.xlane.f32.xlu0 %v2359
        %v2361 = vpop.xlane.xlu0 %2360
        %v2362 = vsel %vm816, %v2358, -inf
        %2363 = vmax.xlane.f32.xlu0 %v2362
        %v2364 = vpop.xlane.xlu0 %2363
        %v2365 = vsub.f32 %v2357, %v2361
        %v2366 = vsub.f32 %v2358, %v2364
        %v2367 = vmul.f32 %v2365, 1.442695
        %v2368 = vpow.pop %v2367
        %v2369 = vmul.f32 %v2366, 1.442695
        %v2370 = vpow.pop %v2369
        %v2371 = vsel %vm816, %v2368, 0.0
        %2372 = vadd.xlane.f32.xlu0 %v2371
        %v2373 = vpop.xlane.xlu0 %2372
        %v2374 = vsel %vm816, %v2370, 0.0
        %2375 = vadd.xlane.f32.xlu0 %v2374
        %v2376 = vpop.xlane.xlu0 %2375
        %v2377 = vrcp.pop %v2373
        %v2378 = vrcp.pop %v2376
        %v2379 = vmul.f32 %v2368, %v2377
        %v2380 = vmul.f32 %v2370, %v2378
        %s2381 = scalar_lea.vmem %s592, 112 [#allocation12]
        %2382 = vst.msk [vmem:[%s2381] sm:$0xff] %vm816, %v2379
        %2383 = vst.msk [vmem:[%s2381 + $0x8] sm:$0xff] %vm816, %v2380
        %2384 = vrot.lane.b32.xlu0 %v808, 16
        %v2385 = vpop.permute.xlu0 %2384
        %2386 = vrot.lane.b32.xlu0 %v813, 16
        %v2387 = vpop.permute.xlu0 %2386
        %v2391 = vsel %vm816, %v2379, 0
        %v2394 = vsel %vm816, %v2380, 0
        %2396 = vmatprep.subr.mxu0 0.0
        %2397 = vmatpush1.msra.mxu0 0.0
        %2398 = vmatprep.subr.mxu0 0.0
        %2399 = vmatpush1.msra.mxu0 0.0
        %2400 = vmatprep.subr.mxu0 0.0
        %2401 = vmatpush1.msra.mxu0 0.0
        %2402 = vmatprep.subr.mxu0 0.0
        %2403 = vmatpush1.msra.mxu0 0.0
        %2404 = vmatprep.subr.mxu0 0.0
        %2405 = vmatpush1.msra.mxu0 0.0
        %2406 = vmatprep.subr.mxu0 0.0
        %2407 = vmatpush1.msra.mxu0 0.0
        %2408 = vmatprep.subr.mxu0 0.0
        %2409 = vmatpush1.msra.mxu0 0.0
        %2410 = vmatprep.subr.mxu0 0.0
        %2411 = vmatpush1.msra.mxu0 0.0
        %2412 = vmatprep.subr.mxu0 0.0
        %2413 = vmatpush1.msra.mxu0 0.0
        %2414 = vmatprep.subr.mxu0 0.0
        %2415 = vmatpush1.msra.mxu0 0.0
        %2416 = vmatprep.subr.mxu0 0.0
        %2417 = vmatpush1.msra.mxu0 0.0
        %2418 = vmatprep.subr.mxu0 0.0
        %2419 = vmatpush1.msra.mxu0 0.0
        %2420 = vmatprep.subr.mxu0 0.0
        %2421 = vmatpush1.msra.mxu0 0.0
        %2422 = vmatprep.subr.mxu0 0.0
        %2423 = vmatpush1.msra.mxu0 0.0
        %2424 = vmatprep.subr.mxu0 0.0
        %2425 = vmatpush1.msra.mxu0 %v2387
        %2426 = vmatprep.subr.mxu0 0.0
        %2427 = vmatpush1.msra.mxu0 %v2385
        %2428 = vmatprep.subr.mxu0 0.0
        %2429 = vmatpush2.msra.mxu0 0.0
        %2430 = vmatprep.subr.mxu0 0.0
        %2431 = vmatpush2.msra.mxu0 0.0
        %2432 = vmatprep.subr.mxu0 0.0
        %2433 = vmatpush2.msra.mxu0 0.0
        %2434 = vmatprep.subr.mxu0 0.0
        %2435 = vmatpush2.msra.mxu0 0.0
        %2436 = vmatprep.subr.mxu0 0.0
        %2437 = vmatpush2.msra.mxu0 0.0
        %2438 = vmatprep.subr.mxu0 0.0
        %2439 = vmatpush2.msra.mxu0 0.0
        %2440 = vmatprep.subr.mxu0 0.0
        %2441 = vmatpush2.msra.mxu0 0.0
        %2442 = vmatprep.subr.mxu0 0.0
        %2443 = vmatpush2.msra.mxu0 0.0
        %2444 = vmatprep.subr.mxu0 0.0
        %2445 = vmatpush2.msra.mxu0 0.0
        %2446 = vmatprep.subr.mxu0 0.0
        %2447 = vmatpush2.msra.mxu0 0.0
        %2448 = vmatprep.subr.mxu0 0.0
        %2449 = vmatpush2.msra.mxu0 0.0
        %2450 = vmatprep.subr.mxu0 0.0
        %2451 = vmatpush2.msra.mxu0 0.0
        %2452 = vmatprep.subr.mxu0 0.0
        %2453 = vmatpush2.msra.mxu0 0.0
        %2454 = vmatprep.subr.mxu0 0.0
        %2455 = vmatpush2.msra.mxu0 0.0
        %2456 = vmatprep.subr.mxu0 0.0
        %2457 = vmatpush2.msra.mxu0 0.0
        %2458 = vmatprep.subr.mxu0 0.0
        %2459 = vmatpush2.msra.mxu0 0.0
        %2460 = vmatprep.mubr.f32.mxu0 0.0
        %2461 = vmatmul.mubr.f32.gmra.mxu0 %v2391
        %v2462 = vpop.f32.mrf.mxu0
        %v2463 = vadd.f32 0.0, %v2462
        %v2464 = vpop.f32.mrf.mxu0
        %2465 = vmatprep.mubr.f32.mxu0 0.0
        %2466 = vmatmul.mubr.f32.gmra.mxu0 %v2394
        %v2467 = vpop.f32.mrf.mxu0
        %v2468 = vadd.f32 0.0, %v2467
        %v2469 = vpop.f32.mrf.mxu0
        %2470 = vdwg.mxu0
        %2473 = vrot.lane.b32.xlu0 %v1221, 16
        %v2474 = vpop.permute.xlu0 %2473
        %2475 = vrot.lane.b32.xlu0 %v1226, 16
        %v2476 = vpop.permute.xlu0 %2475
        %2481 = vrot.lane.b32.xlu0 %v1428, 32
        %v2482 = vpop.permute.xlu0 %2481
        %2483 = vrot.lane.b32.xlu0 %v1433, 32
        %v2484 = vpop.permute.xlu0 %2483
        %2489 = vrot.lane.b32.xlu0 %v1635, 48
        %v2490 = vpop.permute.xlu0 %2489
        %2491 = vrot.lane.b32.xlu0 %v1640, 48
        %v2492 = vpop.permute.xlu0 %2491
        %2497 = vrot.lane.b32.xlu0 %v1842, 64
        %v2498 = vpop.permute.xlu0 %2497
        %2499 = vrot.lane.b32.xlu0 %v1847, 64
        %v2500 = vpop.permute.xlu0 %2499
        %2505 = vrot.lane.b32.xlu0 %v2049, 80
        %v2506 = vpop.permute.xlu0 %2505
        %2507 = vrot.lane.b32.xlu0 %v2054, 80
        %v2508 = vpop.permute.xlu0 %2507
        %2513 = vrot.lane.b32.xlu0 %v2256, 96
        %v2514 = vpop.permute.xlu0 %2513
        %2515 = vrot.lane.b32.xlu0 %v2261, 96
        %v2516 = vpop.permute.xlu0 %2515
        %2521 = vrot.lane.b32.xlu0 %v2463, 112
        %v2522 = vpop.permute.xlu0 %2521
        %2523 = vrot.lane.b32.xlu0 %v2468, 112
        %v2524 = vpop.permute.xlu0 %2523
        %v2527 = vsel %vm816, %v1012, %v2474
        %v2528 = vsel %vm816, %v1017, %v2476
        %vm2529 = vcmask 261120
        %v2530 = vsel %vm2529, %v2527, %v2482
        %v2531 = vsel %vm2529, %v2528, %v2484
        %vm2532 = vcmask 392192
        %v2533 = vsel %vm2532, %v2530, %v2490
        %v2534 = vsel %vm2532, %v2531, %v2492
        %vm2535 = vcmask 523264
        %v2536 = vsel %vm2535, %v2533, %v2498
        %v2537 = vsel %vm2535, %v2534, %v2500
        %vm2538 = vcmask 654336
        %v2539 = vsel %vm2538, %v2536, %v2506
        %v2540 = vsel %vm2538, %v2537, %v2508
        %vm2541 = vcmask 785408
        %v2542 = vsel %vm2541, %v2539, %v2514
        %v2543 = vsel %vm2541, %v2540, %v2516
        %vm2544 = vcmask 916480
        %v2545 = vsel %vm2544, %v2542, %v2522
        %v2546 = vsel %vm2544, %v2543, %v2524
        %v2547 = vld [vmem:[#allocation7] sm:$0xff]
        %v2548 = vld [vmem:[#allocation7 + $0x8] sm:$0xff]
        %v2549 = vld [vmem:[#allocation7 + $0x10] sm:$0xff]
        %v2550 = vld [vmem:[#allocation7 + $0x18] sm:$0xff]
        %v2551 = vld [vmem:[#allocation7 + $0x20] sm:$0xff]
        %v2552 = vld [vmem:[#allocation7 + $0x28] sm:$0xff]
        %v2553 = vld [vmem:[#allocation7 + $0x30] sm:$0xff]
        %v2554 = vld [vmem:[#allocation7 + $0x38] sm:$0xff]
        %v2555 = vld [vmem:[#allocation7 + $0x40] sm:$0xff]
        %v2556 = vld [vmem:[#allocation7 + $0x48] sm:$0xff]
        %v2557 = vld [vmem:[#allocation7 + $0x50] sm:$0xff]
        %v2558 = vld [vmem:[#allocation7 + $0x58] sm:$0xff]
        %v2559 = vld [vmem:[#allocation7 + $0x60] sm:$0xff]
        %v2560 = vld [vmem:[#allocation7 + $0x68] sm:$0xff]
        %v2561 = vld [vmem:[#allocation7 + $0x70] sm:$0xff]
        %v2562 = vld [vmem:[#allocation7 + $0x78] sm:$0xff]
        %v2563 = vld [vmem:[%s5] sm:$0x1]
        %v2565 = vlaneseq
        %v2566 = vshrl.u32 %v2565, 7
        %v2567 = vsub.s32 0, %v2566
        %v2568 = vrot.slane %v2563, %v2567
        %2570 = vmatprep.subr.mxu0 0.0
        %2571 = vmatpush1.msra.mxu0 %v2562
        %2572 = vmatprep.subr.mxu0 0.0
        %2573 = vmatpush1.msra.mxu0 %v2561
        %2574 = vmatprep.subr.mxu0 0.0
        %2575 = vmatpush1.msra.mxu0 %v2560
        %2576 = vmatprep.subr.mxu0 0.0
        %2577 = vmatpush1.msra.mxu0 %v2559
        %2578 = vmatprep.subr.mxu0 0.0
        %2579 = vmatpush1.msra.mxu0 %v2558
        %2580 = vmatprep.subr.mxu0 0.0
        %2581 = vmatpush1.msra.mxu0 %v2557
        %2582 = vmatprep.subr.mxu0 0.0
        %2583 = vmatpush1.msra.mxu0 %v2556
        %2584 = vmatprep.subr.mxu0 0.0
        %2585 = vmatpush1.msra.mxu0 %v2555
        %2586 = vmatprep.subr.mxu0 0.0
        %2587 = vmatpush1.msra.mxu0 %v2554
        %2588 = vmatprep.subr.mxu0 0.0
        %2589 = vmatpush1.msra.mxu0 %v2553
        %2590 = vmatprep.subr.mxu0 0.0
        %2591 = vmatpush1.msra.mxu0 %v2552
        %2592 = vmatprep.subr.mxu0 0.0
        %2593 = vmatpush1.msra.mxu0 %v2551
        %2594 = vmatprep.subr.mxu0 0.0
        %2595 = vmatpush1.msra.mxu0 %v2550
        %2596 = vmatprep.subr.mxu0 0.0
        %2597 = vmatpush1.msra.mxu0 %v2549
        %2598 = vmatprep.subr.mxu0 0.0
        %2599 = vmatpush1.msra.mxu0 %v2548
        %2600 = vmatprep.subr.mxu0 0.0
        %2601 = vmatpush1.msra.mxu0 %v2547
        %2602 = vmatprep.subr.mxu0 0.0
        %2603 = vmatpush2.msra.mxu0 0.0
        %2604 = vmatprep.subr.mxu0 0.0
        %2605 = vmatpush2.msra.mxu0 0.0
        %2606 = vmatprep.subr.mxu0 0.0
        %2607 = vmatpush2.msra.mxu0 0.0
        %2608 = vmatprep.subr.mxu0 0.0
        %2609 = vmatpush2.msra.mxu0 0.0
        %2610 = vmatprep.subr.mxu0 0.0
        %2611 = vmatpush2.msra.mxu0 0.0
        %2612 = vmatprep.subr.mxu0 0.0
        %2613 = vmatpush2.msra.mxu0 0.0
        %2614 = vmatprep.subr.mxu0 0.0
        %2615 = vmatpush2.msra.mxu0 0.0
        %2616 = vmatprep.subr.mxu0 0.0
        %2617 = vmatpush2.msra.mxu0 0.0
        %2618 = vmatprep.subr.mxu0 0.0
        %2619 = vmatpush2.msra.mxu0 0.0
        %2620 = vmatprep.subr.mxu0 0.0
        %2621 = vmatpush2.msra.mxu0 0.0
        %2622 = vmatprep.subr.mxu0 0.0
        %2623 = vmatpush2.msra.mxu0 0.0
        %2624 = vmatprep.subr.mxu0 0.0
        %2625 = vmatpush2.msra.mxu0 0.0
        %2626 = vmatprep.subr.mxu0 0.0
        %2627 = vmatpush2.msra.mxu0 0.0
        %2628 = vmatprep.subr.mxu0 0.0
        %2629 = vmatpush2.msra.mxu0 0.0
        %2630 = vmatprep.subr.mxu0 0.0
        %2631 = vmatpush2.msra.mxu0 0.0
        %2632 = vmatprep.subr.mxu0 0.0
        %2633 = vmatpush2.msra.mxu0 0.0
        %2634 = vmatprep.mubr.f32.mxu0 0.0
        %2635 = vmatmul.mubr.f32.gmra.mxu0 %v2545
        %v2636 = vpop.f32.mrf.mxu0
        %v2637 = vadd.f32 %v2568, %v2636
        %v2638 = vpop.f32.mrf.mxu0
        %2639 = vmatprep.mubr.f32.mxu0 0.0
        %2640 = vmatmul.mubr.f32.gmra.mxu0 %v2546
        %v2641 = vpop.f32.mrf.mxu0
        %v2642 = vadd.f32 %v2568, %v2641
        %v2643 = vpop.f32.mrf.mxu0
        %2644 = vdwg.mxu0
        %v2645 = vadd.f32 %v596, %v2637
        %v2646 = vadd.f32 %v597, %v2642
        %2647 = vadd.xlane.f32.xlu0 %v2645
        %v2648 = vpop.xlane.xlu0 %2647
        %2649 = vadd.xlane.f32.xlu0 %v2646
        %v2650 = vpop.xlane.xlu0 %2649
        %v2651 = vrcp.pop 128.0
        %v2652 = vmul.f32 %v2648, %v2651
        %v2653 = vmul.f32 %v2650, %v2651
        %v2654 = vsub.f32 %v2645, %v2652
        %v2655 = vsub.f32 %v2646, %v2653
        %v2656 = vmul.f32 %v2654, %v2654
        %v2657 = vmul.f32 %v2655, %v2655
        %2658 = vadd.xlane.f32.xlu0 %v2656
        %v2659 = vpop.xlane.xlu0 %2658
        %2660 = vadd.xlane.f32.xlu0 %v2657
        %v2661 = vpop.xlane.xlu0 %2660
        %v2662 = vmul.f32 %v2659, %v2651
        %v2663 = vmul.f32 %v2661, %v2651
        %v2664 = vadd.f32 %v2662, 1e-05
        %v2665 = vadd.f32 %v2663, 1e-05
        %v2666 = vrsqrt.pop %v2664
        %v2667 = vrsqrt.pop %v2665
        %v2668 = vmul.f32 %v2654, %v2666
        %v2669 = vmul.f32 %v2655, %v2667
        %v2670 = vld [vmem:[%s6] sm:$0x1]
        %v2672 = vlaneseq
        %v2673 = vshrl.u32 %v2672, 7
        %v2674 = vsub.s32 0, %v2673
        %v2675 = vrot.slane %v2670, %v2674
        %v2677 = vmul.f32 %v2668, %v2675
        %v2678 = vmul.f32 %v2669, %v2675
        %v2679 = vld [vmem:[%s7] sm:$0x1]
        %v2681 = vlaneseq
        %v2682 = vshrl.u32 %v2681, 7
        %v2683 = vsub.s32 0, %v2682
        %v2684 = vrot.slane %v2679, %v2683
        %v2686 = vadd.f32 %v2677, %v2684
        %v2687 = vadd.f32 %v2678, %v2684
        %v2688 = vld [vmem:[#allocation8] sm:$0xff]
        %v2689 = vld [vmem:[#allocation8 + $0x8] sm:$0xff]
        %v2690 = vld [vmem:[#allocation8 + $0x10] sm:$0xff]
        %v2691 = vld [vmem:[#allocation8 + $0x18] sm:$0xff]
        %v2692 = vld [vmem:[#allocation8 + $0x20] sm:$0xff]
        %v2693 = vld [vmem:[#allocation8 + $0x28] sm:$0xff]
        %v2694 = vld [vmem:[#allocation8 + $0x30] sm:$0xff]
        %v2695 = vld [vmem:[#allocation8 + $0x38] sm:$0xff]
        %v2696 = vld [vmem:[#allocation8 + $0x40] sm:$0xff]
        %v2697 = vld [vmem:[#allocation8 + $0x48] sm:$0xff]
        %v2698 = vld [vmem:[#allocation8 + $0x50] sm:$0xff]
        %v2699 = vld [vmem:[#allocation8 + $0x58] sm:$0xff]
        %v2700 = vld [vmem:[#allocation8 + $0x60] sm:$0xff]
        %v2701 = vld [vmem:[#allocation8 + $0x68] sm:$0xff]
        %v2702 = vld [vmem:[#allocation8 + $0x70] sm:$0xff]
        %v2703 = vld [vmem:[#allocation8 + $0x78] sm:$0xff]
        %v2704 = vld [vmem:[#allocation8 + $0x80] sm:$0xff]
        %v2705 = vld [vmem:[#allocation8 + $0x88] sm:$0xff]
        %v2706 = vld [vmem:[#allocation8 + $0x90] sm:$0xff]
        %v2707 = vld [vmem:[#allocation8 + $0x98] sm:$0xff]
        %v2708 = vld [vmem:[#allocation8 + $0xa0] sm:$0xff]
        %v2709 = vld [vmem:[#allocation8 + $0xa8] sm:$0xff]
        %v2710 = vld [vmem:[#allocation8 + $0xb0] sm:$0xff]
        %v2711 = vld [vmem:[#allocation8 + $0xb8] sm:$0xff]
        %v2712 = vld [vmem:[#allocation8 + $0xc0] sm:$0xff]
        %v2713 = vld [vmem:[#allocation8 + $0xc8] sm:$0xff]
        %v2714 = vld [vmem:[#allocation8 + $0xd0] sm:$0xff]
        %v2715 = vld [vmem:[#allocation8 + $0xd8] sm:$0xff]
        %v2716 = vld [vmem:[#allocation8 + $0xe0] sm:$0xff]
        %v2717 = vld [vmem:[#allocation8 + $0xe8] sm:$0xff]
        %v2718 = vld [vmem:[#allocation8 + $0xf0] sm:$0xff]
        %v2719 = vld [vmem:[#allocation8 + $0xf8] sm:$0xff]
        %v2720 = vld [vmem:[#allocation8 + $0x100] sm:$0xff]
        %v2721 = vld [vmem:[#allocation8 + $0x108] sm:$0xff]
        %v2722 = vld [vmem:[#allocation8 + $0x110] sm:$0xff]
        %v2723 = vld [vmem:[#allocation8 + $0x118] sm:$0xff]
        %v2724 = vld [vmem:[#allocation8 + $0x120] sm:$0xff]
        %v2725 = vld [vmem:[#allocation8 + $0x128] sm:$0xff]
        %v2726 = vld [vmem:[#allocation8 + $0x130] sm:$0xff]
        %v2727 = vld [vmem:[#allocation8 + $0x138] sm:$0xff]
        %v2728 = vld [vmem:[#allocation8 + $0x140] sm:$0xff]
        %v2729 = vld [vmem:[#allocation8 + $0x148] sm:$0xff]
        %v2730 = vld [vmem:[#allocation8 + $0x150] sm:$0xff]
        %v2731 = vld [vmem:[#allocation8 + $0x158] sm:$0xff]
        %v2732 = vld [vmem:[#allocation8 + $0x160] sm:$0xff]
        %v2733 = vld [vmem:[#allocation8 + $0x168] sm:$0xff]
        %v2734 = vld [vmem:[#allocation8 + $0x170] sm:$0xff]
        %v2735 = vld [vmem:[#allocation8 + $0x178] sm:$0xff]
        %v2736 = vld [vmem:[#allocation8 + $0x180] sm:$0xff]
        %v2737 = vld [vmem:[#allocation8 + $0x188] sm:$0xff]
        %v2738 = vld [vmem:[#allocation8 + $0x190] sm:$0xff]
        %v2739 = vld [vmem:[#allocation8 + $0x198] sm:$0xff]
        %v2740 = vld [vmem:[#allocation8 + $0x1a0] sm:$0xff]
        %v2741 = vld [vmem:[#allocation8 + $0x1a8] sm:$0xff]
        %v2742 = vld [vmem:[#allocation8 + $0x1b0] sm:$0xff]
        %v2743 = vld [vmem:[#allocation8 + $0x1b8] sm:$0xff]
        %v2744 = vld [vmem:[#allocation8 + $0x1c0] sm:$0xff]
        %v2745 = vld [vmem:[#allocation8 + $0x1c8] sm:$0xff]
        %v2746 = vld [vmem:[#allocation8 + $0x1d0] sm:$0xff]
        %v2747 = vld [vmem:[#allocation8 + $0x1d8] sm:$0xff]
        %v2748 = vld [vmem:[#allocation8 + $0x1e0] sm:$0xff]
        %v2749 = vld [vmem:[#allocation8 + $0x1e8] sm:$0xff]
        %v2750 = vld [vmem:[#allocation8 + $0x1f0] sm:$0xff]
        %v2751 = vld [vmem:[#allocation8 + $0x1f8] sm:$0xff]
        %v2752 = vld [vmem:[%s9] sm:$0xf]
        %v2754 = vlaneseq
        %v2755 = vshrl.u32 %v2754, 7
        %v2756 = vsub.s32 0, %v2755
        %v2757 = vrot.slane %v2752, %v2756
        %v2758 = vlaneseq
        %v2759 = vshrl.u32 %v2758, 7
        %v2760 = vsub.s32 1, %v2759
        %v2761 = vrot.slane %v2752, %v2760
        %v2762 = vlaneseq
        %v2763 = vshrl.u32 %v2762, 7
        %v2764 = vsub.s32 2, %v2763
        %v2765 = vrot.slane %v2752, %v2764
        %v2766 = vlaneseq
        %v2767 = vshrl.u32 %v2766, 7
        %v2768 = vsub.s32 3, %v2767
        %v2769 = vrot.slane %v2752, %v2768
        %2774 = vmatprep.subr.mxu0 %v2749
        %2775 = vmatpush1.msra.mxu0 %v2748
        %2776 = vmatprep.subr.mxu0 %v2745
        %2777 = vmatpush1.msra.mxu0 %v2744
        %2778 = vmatprep.subr.mxu0 %v2741
        %2779 = vmatpush1.msra.mxu0 %v2740
        %2780 = vmatprep.subr.mxu0 %v2737
        %2781 = vmatpush1.msra.mxu0 %v2736
        %2782 = vmatprep.subr.mxu0 %v2733
        %2783 = vmatpush1.msra.mxu0 %v2732
        %2784 = vmatprep.subr.mxu0 %v2729
        %2785 = vmatpush1.msra.mxu0 %v2728
        %2786 = vmatprep.subr.mxu0 %v2725
        %2787 = vmatpush1.msra.mxu0 %v2724
        %2788 = vmatprep.subr.mxu0 %v2721
        %2789 = vmatpush1.msra.mxu0 %v2720
        %2790 = vmatprep.subr.mxu0 %v2717
        %2791 = vmatpush1.msra.mxu0 %v2716
        %2792 = vmatprep.subr.mxu0 %v2713
        %2793 = vmatpush1.msra.mxu0 %v2712
        %2794 = vmatprep.subr.mxu0 %v2709
        %2795 = vmatpush1.msra.mxu0 %v2708
        %2796 = vmatprep.subr.mxu0 %v2705
        %2797 = vmatpush1.msra.mxu0 %v2704
        %2798 = vmatprep.subr.mxu0 %v2701
        %2799 = vmatpush1.msra.mxu0 %v2700
        %2800 = vmatprep.subr.mxu0 %v2697
        %2801 = vmatpush1.msra.mxu0 %v2696
        %2802 = vmatprep.subr.mxu0 %v2693
        %2803 = vmatpush1.msra.mxu0 %v2692
        %2804 = vmatprep.subr.mxu0 %v2689
        %2805 = vmatpush1.msra.mxu0 %v2688
        %2806 = vmatprep.subr.mxu0 0.0
        %2807 = vmatpush2.msra.mxu0 0.0
        %2808 = vmatprep.subr.mxu0 0.0
        %2809 = vmatpush2.msra.mxu0 0.0
        %2810 = vmatprep.subr.mxu0 0.0
        %2811 = vmatpush2.msra.mxu0 0.0
        %2812 = vmatprep.subr.mxu0 0.0
        %2813 = vmatpush2.msra.mxu0 0.0
        %2814 = vmatprep.subr.mxu0 0.0
        %2815 = vmatpush2.msra.mxu0 0.0
        %2816 = vmatprep.subr.mxu0 0.0
        %2817 = vmatpush2.msra.mxu0 0.0
        %2818 = vmatprep.subr.mxu0 0.0
        %2819 = vmatpush2.msra.mxu0 0.0
        %2820 = vmatprep.subr.mxu0 0.0
        %2821 = vmatpush2.msra.mxu0 0.0
        %2822 = vmatprep.subr.mxu0 0.0
        %2823 = vmatpush2.msra.mxu0 0.0
        %2824 = vmatprep.subr.mxu0 0.0
        %2825 = vmatpush2.msra.mxu0 0.0
        %2826 = vmatprep.subr.mxu0 0.0
        %2827 = vmatpush2.msra.mxu0 0.0
        %2828 = vmatprep.subr.mxu0 0.0
        %2829 = vmatpush2.msra.mxu0 0.0
        %2830 = vmatprep.subr.mxu0 0.0
        %2831 = vmatpush2.msra.mxu0 0.0
        %2832 = vmatprep.subr.mxu0 0.0
        %2833 = vmatpush2.msra.mxu0 0.0
        %2834 = vmatprep.subr.mxu0 0.0
        %2835 = vmatpush2.msra.mxu0 0.0
        %2836 = vmatprep.subr.mxu0 0.0
        %2837 = vmatpush2.msra.mxu0 0.0
        %2838 = vmatprep.mubr.f32.mxu0 0.0
        %2839 = vmatmul.mubr.f32.gmra.mxu0 %v2686
        %v2840 = vpop.f32.mrf.mxu0
        %v2841 = vadd.f32 %v2757, %v2840
        %v2842 = vpop.f32.mrf.mxu0
        %v2843 = vadd.f32 %v2761, %v2842
        %2844 = vmatprep.mubr.f32.mxu0 0.0
        %2845 = vmatmul.mubr.f32.gmra.mxu0 %v2687
        %v2846 = vpop.f32.mrf.mxu0
        %v2847 = vadd.f32 %v2757, %v2846
        %v2848 = vpop.f32.mrf.mxu0
        %v2849 = vadd.f32 %v2761, %v2848
        %2850 = vdwg.mxu0
        %2851 = vmatprep.subr.mxu0 %v2751
        %2852 = vmatpush1.msra.mxu0 %v2750
        %2853 = vmatprep.subr.mxu0 %v2747
        %2854 = vmatpush1.msra.mxu0 %v2746
        %2855 = vmatprep.subr.mxu0 %v2743
        %2856 = vmatpush1.msra.mxu0 %v2742
        %2857 = vmatprep.subr.mxu0 %v2739
        %2858 = vmatpush1.msra.mxu0 %v2738
        %2859 = vmatprep.subr.mxu0 %v2735
        %2860 = vmatpush1.msra.mxu0 %v2734
        %2861 = vmatprep.subr.mxu0 %v2731
        %2862 = vmatpush1.msra.mxu0 %v2730
        %2863 = vmatprep.subr.mxu0 %v2727
        %2864 = vmatpush1.msra.mxu0 %v2726
        %2865 = vmatprep.subr.mxu0 %v2723
        %2866 = vmatpush1.msra.mxu0 %v2722
        %2867 = vmatprep.subr.mxu0 %v2719
        %2868 = vmatpush1.msra.mxu0 %v2718
        %2869 = vmatprep.subr.mxu0 %v2715
        %2870 = vmatpush1.msra.mxu0 %v2714
        %2871 = vmatprep.subr.mxu0 %v2711
        %2872 = vmatpush1.msra.mxu0 %v2710
        %2873 = vmatprep.subr.mxu0 %v2707
        %2874 = vmatpush1.msra.mxu0 %v2706
        %2875 = vmatprep.subr.mxu0 %v2703
        %2876 = vmatpush1.msra.mxu0 %v2702
        %2877 = vmatprep.subr.mxu0 %v2699
        %2878 = vmatpush1.msra.mxu0 %v2698
        %2879 = vmatprep.subr.mxu0 %v2695
        %2880 = vmatpush1.msra.mxu0 %v2694
        %2881 = vmatprep.subr.mxu0 %v2691
        %2882 = vmatpush1.msra.mxu0 %v2690
        %2883 = vmatprep.subr.mxu0 0.0
        %2884 = vmatpush2.msra.mxu0 0.0
        %2885 = vmatprep.subr.mxu0 0.0
        %2886 = vmatpush2.msra.mxu0 0.0
        %2887 = vmatprep.subr.mxu0 0.0
        %2888 = vmatpush2.msra.mxu0 0.0
        %2889 = vmatprep.subr.mxu0 0.0
        %2890 = vmatpush2.msra.mxu0 0.0
        %2891 = vmatprep.subr.mxu0 0.0
        %2892 = vmatpush2.msra.mxu0 0.0
        %2893 = vmatprep.subr.mxu0 0.0
        %2894 = vmatpush2.msra.mxu0 0.0
        %2895 = vmatprep.subr.mxu0 0.0
        %2896 = vmatpush2.msra.mxu0 0.0
        %2897 = vmatprep.subr.mxu0 0.0
        %2898 = vmatpush2.msra.mxu0 0.0
        %2899 = vmatprep.subr.mxu0 0.0
        %2900 = vmatpush2.msra.mxu0 0.0
        %2901 = vmatprep.subr.mxu0 0.0
        %2902 = vmatpush2.msra.mxu0 0.0
        %2903 = vmatprep.subr.mxu0 0.0
        %2904 = vmatpush2.msra.mxu0 0.0
        %2905 = vmatprep.subr.mxu0 0.0
        %2906 = vmatpush2.msra.mxu0 0.0
        %2907 = vmatprep.subr.mxu0 0.0
        %2908 = vmatpush2.msra.mxu0 0.0
        %2909 = vmatprep.subr.mxu0 0.0
        %2910 = vmatpush2.msra.mxu0 0.0
        %2911 = vmatprep.subr.mxu0 0.0
        %2912 = vmatpush2.msra.mxu0 0.0
        %2913 = vmatprep.subr.mxu0 0.0
        %2914 = vmatpush2.msra.mxu0 0.0
        %2915 = vmatprep.mubr.f32.mxu0 0.0
        %2916 = vmatmul.mubr.f32.gmra.mxu0 %v2686
        %v2917 = vpop.f32.mrf.mxu0
        %v2918 = vadd.f32 %v2765, %v2917
        %v2919 = vpop.f32.mrf.mxu0
        %v2920 = vadd.f32 %v2769, %v2919
        %2921 = vmatprep.mubr.f32.mxu0 0.0
        %2922 = vmatmul.mubr.f32.gmra.mxu0 %v2687
        %v2923 = vpop.f32.mrf.mxu0
        %v2924 = vadd.f32 %v2765, %v2923
        %v2925 = vpop.f32.mrf.mxu0
        %v2926 = vadd.f32 %v2769, %v2925
        %2927 = vdwg.mxu0
        %v2928 = vmax.f32 %v2841, 0.0
        %v2929 = vmax.f32 %v2843, 0.0
        %v2930 = vmax.f32 %v2918, 0.0
        %v2931 = vmax.f32 %v2920, 0.0
        %v2932 = vmax.f32 %v2847, 0.0
        %v2933 = vmax.f32 %v2849, 0.0
        %v2934 = vmax.f32 %v2924, 0.0
        %v2935 = vmax.f32 %v2926, 0.0
        %v2936 = vld [vmem:[#allocation10] sm:$0xff]
        %v2937 = vld [vmem:[#allocation10 + $0x8] sm:$0xff]
        %v2938 = vld [vmem:[#allocation10 + $0x10] sm:$0xff]
        %v2939 = vld [vmem:[#allocation10 + $0x18] sm:$0xff]
        %v2940 = vld [vmem:[#allocation10 + $0x20] sm:$0xff]
        %v2941 = vld [vmem:[#allocation10 + $0x28] sm:$0xff]
        %v2942 = vld [vmem:[#allocation10 + $0x30] sm:$0xff]
        %v2943 = vld [vmem:[#allocation10 + $0x38] sm:$0xff]
        %v2944 = vld [vmem:[#allocation10 + $0x40] sm:$0xff]
        %v2945 = vld [vmem:[#allocation10 + $0x48] sm:$0xff]
        %v2946 = vld [vmem:[#allocation10 + $0x50] sm:$0xff]
        %v2947 = vld [vmem:[#allocation10 + $0x58] sm:$0xff]
        %v2948 = vld [vmem:[#allocation10 + $0x60] sm:$0xff]
        %v2949 = vld [vmem:[#allocation10 + $0x68] sm:$0xff]
        %v2950 = vld [vmem:[#allocation10 + $0x70] sm:$0xff]
        %v2951 = vld [vmem:[#allocation10 + $0x78] sm:$0xff]
        %v2952 = vld [vmem:[#allocation10 + $0x80] sm:$0xff]
        %v2953 = vld [vmem:[#allocation10 + $0x88] sm:$0xff]
        %v2954 = vld [vmem:[#allocation10 + $0x90] sm:$0xff]
        %v2955 = vld [vmem:[#allocation10 + $0x98] sm:$0xff]
        %v2956 = vld [vmem:[#allocation10 + $0xa0] sm:$0xff]
        %v2957 = vld [vmem:[#allocation10 + $0xa8] sm:$0xff]
        %v2958 = vld [vmem:[#allocation10 + $0xb0] sm:$0xff]
        %v2959 = vld [vmem:[#allocation10 + $0xb8] sm:$0xff]
        %v2960 = vld [vmem:[#allocation10 + $0xc0] sm:$0xff]
        %v2961 = vld [vmem:[#allocation10 + $0xc8] sm:$0xff]
        %v2962 = vld [vmem:[#allocation10 + $0xd0] sm:$0xff]
        %v2963 = vld [vmem:[#allocation10 + $0xd8] sm:$0xff]
        %v2964 = vld [vmem:[#allocation10 + $0xe0] sm:$0xff]
        %v2965 = vld [vmem:[#allocation10 + $0xe8] sm:$0xff]
        %v2966 = vld [vmem:[#allocation10 + $0xf0] sm:$0xff]
        %v2967 = vld [vmem:[#allocation10 + $0xf8] sm:$0xff]
        %v2968 = vld [vmem:[#allocation10 + $0x100] sm:$0xff]
        %v2969 = vld [vmem:[#allocation10 + $0x108] sm:$0xff]
        %v2970 = vld [vmem:[#allocation10 + $0x110] sm:$0xff]
        %v2971 = vld [vmem:[#allocation10 + $0x118] sm:$0xff]
        %v2972 = vld [vmem:[#allocation10 + $0x120] sm:$0xff]
        %v2973 = vld [vmem:[#allocation10 + $0x128] sm:$0xff]
        %v2974 = vld [vmem:[#allocation10 + $0x130] sm:$0xff]
        %v2975 = vld [vmem:[#allocation10 + $0x138] sm:$0xff]
        %v2976 = vld [vmem:[#allocation10 + $0x140] sm:$0xff]
        %v2977 = vld [vmem:[#allocation10 + $0x148] sm:$0xff]
        %v2978 = vld [vmem:[#allocation10 + $0x150] sm:$0xff]
        %v2979 = vld [vmem:[#allocation10 + $0x158] sm:$0xff]
        %v2980 = vld [vmem:[#allocation10 + $0x160] sm:$0xff]
        %v2981 = vld [vmem:[#allocation10 + $0x168] sm:$0xff]
        %v2982 = vld [vmem:[#allocation10 + $0x170] sm:$0xff]
        %v2983 = vld [vmem:[#allocation10 + $0x178] sm:$0xff]
        %v2984 = vld [vmem:[#allocation10 + $0x180] sm:$0xff]
        %v2985 = vld [vmem:[#allocation10 + $0x188] sm:$0xff]
        %v2986 = vld [vmem:[#allocation10 + $0x190] sm:$0xff]
        %v2987 = vld [vmem:[#allocation10 + $0x198] sm:$0xff]
        %v2988 = vld [vmem:[#allocation10 + $0x1a0] sm:$0xff]
        %v2989 = vld [vmem:[#allocation10 + $0x1a8] sm:$0xff]
        %v2990 = vld [vmem:[#allocation10 + $0x1b0] sm:$0xff]
        %v2991 = vld [vmem:[#allocation10 + $0x1b8] sm:$0xff]
        %v2992 = vld [vmem:[#allocation10 + $0x1c0] sm:$0xff]
        %v2993 = vld [vmem:[#allocation10 + $0x1c8] sm:$0xff]
        %v2994 = vld [vmem:[#allocation10 + $0x1d0] sm:$0xff]
        %v2995 = vld [vmem:[#allocation10 + $0x1d8] sm:$0xff]
        %v2996 = vld [vmem:[#allocation10 + $0x1e0] sm:$0xff]
        %v2997 = vld [vmem:[#allocation10 + $0x1e8] sm:$0xff]
        %v2998 = vld [vmem:[#allocation10 + $0x1f0] sm:$0xff]
        %v2999 = vld [vmem:[#allocation10 + $0x1f8] sm:$0xff]
        %v3000 = vld [vmem:[%s11] sm:$0x1]
        %v3002 = vlaneseq
        %v3003 = vshrl.u32 %v3002, 7
        %v3004 = vsub.s32 0, %v3003
        %v3005 = vrot.slane %v3000, %v3004
        %3007 = vmatprep.subr.mxu0 0.0
        %3008 = vmatpush1.msra.mxu0 %v2951
        %3009 = vmatprep.subr.mxu0 0.0
        %3010 = vmatpush1.msra.mxu0 %v2950
        %3011 = vmatprep.subr.mxu0 0.0
        %3012 = vmatpush1.msra.mxu0 %v2949
        %3013 = vmatprep.subr.mxu0 0.0
        %3014 = vmatpush1.msra.mxu0 %v2948
        %3015 = vmatprep.subr.mxu0 0.0
        %3016 = vmatpush1.msra.mxu0 %v2947
        %3017 = vmatprep.subr.mxu0 0.0
        %3018 = vmatpush1.msra.mxu0 %v2946
        %3019 = vmatprep.subr.mxu0 0.0
        %3020 = vmatpush1.msra.mxu0 %v2945
        %3021 = vmatprep.subr.mxu0 0.0
        %3022 = vmatpush1.msra.mxu0 %v2944
        %3023 = vmatprep.subr.mxu0 0.0
        %3024 = vmatpush1.msra.mxu0 %v2943
        %3025 = vmatprep.subr.mxu0 0.0
        %3026 = vmatpush1.msra.mxu0 %v2942
        %3027 = vmatprep.subr.mxu0 0.0
        %3028 = vmatpush1.msra.mxu0 %v2941
        %3029 = vmatprep.subr.mxu0 0.0
        %3030 = vmatpush1.msra.mxu0 %v2940
        %3031 = vmatprep.subr.mxu0 0.0
        %3032 = vmatpush1.msra.mxu0 %v2939
        %3033 = vmatprep.subr.mxu0 0.0
        %3034 = vmatpush1.msra.mxu0 %v2938
        %3035 = vmatprep.subr.mxu0 0.0
        %3036 = vmatpush1.msra.mxu0 %v2937
        %3037 = vmatprep.subr.mxu0 0.0
        %3038 = vmatpush1.msra.mxu0 %v2936
        %3039 = vmatprep.subr.mxu0 0.0
        %3040 = vmatpush2.msra.mxu0 %v2967
        %3041 = vmatprep.subr.mxu0 0.0
        %3042 = vmatpush2.msra.mxu0 %v2966
        %3043 = vmatprep.subr.mxu0 0.0
        %3044 = vmatpush2.msra.mxu0 %v2965
        %3045 = vmatprep.subr.mxu0 0.0
        %3046 = vmatpush2.msra.mxu0 %v2964
        %3047 = vmatprep.subr.mxu0 0.0
        %3048 = vmatpush2.msra.mxu0 %v2963
        %3049 = vmatprep.subr.mxu0 0.0
        %3050 = vmatpush2.msra.mxu0 %v2962
        %3051 = vmatprep.subr.mxu0 0.0
        %3052 = vmatpush2.msra.mxu0 %v2961
        %3053 = vmatprep.subr.mxu0 0.0
        %3054 = vmatpush2.msra.mxu0 %v2960
        %3055 = vmatprep.subr.mxu0 0.0
        %3056 = vmatpush2.msra.mxu0 %v2959
        %3057 = vmatprep.subr.mxu0 0.0
        %3058 = vmatpush2.msra.mxu0 %v2958
        %3059 = vmatprep.subr.mxu0 0.0
        %3060 = vmatpush2.msra.mxu0 %v2957
        %3061 = vmatprep.subr.mxu0 0.0
        %3062 = vmatpush2.msra.mxu0 %v2956
        %3063 = vmatprep.subr.mxu0 0.0
        %3064 = vmatpush2.msra.mxu0 %v2955
        %3065 = vmatprep.subr.mxu0 0.0
        %3066 = vmatpush2.msra.mxu0 %v2954
        %3067 = vmatprep.subr.mxu0 0.0
        %3068 = vmatpush2.msra.mxu0 %v2953
        %3069 = vmatprep.subr.mxu0 0.0
        %3070 = vmatpush2.msra.mxu0 %v2952
        %3071 = vmatprep.mubr.f32.mxu0 %v2929
        %3072 = vmatmul.mubr.f32.gmra.mxu0 %v2928
        %v3073 = vpop.f32.mrf.mxu0
        %v3074 = vadd.f32 %v3005, %v3073
        %v3075 = vpop.f32.mrf.mxu0
        %3076 = vmatprep.mubr.f32.mxu0 %v2933
        %3077 = vmatmul.mubr.f32.gmra.mxu0 %v2932
        %v3078 = vpop.f32.mrf.mxu0
        %v3079 = vadd.f32 %v3005, %v3078
        %v3080 = vpop.f32.mrf.mxu0
        %3081 = vdwg.mxu0
        %3082 = vmatprep.subr.mxu0 0.0
        %3083 = vmatpush1.msra.mxu0 %v2983
        %3084 = vmatprep.subr.mxu0 0.0
        %3085 = vmatpush1.msra.mxu0 %v2982
        %3086 = vmatprep.subr.mxu0 0.0
        %3087 = vmatpush1.msra.mxu0 %v2981
        %3088 = vmatprep.subr.mxu0 0.0
        %3089 = vmatpush1.msra.mxu0 %v2980
        %3090 = vmatprep.subr.mxu0 0.0
        %3091 = vmatpush1.msra.mxu0 %v2979
        %3092 = vmatprep.subr.mxu0 0.0
        %3093 = vmatpush1.msra.mxu0 %v2978
        %3094 = vmatprep.subr.mxu0 0.0
        %3095 = vmatpush1.msra.mxu0 %v2977
        %3096 = vmatprep.subr.mxu0 0.0
        %3097 = vmatpush1.msra.mxu0 %v2976
        %3098 = vmatprep.subr.mxu0 0.0
        %3099 = vmatpush1.msra.mxu0 %v2975
        %3100 = vmatprep.subr.mxu0 0.0
        %3101 = vmatpush1.msra.mxu0 %v2974
        %3102 = vmatprep.subr.mxu0 0.0
        %3103 = vmatpush1.msra.mxu0 %v2973
        %3104 = vmatprep.subr.mxu0 0.0
        %3105 = vmatpush1.msra.mxu0 %v2972
        %3106 = vmatprep.subr.mxu0 0.0
        %3107 = vmatpush1.msra.mxu0 %v2971
        %3108 = vmatprep.subr.mxu0 0.0
        %3109 = vmatpush1.msra.mxu0 %v2970
        %3110 = vmatprep.subr.mxu0 0.0
        %3111 = vmatpush1.msra.mxu0 %v2969
        %3112 = vmatprep.subr.mxu0 0.0
        %3113 = vmatpush1.msra.mxu0 %v2968
        %3114 = vmatprep.subr.mxu0 0.0
        %3115 = vmatpush2.msra.mxu0 %v2999
        %3116 = vmatprep.subr.mxu0 0.0
        %3117 = vmatpush2.msra.mxu0 %v2998
        %3118 = vmatprep.subr.mxu0 0.0
        %3119 = vmatpush2.msra.mxu0 %v2997
        %3120 = vmatprep.subr.mxu0 0.0
        %3121 = vmatpush2.msra.mxu0 %v2996
        %3122 = vmatprep.subr.mxu0 0.0
        %3123 = vmatpush2.msra.mxu0 %v2995
        %3124 = vmatprep.subr.mxu0 0.0
        %3125 = vmatpush2.msra.mxu0 %v2994
        %3126 = vmatprep.subr.mxu0 0.0
        %3127 = vmatpush2.msra.mxu0 %v2993
        %3128 = vmatprep.subr.mxu0 0.0
        %3129 = vmatpush2.msra.mxu0 %v2992
        %3130 = vmatprep.subr.mxu0 0.0
        %3131 = vmatpush2.msra.mxu0 %v2991
        %3132 = vmatprep.subr.mxu0 0.0
        %3133 = vmatpush2.msra.mxu0 %v2990
        %3134 = vmatprep.subr.mxu0 0.0
        %3135 = vmatpush2.msra.mxu0 %v2989
        %3136 = vmatprep.subr.mxu0 0.0
        %3137 = vmatpush2.msra.mxu0 %v2988
        %3138 = vmatprep.subr.mxu0 0.0
        %3139 = vmatpush2.msra.mxu0 %v2987
        %3140 = vmatprep.subr.mxu0 0.0
        %3141 = vmatpush2.msra.mxu0 %v2986
        %3142 = vmatprep.subr.mxu0 0.0
        %3143 = vmatpush2.msra.mxu0 %v2985
        %3144 = vmatprep.subr.mxu0 0.0
        %3145 = vmatpush2.msra.mxu0 %v2984
        %3146 = vmatprep.mubr.f32.mxu0 %v2931
        %3147 = vmatmul.mubr.f32.gmra.mxu0 %v2930
        %v3148 = vpop.f32.mrf.mxu0
        %v3149 = vadd.f32 %v3074, %v3148
        %v3150 = vpop.f32.mrf.mxu0
        %3151 = vmatprep.mubr.f32.mxu0 %v2935
        %3152 = vmatmul.mubr.f32.gmra.mxu0 %v2934
        %v3153 = vpop.f32.mrf.mxu0
        %v3154 = vadd.f32 %v3079, %v3153
        %v3155 = vpop.f32.mrf.mxu0
        %3156 = vdwg.mxu0
        %v3157 = vadd.f32 %v2686, %v3149
        %v3158 = vadd.f32 %v2687, %v3154
        %3159 = vadd.xlane.f32.xlu0 %v3157
        %v3160 = vpop.xlane.xlu0 %3159
        %3161 = vadd.xlane.f32.xlu0 %v3158
        %v3162 = vpop.xlane.xlu0 %3161
        %v3163 = vmul.f32 %v3160, %v2651
        %v3164 = vmul.f32 %v3162, %v2651
        %v3165 = vsub.f32 %v3157, %v3163
        %v3166 = vsub.f32 %v3158, %v3164
        %v3167 = vmul.f32 %v3165, %v3165
        %v3168 = vmul.f32 %v3166, %v3166
        %3169 = vadd.xlane.f32.xlu0 %v3167
        %v3170 = vpop.xlane.xlu0 %3169
        %3171 = vadd.xlane.f32.xlu0 %v3168
        %v3172 = vpop.xlane.xlu0 %3171
        %v3173 = vmul.f32 %v3170, %v2651
        %v3174 = vmul.f32 %v3172, %v2651
        %v3175 = vadd.f32 %v3173, 1e-05
        %v3176 = vadd.f32 %v3174, 1e-05
        %v3177 = vrsqrt.pop %v3175
        %v3178 = vrsqrt.pop %v3176
        %v3179 = vmul.f32 %v3165, %v3177
        %v3180 = vmul.f32 %v3166, %v3178
        %v3181 = vld [vmem:[%s12] sm:$0x1]
        %v3183 = vlaneseq
        %v3184 = vshrl.u32 %v3183, 7
        %v3185 = vsub.s32 0, %v3184
        %v3186 = vrot.slane %v3181, %v3185
        %v3188 = vmul.f32 %v3179, %v3186
        %v3189 = vmul.f32 %v3180, %v3186
        %v3190 = vld [vmem:[%s13] sm:$0x1]
        %v3192 = vlaneseq
        %v3193 = vshrl.u32 %v3192, 7
        %v3194 = vsub.s32 0, %v3193
        %v3195 = vrot.slane %v3190, %v3194
        %v3197 = vadd.f32 %v3188, %v3195
        %v3198 = vadd.f32 %v3189, %v3195
        %3199 = vst [vmem:[%s585] sm:$0xff] %v3197
        %3200 = vst [vmem:[%s585 + $0x8] sm:$0xff] %v3198
        %s3201 = sand.u32 %s350, 1
        %s3202 = scalar_lea.sflag [#allocation4], %s3201
        %s3203 = sand.u32 %s350, 1
        %s3204 = smul.addr %s3203, 16
        %s3205 = scalar_lea.vmem [#allocation11], %s3204
        %s3206 = sand.u32 %s376, 1
        %s3207 = scalar_lea.sflag [#allocation13], %s3206
        %s3208 = sand.u32 %s376, 1
        %s3209 = smul.addr %s3208, 128
        %s3210 = scalar_lea.vmem [#allocation12], %s3209
        // Predicated region
        $region97: #{encoder_layer_forward.1} parent=75 // pred_check
          %p3211 = pneg %p360
        $region98: #{encoder_layer_forward.1} parent=75 // pred_check_branch
          %3213 = sbr.rel (%p3211) target = $region100
        $region99: #{encoder_layer_forward.1} parent=75 // pred_region
          %s3215 = ssub.s32 256, 256
          %3216 = vsyncadd %s3202, %s3215
          %s3217 = smul.addr %s38, 2
          %s3218 = smul.addr %s3217, 128
          %s3219 = scalar_lea.hbm %s14, %s3218
          %s3220 = sshll.u32 %s3205, 4
          %s3221 = int_to_ptr.vmem [resolvable:$true] %s3220
          %3226 = dma.vmem_to_hbm [thread:$0]  %s3221, 256, %s3219, %s3202, 128, 128, 8
        $region100: #{encoder_layer_forward.1} parent=75 // pred_fallthru
          _
        // Predicated region
        $region101: #{encoder_layer_forward.1} parent=75 // pred_check
          %p3227 = pneg %p386
        $region102: #{encoder_layer_forward.1} parent=75 // pred_check_branch
          %3229 = sbr.rel (%p3227) target = $region104
        $region103: #{encoder_layer_forward.1} parent=75 // pred_region
          %s3231 = ssub.s32 2048, 2048
          %3232 = vsyncadd %s3207, %s3231
          %s3233 = smul.addr %s38, 16
          %s3234 = smul.addr %s3233, 128
          %s3235 = scalar_lea.hbm %s15, %s3234
          %s3236 = sshll.u32 %s3210, 4
          %s3237 = int_to_ptr.vmem [resolvable:$true] %s3236
          %3242 = dma.vmem_to_hbm [thread:$0]  %s3237, 2048, %s3235, %s3207, 128, 128, 8
        $region104: #{encoder_layer_forward.1} parent=75 // pred_fallthru
          _
      $region76: #{encoder_layer_forward.1} parent=5 // pred_fallthru
        _
      %p3243 = scmp.le.s32.totalorder 2, %s33
      // Predicated region
      $region105: #{encoder_layer_forward.1} parent=5 // pred_check
        %p3244 = pneg %p3243
      $region106: #{encoder_layer_forward.1} parent=5 // pred_check_branch
        %3246 = sbr.rel (%p3244) target = $region108
      $region107: #{encoder_layer_forward.1} parent=5 // pred_region
        %s3247 = ssub.s32 %s33, 2
        // Predicated region
        $region109: #{encoder_layer_forward.1} parent=107 // pred_check
          %p3248 = pneg %p366
        $region110: #{encoder_layer_forward.1} parent=107 // pred_check_branch
          %3250 = sbr.rel (%p3248) target = $region112
        $region111: #{encoder_layer_forward.1} parent=107 // pred_region
          %s3251 = sand.u32 %s351, 1
          %s3252 = scalar_lea.sflag [#allocation4], %s3251
          %s3253 = sand.u32 %s351, 1
          %s3254 = smul.addr %s3253, 16
          %s3255 = scalar_lea.vmem [#allocation11], %s3254
          %3256 = dma.done %s3252, 256
        $region112: #{encoder_layer_forward.1} parent=107 // pred_fallthru
          _
        // Predicated region
        $region113: #{encoder_layer_forward.1} parent=107 // pred_check
          %p3257 = pneg %p392
        $region114: #{encoder_layer_forward.1} parent=107 // pred_check_branch
          %3259 = sbr.rel (%p3257) target = $region116
        $region115: #{encoder_layer_forward.1} parent=107 // pred_region
          %s3260 = sand.u32 %s377, 1
          %s3261 = scalar_lea.sflag [#allocation13], %s3260
          %s3262 = sand.u32 %s377, 1
          %s3263 = smul.addr %s3262, 128
          %s3264 = scalar_lea.vmem [#allocation12], %s3263
          %3265 = dma.done %s3261, 2048
        $region116: #{encoder_layer_forward.1} parent=107 // pred_fallthru
          _
      $region108: #{encoder_layer_forward.1} parent=5 // pred_fallthru
        _
    $region6: #{encoder_layer_forward.1} parent=1 // loop_footer
      %s37 = sadd.s32 1, %s33
    $region7: #{encoder_layer_forward.1} parent=1 // loop_footer_branch
      %32 = sbr.rel target = $region3
    $region8: #{encoder_layer_forward.1} parent=1 // loop_exit
      _
    %3266 = vsyncpa [#allocation3], 1
    %s3267 = scalar_lea.sflag [#allocation3], 1
    %3268 = vsyncpa %s3267, 1
    %3269 = vsyncpa [#allocation6], 1
    %3270 = vsyncpa [#allocation9], 1
    %3271 = vsyncpa [#allocation4], 1
    %s3272 = scalar_lea.sflag [#allocation4], 1
    %3273 = vsyncpa %s3272, 1
    %3274 = vsyncpa [#allocation13], 1
    %s3275 = scalar_lea.sflag [#allocation13], 1
    %3276 = vsyncpa %s3275, 1

</llo_original>
